<compile_context>
chip_gen: v7x
topology: tpu7x:2x2x1
jax: 0.10.0
libtpu: 0.0.40
codegen_flags: <defaults>
</compile_context>

<pallas_src>
import math

import jax
import jax.numpy as jnp
from jax.experimental import pallas as pl
from jax.experimental.pallas import tpu as pltpu

# logical (module) dims and padded (kernel) dims
D_IN, D_H1, D_H2, D_OUT = 80, 700, 500, 5
P_H1, P_H2, P_OUT = 768, 512, 128
_NEG = -1e30  # bias for padded softmax columns -> exp() == 0 exactly in f32


def _round_up(n, m):
    return ((n + m - 1) // m) * m


def _device_kind():
    try:
        return jax.devices()[0].device_kind.lower()
    except Exception:
        return ""


def _mlp_kernel(x_ref, w1_ref, b1_ref, w2_ref, b2_ref, w3_ref, b3_ref, o_ref):
    """One batch-tile of the full forward pass (all matmuls + activations)."""
    # in-kernel bf16 cast: VPU filler hidden under the MXU, no wrapper HBM pass
    x = x_ref[...].astype(jnp.bfloat16)                             # (tm, 80)

    # layer 1: sigmoid(X @ W1 + b1)   (bf16 MXU inputs, f32 accumulation)
    a1 = jnp.dot(x, w1_ref[...], preferred_element_type=jnp.float32) + b1_ref[...]
    h1 = 0.5 * jnp.tanh(0.5 * a1) + 0.5                             # (tm, 768) f32

    # layer 2: sigmoid(h1 @ W2 + b2)
    a2 = jnp.dot(h1.astype(jnp.bfloat16), w2_ref[...],
                 preferred_element_type=jnp.float32) + b2_ref[...]
    h2 = 0.5 * jnp.tanh(0.5 * a2) + 0.5                             # (tm, 512) f32

    # layer 3: softmax(h2 @ W3 + b3). Max subtraction is mathematically
    # identical to the module's raw exp/sum but robust in f32; padded output
    # columns carry a -1e30 bias -> exp() == 0, so they never perturb the sums.
    a3 = jnp.dot(h2.astype(jnp.bfloat16), w3_ref[...],
                 preferred_element_type=jnp.float32) + b3_ref[...]
    m = jnp.max(a3, axis=-1, keepdims=True)
    e = jnp.exp(a3 - m)                                             # (tm, 128) f32
    s = jnp.sum(e, axis=-1, keepdims=True)
    o_ref[...] = e * pl.reciprocal(s, approx=False)                 # exact divide


def prepare_params(w1, b1, w2, b2, w3, b3):
    """One-time padding + bf16 cast of the weights (hoisted off the call path)."""
    w1p = jnp.pad(w1, ((0, 0), (0, P_H1 - D_H1))).astype(jnp.bfloat16)        # (80, 768)
    b1p = jnp.pad(b1.reshape(1, D_H1), ((0, 0), (0, P_H1 - D_H1))).astype(jnp.float32)
    w2p = jnp.pad(w2, ((0, P_H1 - D_H1), (0, P_H2 - D_H2))).astype(jnp.bfloat16)
    b2p = jnp.pad(b2.reshape(1, D_H2), ((0, 0), (0, P_H2 - D_H2))).astype(jnp.float32)
    w3p = jnp.pad(w3, ((0, P_H2 - D_H2), (0, P_OUT - D_OUT))).astype(jnp.bfloat16)
    b3p = jnp.pad(b3.reshape(1, D_OUT), ((0, 0), (0, P_OUT - D_OUT)),
                  constant_values=_NEG).astype(jnp.float32)
    return (w1p, b1p, w2p, b2p, w3p, b3p)


def first_network_forward(x, params, *, tm=512):
    """x: (B, 80) float32, params from prepare_params -> (B, 5) f32 softmax."""
    B, d_in = x.shape
    assert d_in == D_IN
    w1p, b1p, w2p, b2p, w3p, b3p = params

    kind = _device_kind()
    is_v5e = ("v5e" in kind) or ("v5 lite" in kind) or ("v5litepod" in kind)
    multi_tc = ("v7" in kind) or ("v4" in kind) or ("v5p" in kind)
    granule = 128 if is_v5e else 256          # keep tm MXU-M friendly per chip
    cores = 2 if multi_tc else 1

    # ---- batch tiling: granule-aligned tile, ragged batches padded ----
    tm_req = max(granule, _round_up(tm, granule))
    tm_eff = min(tm_req, _round_up(B, granule))
    # multi-TC only: prefer >= `cores` grid steps for megacore sharding, but
    # never shrink the tile below the granule (split the grid, not the tile)
    if cores > 1 and tm_eff > granule and pl.cdiv(B, tm_eff) < cores:
        tm_eff = max(granule, _round_up(pl.cdiv(B, cores), granule))

    B_pad = _round_up(B, tm_eff)
    xp = jnp.pad(x, ((0, B_pad - B), (0, 0))) if B_pad != B else x  # batch-only pad

    grid = (B_pad // tm_eff,)

    # weights/biases: full-array blocks with a constant index_map -> DMA'd once
    # and resident in VMEM across all grid steps (~1.1 MB bf16 total).
    resident = lambda shape: pl.BlockSpec(shape, lambda i: (0, 0))

    cost = pl.CostEstimate(
        flops=2 * B_pad * (D_IN * P_H1 + P_H1 * P_H2 + P_H2 * P_OUT),
        transcendentals=B_pad * (P_H1 + P_H2 + P_OUT),
        bytes_accessed=(xp.size * 4 + B_pad * P_OUT * 4
                        + (w1p.size + w2p.size + w3p.size) * 2
                        + (b1p.size + b2p.size + b3p.size) * 4),
    )

    out = pl.pallas_call(
        _mlp_kernel,
        out_shape=jax.ShapeDtypeStruct((B_pad, P_OUT), jnp.float32),
        grid_spec=pltpu.PrefetchScalarGridSpec(
            num_scalar_prefetch=0,
            grid=grid,
            in_specs=[
                pl.BlockSpec((tm_eff, D_IN), lambda i: (i, 0)),   # X tile, raw f32
                resident((D_IN, P_H1)),                           # W1
                resident((1, P_H1)),                              # b1
                resident((P_H1, P_H2)),                           # W2
                resident((1, P_H2)),                              # b2
                resident((P_H2, P_OUT)),                          # W3
                resident((1, P_OUT)),                             # b3
            ],
            out_specs=pl.BlockSpec((tm_eff, P_OUT), lambda i: (i, 0)),
        ),
        compiler_params=pltpu.CompilerParams(
            dimension_semantics=("parallel",),
            vmem_limit_bytes=32 * 1024 * 1024,   # v5e's 16 MiB default is tight at tm>=512
        ),
        cost_estimate=cost,
    )(xp, w1p, b1p, w2p, b2p, w3p, b3p)

    # drop batch padding and the padded softmax lanes
    return out[:B, :D_OUT]


def _reference(x, w1, b1, w2, b2, w3, b3):
    """Plain-JAX reference using the same precision strategy (bf16 in, f32 acc)."""
    bf = jnp.bfloat16
    a1 = jnp.dot(x.astype(bf), w1.astype(bf), preferred_element_type=jnp.float32) + b1
    h1 = 0.5 * jnp.tanh(0.5 * a1) + 0.5
    a2 = jnp.dot(h1.astype(bf), w2.astype(bf), preferred_element_type=jnp.float32) + b2
    h2 = 0.5 * jnp.tanh(0.5 * a2) + 0.5
    a3 = jnp.dot(h2.astype(bf), w3.astype(bf), preferred_element_type=jnp.float32) + b3
    e = jnp.exp(a3)
    return e / jnp.sum(e, axis=-1, keepdims=True)


if __name__ == "__main__":
    key = jax.random.PRNGKey(0)
    k_x, k_w1, k_w2, k_w3 = jax.random.split(key, 4)

    B = 20  # deliberately not a multiple of 8 to exercise batch padding/tiling
    x = jax.random.normal(k_x, (B, D_IN), dtype=jnp.float32)

    # Deterministic parameter init mirroring the module's shapes:
    # randn(in, out) / sqrt(2), zero biases.
    w1 = jax.random.normal(k_w1, (D_IN, D_H1), dtype=jnp.float32) / math.sqrt(2)
    b1 = jnp.zeros((D_H1,), dtype=jnp.float32)
    w2 = jax.random.normal(k_w2, (D_H1, D_H2), dtype=jnp.float32) / math.sqrt(2)
    b2 = jnp.zeros((D_H2,), dtype=jnp.float32)
    w3 = jax.random.normal(k_w3, (D_H2, D_OUT), dtype=jnp.float32) / math.sqrt(2)
    b3 = jnp.zeros((D_OUT,), dtype=jnp.float32)

    # one-time weight prep (padding + bf16 cast), off the per-call path
    params = prepare_params(w1, b1, w2, b2, w3, b3)
    params = jax.block_until_ready(params)

    out = first_network_forward(x, params)
    out = jax.block_until_ready(out)

    ref = _reference(x, w1, b1, w2, b2, w3, b3)
    assert out.shape == (B, D_OUT)
    # tolerance covers bf16-input / f32-accum order differences
    assert jnp.allclose(out, ref, atol=1e-2, rtol=1e-2), "mismatch vs reference"
    # rows sum to 1 (softmax) — exact reciprocal keeps this tight
    assert jnp.allclose(jnp.sum(out, axis=-1), 1.0, atol=1e-3)

    print("KERNEL_OK")
</pallas_src>

<mosaic_0001>
module attributes {stable_mosaic.version = 11 : i64} {
  func.func @_mlp_kernel(%arg0: i32, %arg1: memref<256x80xf32, #tpu.memory_space<vmem>>, %arg2: memref<80x768xbf16, #tpu.memory_space<vmem>>, %arg3: memref<1x768xf32, #tpu.memory_space<vmem>>, %arg4: memref<768x512xbf16, #tpu.memory_space<vmem>>, %arg5: memref<1x512xf32, #tpu.memory_space<vmem>>, %arg6: memref<512x128xbf16, #tpu.memory_space<vmem>>, %arg7: memref<1x128xf32, #tpu.memory_space<vmem>>, %arg8: memref<256x128xf32, #tpu.memory_space<vmem>>) attributes {dimension_semantics = [#tpu.dimension_semantics<parallel>], iteration_bounds = array<i64: 1>, scalar_prefetch = 0 : i64, scratch_operands = 0 : i64, tpu.core_type = #tpu.core_type<tc>, window_params = [{transform_indices = @transform_0, window_bounds = array<i64: 256, 80>}, {pipeline_mode = #tpu.pipeline_mode<synchronous>, transform_indices = @transform_1, window_bounds = array<i64: 80, 768>}, {pipeline_mode = #tpu.pipeline_mode<synchronous>, transform_indices = @transform_2, window_bounds = array<i64: 1, 768>}, {pipeline_mode = #tpu.pipeline_mode<synchronous>, transform_indices = @transform_3, window_bounds = array<i64: 768, 512>}, {pipeline_mode = #tpu.pipeline_mode<synchronous>, transform_indices = @transform_4, window_bounds = array<i64: 1, 512>}, {pipeline_mode = #tpu.pipeline_mode<synchronous>, transform_indices = @transform_5, window_bounds = array<i64: 512, 128>}, {pipeline_mode = #tpu.pipeline_mode<synchronous>, transform_indices = @transform_6, window_bounds = array<i64: 1, 128>}, {transform_indices = @transform_7, window_bounds = array<i64: 256, 128>}]} {
    %c0 = arith.constant 0 : index
    %c0_0 = arith.constant 0 : index
    %0 = vector.load %arg1[%c0, %c0_0] : memref<256x80xf32, #tpu.memory_space<vmem>>, vector<256x80xf32>
    %1 = arith.truncf %0 : vector<256x80xf32> to vector<256x80xbf16>
    %c0_1 = arith.constant 0 : index
    %c0_2 = arith.constant 0 : index
    %2 = vector.load %arg2[%c0_1, %c0_2] : memref<80x768xbf16, #tpu.memory_space<vmem>>, vector<80x768xbf16>
    %cst = arith.constant dense<0.000000e+00> : vector<256x768xf32>
    %3 = tpu.matmul %1, %2, %cst {dimension_numbers = #tpu.dot_dimension_numbers<[1], [0], [0], [1], [0, 0, 1, 1], [], []>} : vector<256x80xbf16>, vector<80x768xbf16>, vector<256x768xf32> -> vector<256x768xf32>
    %c0_3 = arith.constant 0 : index
    %c0_4 = arith.constant 0 : index
    %4 = vector.load %arg3[%c0_3, %c0_4] : memref<1x768xf32, #tpu.memory_space<vmem>>, vector<1x768xf32>
    %5 = vector.broadcast %4 : vector<1x768xf32> to vector<256x768xf32>
    %6 = arith.addf %3, %5 : vector<256x768xf32>
    %cst_5 = arith.constant 5.000000e-01 : f32
    %7 = vector.broadcast %cst_5 : f32 to vector<256x768xf32>
    %8 = arith.mulf %7, %6 : vector<256x768xf32>
    %9 = math.tanh %8 : vector<256x768xf32>
    %cst_6 = arith.constant 5.000000e-01 : f32
    %10 = vector.broadcast %cst_6 : f32 to vector<256x768xf32>
    %11 = arith.mulf %10, %9 : vector<256x768xf32>
    %cst_7 = arith.constant 5.000000e-01 : f32
    %12 = vector.broadcast %cst_7 : f32 to vector<256x768xf32>
    %13 = arith.addf %11, %12 : vector<256x768xf32>
    %14 = arith.truncf %13 : vector<256x768xf32> to vector<256x768xbf16>
    %c0_8 = arith.constant 0 : index
    %c0_9 = arith.constant 0 : index
    %15 = vector.load %arg4[%c0_8, %c0_9] : memref<768x512xbf16, #tpu.memory_space<vmem>>, vector<768x512xbf16>
    %cst_10 = arith.constant dense<0.000000e+00> : vector<256x512xf32>
    %16 = tpu.matmul %14, %15, %cst_10 {dimension_numbers = #tpu.dot_dimension_numbers<[1], [0], [0], [1], [0, 0, 1, 1], [], []>} : vector<256x768xbf16>, vector<768x512xbf16>, vector<256x512xf32> -> vector<256x512xf32>
    %c0_11 = arith.constant 0 : index
    %c0_12 = arith.constant 0 : index
    %17 = vector.load %arg5[%c0_11, %c0_12] : memref<1x512xf32, #tpu.memory_space<vmem>>, vector<1x512xf32>
    %18 = vector.broadcast %17 : vector<1x512xf32> to vector<256x512xf32>
    %19 = arith.addf %16, %18 : vector<256x512xf32>
    %cst_13 = arith.constant 5.000000e-01 : f32
    %20 = vector.broadcast %cst_13 : f32 to vector<256x512xf32>
    %21 = arith.mulf %20, %19 : vector<256x512xf32>
    %22 = math.tanh %21 : vector<256x512xf32>
    %cst_14 = arith.constant 5.000000e-01 : f32
    %23 = vector.broadcast %cst_14 : f32 to vector<256x512xf32>
    %24 = arith.mulf %23, %22 : vector<256x512xf32>
    %cst_15 = arith.constant 5.000000e-01 : f32
    %25 = vector.broadcast %cst_15 : f32 to vector<256x512xf32>
    %26 = arith.addf %24, %25 : vector<256x512xf32>
    %27 = arith.truncf %26 : vector<256x512xf32> to vector<256x512xbf16>
    %c0_16 = arith.constant 0 : index
    %c0_17 = arith.constant 0 : index
    %28 = vector.load %arg6[%c0_16, %c0_17] : memref<512x128xbf16, #tpu.memory_space<vmem>>, vector<512x128xbf16>
    %cst_18 = arith.constant dense<0.000000e+00> : vector<256x128xf32>
    %29 = tpu.matmul %27, %28, %cst_18 {dimension_numbers = #tpu.dot_dimension_numbers<[1], [0], [0], [1], [0, 0, 1, 1], [], []>} : vector<256x512xbf16>, vector<512x128xbf16>, vector<256x128xf32> -> vector<256x128xf32>
    %c0_19 = arith.constant 0 : index
    %c0_20 = arith.constant 0 : index
    %30 = vector.load %arg7[%c0_19, %c0_20] : memref<1x128xf32, #tpu.memory_space<vmem>>, vector<1x128xf32>
    %31 = vector.broadcast %30 : vector<1x128xf32> to vector<256x128xf32>
    %32 = arith.addf %29, %31 : vector<256x128xf32>
    %cst_21 = arith.constant dense<0xFF800000> : vector<256xf32>
    %33 = vector.multi_reduction <maximumf>, %32, %cst_21 [1] : vector<256x128xf32> to vector<256xf32>
    %34 = vector.shape_cast %33 : vector<256xf32> to vector<256x1xf32>
    %35 = vector.broadcast %34 : vector<256x1xf32> to vector<256x128xf32>
    %36 = arith.subf %32, %35 : vector<256x128xf32>
    %37 = math.exp %36 : vector<256x128xf32>
    %cst_22 = arith.constant dense<0.000000e+00> : vector<256xf32>
    %38 = vector.multi_reduction <add>, %37, %cst_22 [1] : vector<256x128xf32> to vector<256xf32>
    %39 = vector.shape_cast %38 : vector<256xf32> to vector<256x1xf32>
    %40 = tpu.reciprocal %39 : vector<256x1xf32> -> vector<256x1xf32>
    %41 = vector.broadcast %40 : vector<256x1xf32> to vector<256x128xf32>
    %42 = arith.mulf %37, %41 : vector<256x128xf32>
    %c0_23 = arith.constant 0 : index
    %c0_24 = arith.constant 0 : index
    %43 = vector.load %arg8[%c0_23, %c0_24] : memref<256x128xf32, #tpu.memory_space<vmem>>, vector<256x128xf32>
    tpu.vector_store %arg8[%c0_23, %c0_24], %42 {strides = array<i32>} : memref<256x128xf32, #tpu.memory_space<vmem>>, vector<256x128xf32>,
    return
  }
  func.func @transform_0(%arg0: i32) -> (i32, i32) {
    %c0_i32 = arith.constant 0 : i32
    %c0_i32_0 = arith.constant 0 : i32
    return %arg0, %c0_i32 : i32, i32
  }
  func.func @transform_1(%arg0: i32) -> (i32, i32) {
    %c0_i32 = arith.constant 0 : i32
    %c0_i32_0 = arith.constant 0 : i32
    %c0_i32_1 = arith.constant 0 : i32
    return %c0_i32, %c0_i32_0 : i32, i32
  }
  func.func @transform_2(%arg0: i32) -> (i32, i32) {
    %c0_i32 = arith.constant 0 : i32
    %c0_i32_0 = arith.constant 0 : i32
    %c0_i32_1 = arith.constant 0 : i32
    return %c0_i32, %c0_i32_0 : i32, i32
  }
  func.func @transform_3(%arg0: i32) -> (i32, i32) {
    %c0_i32 = arith.constant 0 : i32
    %c0_i32_0 = arith.constant 0 : i32
    %c0_i32_1 = arith.constant 0 : i32
    return %c0_i32, %c0_i32_0 : i32, i32
  }
  func.func @transform_4(%arg0: i32) -> (i32, i32) {
    %c0_i32 = arith.constant 0 : i32
    %c0_i32_0 = arith.constant 0 : i32
    %c0_i32_1 = arith.constant 0 : i32
    return %c0_i32, %c0_i32_0 : i32, i32
  }
  func.func @transform_5(%arg0: i32) -> (i32, i32) {
    %c0_i32 = arith.constant 0 : i32
    %c0_i32_0 = arith.constant 0 : i32
    %c0_i32_1 = arith.constant 0 : i32
    return %c0_i32, %c0_i32_0 : i32, i32
  }
  func.func @transform_6(%arg0: i32) -> (i32, i32) {
    %c0_i32 = arith.constant 0 : i32
    %c0_i32_0 = arith.constant 0 : i32
    %c0_i32_1 = arith.constant 0 : i32
    return %c0_i32, %c0_i32_0 : i32, i32
  }
  func.func @transform_7(%arg0: i32) -> (i32, i32) {
    %c0_i32 = arith.constant 0 : i32
    %c0_i32_0 = arith.constant 0 : i32
    return %arg0, %c0_i32 : i32, i32
  }
}

</mosaic_0001>

<llo_original>
// kernel: tpu_custom_call.1
$region0: #{tpu_custom_call.1}
  #allocation0 [shape = 'u32[]', space=smem, size = 0x4, offset = 0x4, fixed_abs, tag = 'smem constant byte address 0x4 - core index']
  #allocation1 [shape = 'u32[144,128]{1,0:T(1,128)}', space=vmem, size = 0x12000, scoped, tag = 'internal scratch']
  %s0 = inlined_call_operand.vmem [shape: f32[256,80], index: 0, kind: input, shape index: {}]
  %s1 = inlined_call_operand.hbm [shape: bf16[80,768], index: 1, kind: input, shape index: {}]
  %s2 = inlined_call_operand.vmem [shape: f32[1,768], index: 2, kind: input, shape index: {}]
  %s3 = inlined_call_operand.hbm [shape: bf16[768,512], index: 3, kind: input, shape index: {}]
  %s4 = inlined_call_operand.vmem [shape: f32[1,512], index: 4, kind: input, shape index: {}]
  %s5 = inlined_call_operand.vmem [shape: bf16[512,128], index: 5, kind: input, shape index: {}]
  %s6 = inlined_call_operand.vmem [shape: f32[1,128], index: 6, kind: input, shape index: {}]
  %s7 = inlined_call_operand.hbm [shape: f32[256,128], index: 7, kind: output, shape index: {}]
  %s8 = sld [smem:[#allocation0]]
  $region46: #{tpu_custom_call.1} parent=0
    _
  %s10 = ssub.s32 1, %s8
  %s11 = scalar_select 0, %s10, %s8
  $region1: #{tpu_custom_call.1} parent=0
    #allocation2 [shape = 'u8[122880]{0}', space=vmem, size = 0x1e000, scoped, tag = 'input window, operand 1, single buffered']
    #allocation3 [shape = 's32[1]{0}', space=sflag, size = 0x4, scoped, tag = 'scoped memory for tpu_custom_call.1']
    #allocation4 [shape = 's32[1]{0}', space=sflag, size = 0x4, scoped, tag = 'scoped memory for tpu_custom_call.1']
    #allocation5 [shape = 'u8[786432]{0}', space=vmem, size = 0xc0000, scoped, tag = 'input window, operand 3, single buffered']
    #allocation6 [shape = 's32[1]{0}', space=sflag, size = 0x4, scoped, tag = 'scoped memory for tpu_custom_call.1']
    #allocation7 [shape = 'u8[131072]{0}', space=vmem, size = 0x20000, scoped, tag = 'output window, operand 0, single buffered']
    %12 = vsyncpa [#allocation3], 0
    %13 = vsyncpa [#allocation6], 0
    %14 = vsyncpa [#allocation4], 0
    // Predicated region
    $region2: #{tpu_custom_call.1} parent=1 // pred_check
      _
    $region3: #{tpu_custom_call.1} parent=1 // pred_check_branch
      %16 = sbr.rel (0) target = $region5
    $region4: #{tpu_custom_call.1} parent=1 // pred_region
      _
    $region5: #{tpu_custom_call.1} parent=1 // pred_fallthru
      _
    // Predicated region
    $region6: #{tpu_custom_call.1} parent=1 // pred_check
      _
    $region7: #{tpu_custom_call.1} parent=1 // pred_check_branch
      %18 = sbr.rel (0) target = $region9
    $region8: #{tpu_custom_call.1} parent=1 // pred_region
      %s20 = ssub.s32 3840, 3840
      %21 = vsyncadd [#allocation3], %s20
      %s22 = sshll.u32 [#allocation2], 4
      %s23 = int_to_ptr.vmem [resolvable:$true] %s22
      %28 = dma.hbm_to_vmem [thread:$0]  %s1, 3840, %s23, [#allocation3], 384, 384, 24
    $region9: #{tpu_custom_call.1} parent=1 // pred_fallthru
      _
    // Predicated region
    $region10: #{tpu_custom_call.1} parent=1 // pred_check
      _
    $region11: #{tpu_custom_call.1} parent=1 // pred_check_branch
      %30 = sbr.rel (0) target = $region13
    $region12: #{tpu_custom_call.1} parent=1 // pred_region
      _
    $region13: #{tpu_custom_call.1} parent=1 // pred_fallthru
      _
    // Predicated region
    $region14: #{tpu_custom_call.1} parent=1 // pred_check
      _
    $region15: #{tpu_custom_call.1} parent=1 // pred_check_branch
      %32 = sbr.rel (0) target = $region17
    $region16: #{tpu_custom_call.1} parent=1 // pred_region
      %s34 = ssub.s32 24576, 24576
      %35 = vsyncadd [#allocation6], %s34
      %s36 = sshll.u32 [#allocation5], 4
      %s37 = int_to_ptr.vmem [resolvable:$true] %s36
      %42 = dma.hbm_to_vmem [thread:$0]  %s3, 24576, %s37, [#allocation6], 256, 256, 16
    $region17: #{tpu_custom_call.1} parent=1 // pred_fallthru
      _
    // Predicated region
    $region18: #{tpu_custom_call.1} parent=1 // pred_check
      _
    $region19: #{tpu_custom_call.1} parent=1 // pred_check_branch
      %44 = sbr.rel (0) target = $region21
    $region20: #{tpu_custom_call.1} parent=1 // pred_region
      _
    $region21: #{tpu_custom_call.1} parent=1 // pred_fallthru
      _
    // Predicated region
    $region22: #{tpu_custom_call.1} parent=1 // pred_check
      _
    $region23: #{tpu_custom_call.1} parent=1 // pred_check_branch
      %46 = sbr.rel (0) target = $region25
    $region24: #{tpu_custom_call.1} parent=1 // pred_region
      _
    $region25: #{tpu_custom_call.1} parent=1 // pred_fallthru
      _
    // Predicated region
    $region26: #{tpu_custom_call.1} parent=1 // pred_check
      _
    $region27: #{tpu_custom_call.1} parent=1 // pred_check_branch
      %48 = sbr.rel (0) target = $region29
    $region28: #{tpu_custom_call.1} parent=1 // pred_region
      _
    $region29: #{tpu_custom_call.1} parent=1 // pred_fallthru
      _
    // Predicated region
    $region30: #{tpu_custom_call.1} parent=1 // pred_check
      _
    $region31: #{tpu_custom_call.1} parent=1 // pred_check_branch
      %50 = sbr.rel (0) target = $region33
    $region32: #{tpu_custom_call.1} parent=1 // pred_region
      %51 = dma.done [#allocation3], 3840
    $region33: #{tpu_custom_call.1} parent=1 // pred_fallthru
      _
    // Predicated region
    $region34: #{tpu_custom_call.1} parent=1 // pred_check
      _
    $region35: #{tpu_custom_call.1} parent=1 // pred_check_branch
      %53 = sbr.rel (0) target = $region37
    $region36: #{tpu_custom_call.1} parent=1 // pred_region
      %54 = dma.done [#allocation6], 24576
    $region37: #{tpu_custom_call.1} parent=1 // pred_fallthru
      _
    %v56 = vld [vmem:[%s0] sm:$0xff]
    %v57 = vld [vmem:[%s0 + $0x8] sm:$0xff]
    %v58 = vld [vmem:[%s0 + $0x10] sm:$0xff]
    %v59 = vld [vmem:[%s0 + $0x18] sm:$0xff]
    %v60 = vld [vmem:[%s0 + $0x20] sm:$0xff]
    %v61 = vld [vmem:[%s0 + $0x28] sm:$0xff]
    %v62 = vld [vmem:[%s0 + $0x30] sm:$0xff]
    %v63 = vld [vmem:[%s0 + $0x38] sm:$0xff]
    %v64 = vld [vmem:[%s0 + $0x40] sm:$0xff]
    %v65 = vld [vmem:[%s0 + $0x48] sm:$0xff]
    %v66 = vld [vmem:[%s0 + $0x50] sm:$0xff]
    %v67 = vld [vmem:[%s0 + $0x58] sm:$0xff]
    %v68 = vld [vmem:[%s0 + $0x60] sm:$0xff]
    %v69 = vld [vmem:[%s0 + $0x68] sm:$0xff]
    %v70 = vld [vmem:[%s0 + $0x70] sm:$0xff]
    %v71 = vld [vmem:[%s0 + $0x78] sm:$0xff]
    %v72 = vld [vmem:[%s0 + $0x80] sm:$0xff]
    %v73 = vld [vmem:[%s0 + $0x88] sm:$0xff]
    %v74 = vld [vmem:[%s0 + $0x90] sm:$0xff]
    %v75 = vld [vmem:[%s0 + $0x98] sm:$0xff]
    %v76 = vld [vmem:[%s0 + $0xa0] sm:$0xff]
    %v77 = vld [vmem:[%s0 + $0xa8] sm:$0xff]
    %v78 = vld [vmem:[%s0 + $0xb0] sm:$0xff]
    %v79 = vld [vmem:[%s0 + $0xb8] sm:$0xff]
    %v80 = vld [vmem:[%s0 + $0xc0] sm:$0xff]
    %v81 = vld [vmem:[%s0 + $0xc8] sm:$0xff]
    %v82 = vld [vmem:[%s0 + $0xd0] sm:$0xff]
    %v83 = vld [vmem:[%s0 + $0xd8] sm:$0xff]
    %v84 = vld [vmem:[%s0 + $0xe0] sm:$0xff]
    %v85 = vld [vmem:[%s0 + $0xe8] sm:$0xff]
    %v86 = vld [vmem:[%s0 + $0xf0] sm:$0xff]
    %v87 = vld [vmem:[%s0 + $0xf8] sm:$0xff]
    %v88 = vpack.c.bf16 %v57, %v56
    %v89 = vpack.c.bf16 %v59, %v58
    %v90 = vpack.c.bf16 %v61, %v60
    %v91 = vpack.c.bf16 %v63, %v62
    %v92 = vpack.c.bf16 %v65, %v64
    %v93 = vpack.c.bf16 %v67, %v66
    %v94 = vpack.c.bf16 %v69, %v68
    %v95 = vpack.c.bf16 %v71, %v70
    %v96 = vpack.c.bf16 %v73, %v72
    %v97 = vpack.c.bf16 %v75, %v74
    %v98 = vpack.c.bf16 %v77, %v76
    %v99 = vpack.c.bf16 %v79, %v78
    %v100 = vpack.c.bf16 %v81, %v80
    %v101 = vpack.c.bf16 %v83, %v82
    %v102 = vpack.c.bf16 %v85, %v84
    %v103 = vpack.c.bf16 %v87, %v86
    %v104 = vld [vmem:[#allocation2] sm:$0xff]
    %v105 = vld [vmem:[#allocation2 + $0x8] sm:$0xff]
    %v106 = vld [vmem:[#allocation2 + $0x10] sm:$0xff]
    %v107 = vld [vmem:[#allocation2 + $0x18] sm:$0xff]
    %v108 = vld [vmem:[#allocation2 + $0x20] sm:$0xff]
    %v109 = vld [vmem:[#allocation2 + $0x28] sm:$0xff]
    %v110 = vld [vmem:[#allocation2 + $0x30] sm:$0xff]
    %v111 = vld [vmem:[#allocation2 + $0x38] sm:$0xff]
    %v112 = vld [vmem:[#allocation2 + $0x40] sm:$0xff]
    %v113 = vld [vmem:[#allocation2 + $0x48] sm:$0xff]
    %v114 = vld [vmem:[#allocation2 + $0x50] sm:$0xff]
    %v115 = vld [vmem:[#allocation2 + $0x58] sm:$0xff]
    %v116 = vld [vmem:[#allocation2 + $0x60] sm:$0xff]
    %v117 = vld [vmem:[#allocation2 + $0x68] sm:$0xff]
    %v118 = vld [vmem:[#allocation2 + $0x70] sm:$0xff]
    %v119 = vld [vmem:[#allocation2 + $0x78] sm:$0xff]
    %v120 = vld [vmem:[#allocation2 + $0x80] sm:$0xff]
    %v121 = vld [vmem:[#allocation2 + $0x88] sm:$0xff]
    %v122 = vld [vmem:[#allocation2 + $0x90] sm:$0xff]
    %v123 = vld [vmem:[#allocation2 + $0x98] sm:$0xff]
    %v124 = vld [vmem:[#allocation2 + $0xa0] sm:$0xff]
    %v125 = vld [vmem:[#allocation2 + $0xa8] sm:$0xff]
    %v126 = vld [vmem:[#allocation2 + $0xb0] sm:$0xff]
    %v127 = vld [vmem:[#allocation2 + $0xb8] sm:$0xff]
    %v128 = vld [vmem:[#allocation2 + $0xc0] sm:$0xff]
    %v129 = vld [vmem:[#allocation2 + $0xc8] sm:$0xff]
    %v130 = vld [vmem:[#allocation2 + $0xd0] sm:$0xff]
    %v131 = vld [vmem:[#allocation2 + $0xd8] sm:$0xff]
    %v132 = vld [vmem:[#allocation2 + $0xe0] sm:$0xff]
    %v133 = vld [vmem:[#allocation2 + $0xe8] sm:$0xff]
    %v134 = vld [vmem:[%s2] sm:$0x3f]
    %v136 = vlaneseq
    %v137 = vshrl.u32 %v136, 7
    %v138 = vsub.s32 0, %v137
    %v139 = vrot.slane %v134, %v138
    %v140 = vlaneseq
    %v141 = vshrl.u32 %v140, 7
    %v142 = vsub.s32 1, %v141
    %v143 = vrot.slane %v134, %v142
    %v144 = vlaneseq
    %v145 = vshrl.u32 %v144, 7
    %v146 = vsub.s32 2, %v145
    %v147 = vrot.slane %v134, %v146
    %v148 = vlaneseq
    %v149 = vshrl.u32 %v148, 7
    %v150 = vsub.s32 3, %v149
    %v151 = vrot.slane %v134, %v150
    %v152 = vlaneseq
    %v153 = vshrl.u32 %v152, 7
    %v154 = vsub.s32 4, %v153
    %v155 = vrot.slane %v134, %v154
    %v156 = vlaneseq
    %v157 = vshrl.u32 %v156, 7
    %v158 = vsub.s32 5, %v157
    %v159 = vrot.slane %v134, %v158
    %v196 = vunpack.c.l.b16 %v104
    %v197 = vunpack.c.h.b16 %v104
    %v198 = vunpack.c.l.b16 %v105
    %v199 = vunpack.c.h.b16 %v105
    %v200 = vunpack.c.l.b16 %v106
    %v201 = vunpack.c.h.b16 %v106
    %v202 = vunpack.c.l.b16 %v107
    %v203 = vunpack.c.h.b16 %v107
    %v204 = vunpack.c.l.b16 %v108
    %v205 = vunpack.c.h.b16 %v108
    %v206 = vunpack.c.l.b16 %v109
    %v207 = vunpack.c.h.b16 %v109
    %v208 = vunpack.c.l.b16 %v110
    %v209 = vunpack.c.h.b16 %v110
    %v210 = vunpack.c.l.b16 %v111
    %v211 = vunpack.c.h.b16 %v111
    %v212 = vunpack.c.l.b16 %v112
    %v213 = vunpack.c.h.b16 %v112
    %v214 = vunpack.c.l.b16 %v113
    %v215 = vunpack.c.h.b16 %v113
    %v216 = vunpack.c.l.b16 %v114
    %v217 = vunpack.c.h.b16 %v114
    %v218 = vunpack.c.l.b16 %v115
    %v219 = vunpack.c.h.b16 %v115
    %v220 = vunpack.c.l.b16 %v116
    %v221 = vunpack.c.h.b16 %v116
    %v222 = vunpack.c.l.b16 %v117
    %v223 = vunpack.c.h.b16 %v117
    %v224 = vunpack.c.l.b16 %v118
    %v225 = vunpack.c.h.b16 %v118
    %v226 = vunpack.c.l.b16 %v119
    %v227 = vunpack.c.h.b16 %v119
    %v228 = vunpack.c.l.b16 %v120
    %v229 = vunpack.c.h.b16 %v120
    %v230 = vunpack.c.l.b16 %v121
    %v231 = vunpack.c.h.b16 %v121
    %v232 = vunpack.c.l.b16 %v122
    %v233 = vunpack.c.h.b16 %v122
    %v234 = vunpack.c.l.b16 %v123
    %v235 = vunpack.c.h.b16 %v123
    %v236 = vunpack.c.l.b16 %v124
    %v237 = vunpack.c.h.b16 %v124
    %v238 = vunpack.c.l.b16 %v125
    %v239 = vunpack.c.h.b16 %v125
    %v240 = vunpack.c.l.b16 %v126
    %v241 = vunpack.c.h.b16 %v126
    %v242 = vunpack.c.l.b16 %v127
    %v243 = vunpack.c.h.b16 %v127
    %v244 = vunpack.c.l.b16 %v128
    %v245 = vunpack.c.h.b16 %v128
    %v246 = vunpack.c.l.b16 %v129
    %v247 = vunpack.c.h.b16 %v129
    %v248 = vunpack.c.l.b16 %v130
    %v249 = vunpack.c.h.b16 %v130
    %v250 = vunpack.c.l.b16 %v131
    %v251 = vunpack.c.h.b16 %v131
    %v252 = vunpack.c.l.b16 %v132
    %v253 = vunpack.c.h.b16 %v132
    %v254 = vunpack.c.l.b16 %v133
    %v255 = vunpack.c.h.b16 %v133
    %v256 = vpack.c.b16 %v202, %v196
    %v257 = vpack.c.b16 %v203, %v197
    %v258 = vpack.c.b16 %v204, %v198
    %v259 = vpack.c.b16 %v205, %v199
    %v260 = vpack.c.b16 %v206, %v200
    %v261 = vpack.c.b16 %v207, %v201
    %v262 = vpack.c.b16 %v214, %v208
    %v263 = vpack.c.b16 %v215, %v209
    %v264 = vpack.c.b16 %v216, %v210
    %v265 = vpack.c.b16 %v217, %v211
    %v266 = vpack.c.b16 %v218, %v212
    %v267 = vpack.c.b16 %v219, %v213
    %v268 = vpack.c.b16 %v226, %v220
    %v269 = vpack.c.b16 %v227, %v221
    %v270 = vpack.c.b16 %v228, %v222
    %v271 = vpack.c.b16 %v229, %v223
    %v272 = vpack.c.b16 %v230, %v224
    %v273 = vpack.c.b16 %v231, %v225
    %v274 = vpack.c.b16 %v238, %v232
    %v275 = vpack.c.b16 %v239, %v233
    %v276 = vpack.c.b16 %v240, %v234
    %v277 = vpack.c.b16 %v241, %v235
    %v278 = vpack.c.b16 %v242, %v236
    %v279 = vpack.c.b16 %v243, %v237
    %v280 = vpack.c.b16 %v250, %v244
    %v281 = vpack.c.b16 %v251, %v245
    %v282 = vpack.c.b16 %v252, %v246
    %v283 = vpack.c.b16 %v253, %v247
    %v284 = vpack.c.b16 %v254, %v248
    %v285 = vpack.c.b16 %v255, %v249
    %vm316 = vcmask 654336
    %v318 = vsel %vm316, %v88, 0
    %v321 = vsel %vm316, %v89, 0
    %v324 = vsel %vm316, %v90, 0
    %v327 = vsel %vm316, %v91, 0
    %v330 = vsel %vm316, %v92, 0
    %v333 = vsel %vm316, %v93, 0
    %v336 = vsel %vm316, %v94, 0
    %v339 = vsel %vm316, %v95, 0
    %v342 = vsel %vm316, %v96, 0
    %v345 = vsel %vm316, %v97, 0
    %v348 = vsel %vm316, %v98, 0
    %v351 = vsel %vm316, %v99, 0
    %v354 = vsel %vm316, %v100, 0
    %v357 = vsel %vm316, %v101, 0
    %v360 = vsel %vm316, %v102, 0
    %v363 = vsel %vm316, %v103, 0
    %365 = vmatprep.subr.bf16.mxu0 %v257
    %366 = vmatpush1.bf16.msra.mxu0 %v256
    %367 = vmatprep.subr.bf16.mxu0 %v263
    %368 = vmatpush1.bf16.msra.mxu0 %v262
    %369 = vmatprep.subr.bf16.mxu0 %v269
    %370 = vmatpush1.bf16.msra.mxu0 %v268
    %371 = vmatprep.subr.bf16.mxu0 %v275
    %372 = vmatpush1.bf16.msra.mxu0 %v274
    %373 = vmatprep.subr.bf16.mxu0 %v281
    %374 = vmatpush1.bf16.msra.mxu0 %v280
    %375 = vmatprep.subr.bf16.mxu0 0
    %376 = vmatpush1.bf16.msra.mxu0 0
    %377 = vmatprep.subr.bf16.mxu0 0
    %378 = vmatpush1.bf16.msra.mxu0 0
    %379 = vmatprep.subr.bf16.mxu0 0
    %380 = vmatpush1.bf16.msra.mxu0 0
    %381 = vmatprep.subr.bf16.mxu0 0
    %382 = vmatpush1.bf16.msra.mxu0 0
    %383 = vmatprep.subr.bf16.mxu0 0
    %384 = vmatpush1.bf16.msra.mxu0 0
    %385 = vmatprep.subr.bf16.mxu0 0
    %386 = vmatpush1.bf16.msra.mxu0 0
    %387 = vmatprep.subr.bf16.mxu0 0
    %388 = vmatpush1.bf16.msra.mxu0 0
    %389 = vmatprep.subr.bf16.mxu0 0
    %390 = vmatpush1.bf16.msra.mxu0 0
    %391 = vmatprep.subr.bf16.mxu0 0
    %392 = vmatpush1.bf16.msra.mxu0 0
    %393 = vmatprep.subr.bf16.mxu0 0
    %394 = vmatpush1.bf16.msra.mxu0 0
    %395 = vmatprep.subr.bf16.mxu0 0
    %396 = vmatpush1.bf16.msra.mxu0 0
    %397 = vmatprep.mubr.bf16.mxu0 0
    %398 = vmatmul.mubr.bf16.gmra.mrb[0].mxu0 %v318
    %v399 = vpop.f32.mrb[0].mxu0
    %v400 = vadd.f32 %v139, %v399
    %v401 = vpop.f32.mrb[0].mxu0
    %v402 = vadd.f32 %v143, %v401
    %v403 = vpop.f32.mrb[0].mxu0
    %v404 = vadd.f32 %v139, %v403
    %v405 = vpop.f32.mrb[0].mxu0
    %v406 = vadd.f32 %v143, %v405
    %407 = vmatprep.mubr.bf16.mxu0 0
    %408 = vmatmul.mubr.bf16.gmra.mrb[0].mxu0 %v321
    %v409 = vpop.f32.mrb[0].mxu0
    %v410 = vadd.f32 %v139, %v409
    %v411 = vpop.f32.mrb[0].mxu0
    %v412 = vadd.f32 %v143, %v411
    %v413 = vpop.f32.mrb[0].mxu0
    %v414 = vadd.f32 %v139, %v413
    %v415 = vpop.f32.mrb[0].mxu0
    %v416 = vadd.f32 %v143, %v415
    %417 = vmatprep.mubr.bf16.mxu0 0
    %418 = vmatmul.mubr.bf16.gmra.mrb[0].mxu0 %v324
    %v419 = vpop.f32.mrb[0].mxu0
    %v420 = vadd.f32 %v139, %v419
    %v421 = vpop.f32.mrb[0].mxu0
    %v422 = vadd.f32 %v143, %v421
    %v423 = vpop.f32.mrb[0].mxu0
    %v424 = vadd.f32 %v139, %v423
    %v425 = vpop.f32.mrb[0].mxu0
    %v426 = vadd.f32 %v143, %v425
    %427 = vmatprep.mubr.bf16.mxu0 0
    %428 = vmatmul.mubr.bf16.gmra.mrb[0].mxu0 %v327
    %v429 = vpop.f32.mrb[0].mxu0
    %v430 = vadd.f32 %v139, %v429
    %v431 = vpop.f32.mrb[0].mxu0
    %v432 = vadd.f32 %v143, %v431
    %v433 = vpop.f32.mrb[0].mxu0
    %v434 = vadd.f32 %v139, %v433
    %v435 = vpop.f32.mrb[0].mxu0
    %v436 = vadd.f32 %v143, %v435
    %437 = vmatprep.mubr.bf16.mxu0 0
    %438 = vmatmul.mubr.bf16.gmra.mrb[0].mxu0 %v330
    %v439 = vpop.f32.mrb[0].mxu0
    %v440 = vadd.f32 %v139, %v439
    %v441 = vpop.f32.mrb[0].mxu0
    %v442 = vadd.f32 %v143, %v441
    %v443 = vpop.f32.mrb[0].mxu0
    %v444 = vadd.f32 %v139, %v443
    %v445 = vpop.f32.mrb[0].mxu0
    %v446 = vadd.f32 %v143, %v445
    %447 = vmatprep.mubr.bf16.mxu0 0
    %448 = vmatmul.mubr.bf16.gmra.mrb[0].mxu0 %v333
    %v449 = vpop.f32.mrb[0].mxu0
    %v450 = vadd.f32 %v139, %v449
    %v451 = vpop.f32.mrb[0].mxu0
    %v452 = vadd.f32 %v143, %v451
    %v453 = vpop.f32.mrb[0].mxu0
    %v454 = vadd.f32 %v139, %v453
    %v455 = vpop.f32.mrb[0].mxu0
    %v456 = vadd.f32 %v143, %v455
    %457 = vmatprep.mubr.bf16.mxu0 0
    %458 = vmatmul.mubr.bf16.gmra.mrb[0].mxu0 %v336
    %v459 = vpop.f32.mrb[0].mxu0
    %v460 = vadd.f32 %v139, %v459
    %v461 = vpop.f32.mrb[0].mxu0
    %v462 = vadd.f32 %v143, %v461
    %v463 = vpop.f32.mrb[0].mxu0
    %v464 = vadd.f32 %v139, %v463
    %v465 = vpop.f32.mrb[0].mxu0
    %v466 = vadd.f32 %v143, %v465
    %467 = vmatprep.mubr.bf16.mxu0 0
    %468 = vmatmul.mubr.bf16.gmra.mrb[0].mxu0 %v339
    %v469 = vpop.f32.mrb[0].mxu0
    %v470 = vadd.f32 %v139, %v469
    %v471 = vpop.f32.mrb[0].mxu0
    %v472 = vadd.f32 %v143, %v471
    %v473 = vpop.f32.mrb[0].mxu0
    %v474 = vadd.f32 %v139, %v473
    %v475 = vpop.f32.mrb[0].mxu0
    %v476 = vadd.f32 %v143, %v475
    %477 = vmatprep.mubr.bf16.mxu0 0
    %478 = vmatmul.mubr.bf16.gmra.mrb[0].mxu0 %v342
    %v479 = vpop.f32.mrb[0].mxu0
    %v480 = vadd.f32 %v139, %v479
    %v481 = vpop.f32.mrb[0].mxu0
    %v482 = vadd.f32 %v143, %v481
    %v483 = vpop.f32.mrb[0].mxu0
    %v484 = vadd.f32 %v139, %v483
    %v485 = vpop.f32.mrb[0].mxu0
    %v486 = vadd.f32 %v143, %v485
    %487 = vmatprep.mubr.bf16.mxu0 0
    %488 = vmatmul.mubr.bf16.gmra.mrb[0].mxu0 %v345
    %v489 = vpop.f32.mrb[0].mxu0
    %v490 = vadd.f32 %v139, %v489
    %v491 = vpop.f32.mrb[0].mxu0
    %v492 = vadd.f32 %v143, %v491
    %v493 = vpop.f32.mrb[0].mxu0
    %v494 = vadd.f32 %v139, %v493
    %v495 = vpop.f32.mrb[0].mxu0
    %v496 = vadd.f32 %v143, %v495
    %497 = vmatprep.mubr.bf16.mxu0 0
    %498 = vmatmul.mubr.bf16.gmra.mrb[0].mxu0 %v348
    %v499 = vpop.f32.mrb[0].mxu0
    %v500 = vadd.f32 %v139, %v499
    %v501 = vpop.f32.mrb[0].mxu0
    %v502 = vadd.f32 %v143, %v501
    %v503 = vpop.f32.mrb[0].mxu0
    %v504 = vadd.f32 %v139, %v503
    %v505 = vpop.f32.mrb[0].mxu0
    %v506 = vadd.f32 %v143, %v505
    %507 = vmatprep.mubr.bf16.mxu0 0
    %508 = vmatmul.mubr.bf16.gmra.mrb[0].mxu0 %v351
    %v509 = vpop.f32.mrb[0].mxu0
    %v510 = vadd.f32 %v139, %v509
    %v511 = vpop.f32.mrb[0].mxu0
    %v512 = vadd.f32 %v143, %v511
    %v513 = vpop.f32.mrb[0].mxu0
    %v514 = vadd.f32 %v139, %v513
    %v515 = vpop.f32.mrb[0].mxu0
    %v516 = vadd.f32 %v143, %v515
    %517 = vmatprep.mubr.bf16.mxu0 0
    %518 = vmatmul.mubr.bf16.gmra.mrb[0].mxu0 %v354
    %v519 = vpop.f32.mrb[0].mxu0
    %v520 = vadd.f32 %v139, %v519
    %v521 = vpop.f32.mrb[0].mxu0
    %v522 = vadd.f32 %v143, %v521
    %v523 = vpop.f32.mrb[0].mxu0
    %v524 = vadd.f32 %v139, %v523
    %v525 = vpop.f32.mrb[0].mxu0
    %v526 = vadd.f32 %v143, %v525
    %527 = vmatprep.mubr.bf16.mxu0 0
    %528 = vmatmul.mubr.bf16.gmra.mrb[0].mxu0 %v357
    %v529 = vpop.f32.mrb[0].mxu0
    %v530 = vadd.f32 %v139, %v529
    %v531 = vpop.f32.mrb[0].mxu0
    %v532 = vadd.f32 %v143, %v531
    %v533 = vpop.f32.mrb[0].mxu0
    %v534 = vadd.f32 %v139, %v533
    %v535 = vpop.f32.mrb[0].mxu0
    %v536 = vadd.f32 %v143, %v535
    %537 = vmatprep.mubr.bf16.mxu0 0
    %538 = vmatmul.mubr.bf16.gmra.mrb[0].mxu0 %v360
    %v539 = vpop.f32.mrb[0].mxu0
    %v540 = vadd.f32 %v139, %v539
    %v541 = vpop.f32.mrb[0].mxu0
    %v542 = vadd.f32 %v143, %v541
    %v543 = vpop.f32.mrb[0].mxu0
    %v544 = vadd.f32 %v139, %v543
    %v545 = vpop.f32.mrb[0].mxu0
    %v546 = vadd.f32 %v143, %v545
    %547 = vmatprep.mubr.bf16.mxu0 0
    %548 = vmatmul.mubr.bf16.gmra.mrb[0].mxu0 %v363
    %v549 = vpop.f32.mrb[0].mxu0
    %v550 = vadd.f32 %v139, %v549
    %v551 = vpop.f32.mrb[0].mxu0
    %v552 = vadd.f32 %v143, %v551
    %v553 = vpop.f32.mrb[0].mxu0
    %v554 = vadd.f32 %v139, %v553
    %v555 = vpop.f32.mrb[0].mxu0
    %v556 = vadd.f32 %v143, %v555
    %557 = vdwg.mxu0
    %558 = vmatprep.subr.bf16.mxu0 %v259
    %559 = vmatpush1.bf16.msra.mxu0 %v258
    %560 = vmatprep.subr.bf16.mxu0 %v265
    %561 = vmatpush1.bf16.msra.mxu0 %v264
    %562 = vmatprep.subr.bf16.mxu0 %v271
    %563 = vmatpush1.bf16.msra.mxu0 %v270
    %564 = vmatprep.subr.bf16.mxu0 %v277
    %565 = vmatpush1.bf16.msra.mxu0 %v276
    %566 = vmatprep.subr.bf16.mxu0 %v283
    %567 = vmatpush1.bf16.msra.mxu0 %v282
    %568 = vmatprep.subr.bf16.mxu0 0
    %569 = vmatpush1.bf16.msra.mxu0 0
    %570 = vmatprep.subr.bf16.mxu0 0
    %571 = vmatpush1.bf16.msra.mxu0 0
    %572 = vmatprep.subr.bf16.mxu0 0
    %573 = vmatpush1.bf16.msra.mxu0 0
    %574 = vmatprep.subr.bf16.mxu0 0
    %575 = vmatpush1.bf16.msra.mxu0 0
    %576 = vmatprep.subr.bf16.mxu0 0
    %577 = vmatpush1.bf16.msra.mxu0 0
    %578 = vmatprep.subr.bf16.mxu0 0
    %579 = vmatpush1.bf16.msra.mxu0 0
    %580 = vmatprep.subr.bf16.mxu0 0
    %581 = vmatpush1.bf16.msra.mxu0 0
    %582 = vmatprep.subr.bf16.mxu0 0
    %583 = vmatpush1.bf16.msra.mxu0 0
    %584 = vmatprep.subr.bf16.mxu0 0
    %585 = vmatpush1.bf16.msra.mxu0 0
    %586 = vmatprep.subr.bf16.mxu0 0
    %587 = vmatpush1.bf16.msra.mxu0 0
    %588 = vmatprep.subr.bf16.mxu0 0
    %589 = vmatpush1.bf16.msra.mxu0 0
    %590 = vmatprep.mubr.bf16.mxu0 0
    %591 = vmatmul.mubr.bf16.gmra.mrb[0].mxu0 %v318
    %v592 = vpop.f32.mrb[0].mxu0
    %v593 = vadd.f32 %v147, %v592
    %v594 = vpop.f32.mrb[0].mxu0
    %v595 = vadd.f32 %v151, %v594
    %v596 = vpop.f32.mrb[0].mxu0
    %v597 = vadd.f32 %v147, %v596
    %v598 = vpop.f32.mrb[0].mxu0
    %v599 = vadd.f32 %v151, %v598
    %600 = vmatprep.mubr.bf16.mxu0 0
    %601 = vmatmul.mubr.bf16.gmra.mrb[0].mxu0 %v321
    %v602 = vpop.f32.mrb[0].mxu0
    %v603 = vadd.f32 %v147, %v602
    %v604 = vpop.f32.mrb[0].mxu0
    %v605 = vadd.f32 %v151, %v604
    %v606 = vpop.f32.mrb[0].mxu0
    %v607 = vadd.f32 %v147, %v606
    %v608 = vpop.f32.mrb[0].mxu0
    %v609 = vadd.f32 %v151, %v608
    %610 = vmatprep.mubr.bf16.mxu0 0
    %611 = vmatmul.mubr.bf16.gmra.mrb[0].mxu0 %v324
    %v612 = vpop.f32.mrb[0].mxu0
    %v613 = vadd.f32 %v147, %v612
    %v614 = vpop.f32.mrb[0].mxu0
    %v615 = vadd.f32 %v151, %v614
    %v616 = vpop.f32.mrb[0].mxu0
    %v617 = vadd.f32 %v147, %v616
    %v618 = vpop.f32.mrb[0].mxu0
    %v619 = vadd.f32 %v151, %v618
    %620 = vmatprep.mubr.bf16.mxu0 0
    %621 = vmatmul.mubr.bf16.gmra.mrb[0].mxu0 %v327
    %v622 = vpop.f32.mrb[0].mxu0
    %v623 = vadd.f32 %v147, %v622
    %v624 = vpop.f32.mrb[0].mxu0
    %v625 = vadd.f32 %v151, %v624
    %v626 = vpop.f32.mrb[0].mxu0
    %v627 = vadd.f32 %v147, %v626
    %v628 = vpop.f32.mrb[0].mxu0
    %v629 = vadd.f32 %v151, %v628
    %630 = vmatprep.mubr.bf16.mxu0 0
    %631 = vmatmul.mubr.bf16.gmra.mrb[0].mxu0 %v330
    %v632 = vpop.f32.mrb[0].mxu0
    %v633 = vadd.f32 %v147, %v632
    %v634 = vpop.f32.mrb[0].mxu0
    %v635 = vadd.f32 %v151, %v634
    %v636 = vpop.f32.mrb[0].mxu0
    %v637 = vadd.f32 %v147, %v636
    %v638 = vpop.f32.mrb[0].mxu0
    %v639 = vadd.f32 %v151, %v638
    %640 = vmatprep.mubr.bf16.mxu0 0
    %641 = vmatmul.mubr.bf16.gmra.mrb[0].mxu0 %v333
    %v642 = vpop.f32.mrb[0].mxu0
    %v643 = vadd.f32 %v147, %v642
    %v644 = vpop.f32.mrb[0].mxu0
    %v645 = vadd.f32 %v151, %v644
    %v646 = vpop.f32.mrb[0].mxu0
    %v647 = vadd.f32 %v147, %v646
    %v648 = vpop.f32.mrb[0].mxu0
    %v649 = vadd.f32 %v151, %v648
    %650 = vmatprep.mubr.bf16.mxu0 0
    %651 = vmatmul.mubr.bf16.gmra.mrb[0].mxu0 %v336
    %v652 = vpop.f32.mrb[0].mxu0
    %v653 = vadd.f32 %v147, %v652
    %v654 = vpop.f32.mrb[0].mxu0
    %v655 = vadd.f32 %v151, %v654
    %v656 = vpop.f32.mrb[0].mxu0
    %v657 = vadd.f32 %v147, %v656
    %v658 = vpop.f32.mrb[0].mxu0
    %v659 = vadd.f32 %v151, %v658
    %660 = vmatprep.mubr.bf16.mxu0 0
    %661 = vmatmul.mubr.bf16.gmra.mrb[0].mxu0 %v339
    %v662 = vpop.f32.mrb[0].mxu0
    %v663 = vadd.f32 %v147, %v662
    %v664 = vpop.f32.mrb[0].mxu0
    %v665 = vadd.f32 %v151, %v664
    %v666 = vpop.f32.mrb[0].mxu0
    %v667 = vadd.f32 %v147, %v666
    %v668 = vpop.f32.mrb[0].mxu0
    %v669 = vadd.f32 %v151, %v668
    %670 = vmatprep.mubr.bf16.mxu0 0
    %671 = vmatmul.mubr.bf16.gmra.mrb[0].mxu0 %v342
    %v672 = vpop.f32.mrb[0].mxu0
    %v673 = vadd.f32 %v147, %v672
    %v674 = vpop.f32.mrb[0].mxu0
    %v675 = vadd.f32 %v151, %v674
    %v676 = vpop.f32.mrb[0].mxu0
    %v677 = vadd.f32 %v147, %v676
    %v678 = vpop.f32.mrb[0].mxu0
    %v679 = vadd.f32 %v151, %v678
    %680 = vmatprep.mubr.bf16.mxu0 0
    %681 = vmatmul.mubr.bf16.gmra.mrb[0].mxu0 %v345
    %v682 = vpop.f32.mrb[0].mxu0
    %v683 = vadd.f32 %v147, %v682
    %v684 = vpop.f32.mrb[0].mxu0
    %v685 = vadd.f32 %v151, %v684
    %v686 = vpop.f32.mrb[0].mxu0
    %v687 = vadd.f32 %v147, %v686
    %v688 = vpop.f32.mrb[0].mxu0
    %v689 = vadd.f32 %v151, %v688
    %690 = vmatprep.mubr.bf16.mxu0 0
    %691 = vmatmul.mubr.bf16.gmra.mrb[0].mxu0 %v348
    %v692 = vpop.f32.mrb[0].mxu0
    %v693 = vadd.f32 %v147, %v692
    %v694 = vpop.f32.mrb[0].mxu0
    %v695 = vadd.f32 %v151, %v694
    %v696 = vpop.f32.mrb[0].mxu0
    %v697 = vadd.f32 %v147, %v696
    %v698 = vpop.f32.mrb[0].mxu0
    %v699 = vadd.f32 %v151, %v698
    %700 = vmatprep.mubr.bf16.mxu0 0
    %701 = vmatmul.mubr.bf16.gmra.mrb[0].mxu0 %v351
    %v702 = vpop.f32.mrb[0].mxu0
    %v703 = vadd.f32 %v147, %v702
    %v704 = vpop.f32.mrb[0].mxu0
    %v705 = vadd.f32 %v151, %v704
    %v706 = vpop.f32.mrb[0].mxu0
    %v707 = vadd.f32 %v147, %v706
    %v708 = vpop.f32.mrb[0].mxu0
    %v709 = vadd.f32 %v151, %v708
    %710 = vmatprep.mubr.bf16.mxu0 0
    %711 = vmatmul.mubr.bf16.gmra.mrb[0].mxu0 %v354
    %v712 = vpop.f32.mrb[0].mxu0
    %v713 = vadd.f32 %v147, %v712
    %v714 = vpop.f32.mrb[0].mxu0
    %v715 = vadd.f32 %v151, %v714
    %v716 = vpop.f32.mrb[0].mxu0
    %v717 = vadd.f32 %v147, %v716
    %v718 = vpop.f32.mrb[0].mxu0
    %v719 = vadd.f32 %v151, %v718
    %720 = vmatprep.mubr.bf16.mxu0 0
    %721 = vmatmul.mubr.bf16.gmra.mrb[0].mxu0 %v357
    %v722 = vpop.f32.mrb[0].mxu0
    %v723 = vadd.f32 %v147, %v722
    %v724 = vpop.f32.mrb[0].mxu0
    %v725 = vadd.f32 %v151, %v724
    %v726 = vpop.f32.mrb[0].mxu0
    %v727 = vadd.f32 %v147, %v726
    %v728 = vpop.f32.mrb[0].mxu0
    %v729 = vadd.f32 %v151, %v728
    %730 = vmatprep.mubr.bf16.mxu0 0
    %731 = vmatmul.mubr.bf16.gmra.mrb[0].mxu0 %v360
    %v732 = vpop.f32.mrb[0].mxu0
    %v733 = vadd.f32 %v147, %v732
    %v734 = vpop.f32.mrb[0].mxu0
    %v735 = vadd.f32 %v151, %v734
    %v736 = vpop.f32.mrb[0].mxu0
    %v737 = vadd.f32 %v147, %v736
    %v738 = vpop.f32.mrb[0].mxu0
    %v739 = vadd.f32 %v151, %v738
    %740 = vmatprep.mubr.bf16.mxu0 0
    %741 = vmatmul.mubr.bf16.gmra.mrb[0].mxu0 %v363
    %v742 = vpop.f32.mrb[0].mxu0
    %v743 = vadd.f32 %v147, %v742
    %v744 = vpop.f32.mrb[0].mxu0
    %v745 = vadd.f32 %v151, %v744
    %v746 = vpop.f32.mrb[0].mxu0
    %v747 = vadd.f32 %v147, %v746
    %v748 = vpop.f32.mrb[0].mxu0
    %v749 = vadd.f32 %v151, %v748
    %750 = vdwg.mxu0
    %751 = vmatprep.subr.bf16.mxu0 %v261
    %752 = vmatpush1.bf16.msra.mxu0 %v260
    %753 = vmatprep.subr.bf16.mxu0 %v267
    %754 = vmatpush1.bf16.msra.mxu0 %v266
    %755 = vmatprep.subr.bf16.mxu0 %v273
    %756 = vmatpush1.bf16.msra.mxu0 %v272
    %757 = vmatprep.subr.bf16.mxu0 %v279
    %758 = vmatpush1.bf16.msra.mxu0 %v278
    %759 = vmatprep.subr.bf16.mxu0 %v285
    %760 = vmatpush1.bf16.msra.mxu0 %v284
    %761 = vmatprep.subr.bf16.mxu0 0
    %762 = vmatpush1.bf16.msra.mxu0 0
    %763 = vmatprep.subr.bf16.mxu0 0
    %764 = vmatpush1.bf16.msra.mxu0 0
    %765 = vmatprep.subr.bf16.mxu0 0
    %766 = vmatpush1.bf16.msra.mxu0 0
    %767 = vmatprep.subr.bf16.mxu0 0
    %768 = vmatpush1.bf16.msra.mxu0 0
    %769 = vmatprep.subr.bf16.mxu0 0
    %770 = vmatpush1.bf16.msra.mxu0 0
    %771 = vmatprep.subr.bf16.mxu0 0
    %772 = vmatpush1.bf16.msra.mxu0 0
    %773 = vmatprep.subr.bf16.mxu0 0
    %774 = vmatpush1.bf16.msra.mxu0 0
    %775 = vmatprep.subr.bf16.mxu0 0
    %776 = vmatpush1.bf16.msra.mxu0 0
    %777 = vmatprep.subr.bf16.mxu0 0
    %778 = vmatpush1.bf16.msra.mxu0 0
    %779 = vmatprep.subr.bf16.mxu0 0
    %780 = vmatpush1.bf16.msra.mxu0 0
    %781 = vmatprep.subr.bf16.mxu0 0
    %782 = vmatpush1.bf16.msra.mxu0 0
    %783 = vmatprep.mubr.bf16.mxu0 0
    %784 = vmatmul.mubr.bf16.gmra.mrb[0].mxu0 %v318
    %v785 = vpop.f32.mrb[0].mxu0
    %v786 = vadd.f32 %v155, %v785
    %v787 = vpop.f32.mrb[0].mxu0
    %v788 = vadd.f32 %v159, %v787
    %v789 = vpop.f32.mrb[0].mxu0
    %v790 = vadd.f32 %v155, %v789
    %v791 = vpop.f32.mrb[0].mxu0
    %v792 = vadd.f32 %v159, %v791
    %793 = vmatprep.mubr.bf16.mxu0 0
    %794 = vmatmul.mubr.bf16.gmra.mrb[0].mxu0 %v321
    %v795 = vpop.f32.mrb[0].mxu0
    %v796 = vadd.f32 %v155, %v795
    %v797 = vpop.f32.mrb[0].mxu0
    %v798 = vadd.f32 %v159, %v797
    %v799 = vpop.f32.mrb[0].mxu0
    %v800 = vadd.f32 %v155, %v799
    %v801 = vpop.f32.mrb[0].mxu0
    %v802 = vadd.f32 %v159, %v801
    %803 = vmatprep.mubr.bf16.mxu0 0
    %804 = vmatmul.mubr.bf16.gmra.mrb[0].mxu0 %v324
    %v805 = vpop.f32.mrb[0].mxu0
    %v806 = vadd.f32 %v155, %v805
    %v807 = vpop.f32.mrb[0].mxu0
    %v808 = vadd.f32 %v159, %v807
    %v809 = vpop.f32.mrb[0].mxu0
    %v810 = vadd.f32 %v155, %v809
    %v811 = vpop.f32.mrb[0].mxu0
    %v812 = vadd.f32 %v159, %v811
    %813 = vmatprep.mubr.bf16.mxu0 0
    %814 = vmatmul.mubr.bf16.gmra.mrb[0].mxu0 %v327
    %v815 = vpop.f32.mrb[0].mxu0
    %v816 = vadd.f32 %v155, %v815
    %v817 = vpop.f32.mrb[0].mxu0
    %v818 = vadd.f32 %v159, %v817
    %v819 = vpop.f32.mrb[0].mxu0
    %v820 = vadd.f32 %v155, %v819
    %v821 = vpop.f32.mrb[0].mxu0
    %v822 = vadd.f32 %v159, %v821
    %823 = vmatprep.mubr.bf16.mxu0 0
    %824 = vmatmul.mubr.bf16.gmra.mrb[0].mxu0 %v330
    %v825 = vpop.f32.mrb[0].mxu0
    %v826 = vadd.f32 %v155, %v825
    %v827 = vpop.f32.mrb[0].mxu0
    %v828 = vadd.f32 %v159, %v827
    %v829 = vpop.f32.mrb[0].mxu0
    %v830 = vadd.f32 %v155, %v829
    %v831 = vpop.f32.mrb[0].mxu0
    %v832 = vadd.f32 %v159, %v831
    %833 = vmatprep.mubr.bf16.mxu0 0
    %834 = vmatmul.mubr.bf16.gmra.mrb[0].mxu0 %v333
    %v835 = vpop.f32.mrb[0].mxu0
    %v836 = vadd.f32 %v155, %v835
    %v837 = vpop.f32.mrb[0].mxu0
    %v838 = vadd.f32 %v159, %v837
    %v839 = vpop.f32.mrb[0].mxu0
    %v840 = vadd.f32 %v155, %v839
    %v841 = vpop.f32.mrb[0].mxu0
    %v842 = vadd.f32 %v159, %v841
    %843 = vmatprep.mubr.bf16.mxu0 0
    %844 = vmatmul.mubr.bf16.gmra.mrb[0].mxu0 %v336
    %v845 = vpop.f32.mrb[0].mxu0
    %v846 = vadd.f32 %v155, %v845
    %v847 = vpop.f32.mrb[0].mxu0
    %v848 = vadd.f32 %v159, %v847
    %v849 = vpop.f32.mrb[0].mxu0
    %v850 = vadd.f32 %v155, %v849
    %v851 = vpop.f32.mrb[0].mxu0
    %v852 = vadd.f32 %v159, %v851
    %853 = vmatprep.mubr.bf16.mxu0 0
    %854 = vmatmul.mubr.bf16.gmra.mrb[0].mxu0 %v339
    %v855 = vpop.f32.mrb[0].mxu0
    %v856 = vadd.f32 %v155, %v855
    %v857 = vpop.f32.mrb[0].mxu0
    %v858 = vadd.f32 %v159, %v857
    %v859 = vpop.f32.mrb[0].mxu0
    %v860 = vadd.f32 %v155, %v859
    %v861 = vpop.f32.mrb[0].mxu0
    %v862 = vadd.f32 %v159, %v861
    %863 = vmatprep.mubr.bf16.mxu0 0
    %864 = vmatmul.mubr.bf16.gmra.mrb[0].mxu0 %v342
    %v865 = vpop.f32.mrb[0].mxu0
    %v866 = vadd.f32 %v155, %v865
    %v867 = vpop.f32.mrb[0].mxu0
    %v868 = vadd.f32 %v159, %v867
    %v869 = vpop.f32.mrb[0].mxu0
    %v870 = vadd.f32 %v155, %v869
    %v871 = vpop.f32.mrb[0].mxu0
    %v872 = vadd.f32 %v159, %v871
    %873 = vmatprep.mubr.bf16.mxu0 0
    %874 = vmatmul.mubr.bf16.gmra.mrb[0].mxu0 %v345
    %v875 = vpop.f32.mrb[0].mxu0
    %v876 = vadd.f32 %v155, %v875
    %v877 = vpop.f32.mrb[0].mxu0
    %v878 = vadd.f32 %v159, %v877
    %v879 = vpop.f32.mrb[0].mxu0
    %v880 = vadd.f32 %v155, %v879
    %v881 = vpop.f32.mrb[0].mxu0
    %v882 = vadd.f32 %v159, %v881
    %883 = vmatprep.mubr.bf16.mxu0 0
    %884 = vmatmul.mubr.bf16.gmra.mrb[0].mxu0 %v348
    %v885 = vpop.f32.mrb[0].mxu0
    %v886 = vadd.f32 %v155, %v885
    %v887 = vpop.f32.mrb[0].mxu0
    %v888 = vadd.f32 %v159, %v887
    %v889 = vpop.f32.mrb[0].mxu0
    %v890 = vadd.f32 %v155, %v889
    %v891 = vpop.f32.mrb[0].mxu0
    %v892 = vadd.f32 %v159, %v891
    %893 = vmatprep.mubr.bf16.mxu0 0
    %894 = vmatmul.mubr.bf16.gmra.mrb[0].mxu0 %v351
    %v895 = vpop.f32.mrb[0].mxu0
    %v896 = vadd.f32 %v155, %v895
    %v897 = vpop.f32.mrb[0].mxu0
    %v898 = vadd.f32 %v159, %v897
    %v899 = vpop.f32.mrb[0].mxu0
    %v900 = vadd.f32 %v155, %v899
    %v901 = vpop.f32.mrb[0].mxu0
    %v902 = vadd.f32 %v159, %v901
    %903 = vmatprep.mubr.bf16.mxu0 0
    %904 = vmatmul.mubr.bf16.gmra.mrb[0].mxu0 %v354
    %v905 = vpop.f32.mrb[0].mxu0
    %v906 = vadd.f32 %v155, %v905
    %v907 = vpop.f32.mrb[0].mxu0
    %v908 = vadd.f32 %v159, %v907
    %v909 = vpop.f32.mrb[0].mxu0
    %v910 = vadd.f32 %v155, %v909
    %v911 = vpop.f32.mrb[0].mxu0
    %v912 = vadd.f32 %v159, %v911
    %913 = vmatprep.mubr.bf16.mxu0 0
    %914 = vmatmul.mubr.bf16.gmra.mrb[0].mxu0 %v357
    %v915 = vpop.f32.mrb[0].mxu0
    %v916 = vadd.f32 %v155, %v915
    %v917 = vpop.f32.mrb[0].mxu0
    %v918 = vadd.f32 %v159, %v917
    %v919 = vpop.f32.mrb[0].mxu0
    %v920 = vadd.f32 %v155, %v919
    %v921 = vpop.f32.mrb[0].mxu0
    %v922 = vadd.f32 %v159, %v921
    %923 = vmatprep.mubr.bf16.mxu0 0
    %924 = vmatmul.mubr.bf16.gmra.mrb[0].mxu0 %v360
    %v925 = vpop.f32.mrb[0].mxu0
    %v926 = vadd.f32 %v155, %v925
    %v927 = vpop.f32.mrb[0].mxu0
    %v928 = vadd.f32 %v159, %v927
    %v929 = vpop.f32.mrb[0].mxu0
    %v930 = vadd.f32 %v155, %v929
    %v931 = vpop.f32.mrb[0].mxu0
    %v932 = vadd.f32 %v159, %v931
    %933 = vmatprep.mubr.bf16.mxu0 0
    %934 = vmatmul.mubr.bf16.gmra.mrb[0].mxu0 %v363
    %v935 = vpop.f32.mrb[0].mxu0
    %v936 = vadd.f32 %v155, %v935
    %v937 = vpop.f32.mrb[0].mxu0
    %v938 = vadd.f32 %v159, %v937
    %v939 = vpop.f32.mrb[0].mxu0
    %v940 = vadd.f32 %v155, %v939
    %v941 = vpop.f32.mrb[0].mxu0
    %v942 = vadd.f32 %v159, %v941
    %943 = vdwg.mxu0
    %v944 = vmul.f32 %v400, 0.5
    %v945 = vmul.f32 %v402, 0.5
    %v946 = vmul.f32 %v593, 0.5
    %v947 = vmul.f32 %v595, 0.5
    %v948 = vmul.f32 %v786, 0.5
    %v949 = vmul.f32 %v788, 0.5
    %v950 = vmul.f32 %v404, 0.5
    %v951 = vmul.f32 %v406, 0.5
    %v952 = vmul.f32 %v597, 0.5
    %v953 = vmul.f32 %v599, 0.5
    %v954 = vmul.f32 %v790, 0.5
    %v955 = vmul.f32 %v792, 0.5
    %v956 = vmul.f32 %v410, 0.5
    %v957 = vmul.f32 %v412, 0.5
    %v958 = vmul.f32 %v603, 0.5
    %v959 = vmul.f32 %v605, 0.5
    %v960 = vmul.f32 %v796, 0.5
    %v961 = vmul.f32 %v798, 0.5
    %v962 = vmul.f32 %v414, 0.5
    %v963 = vmul.f32 %v416, 0.5
    %v964 = vmul.f32 %v607, 0.5
    %v965 = vmul.f32 %v609, 0.5
    %v966 = vmul.f32 %v800, 0.5
    %v967 = vmul.f32 %v802, 0.5
    %v968 = vmul.f32 %v420, 0.5
    %v969 = vmul.f32 %v422, 0.5
    %v970 = vmul.f32 %v613, 0.5
    %v971 = vmul.f32 %v615, 0.5
    %v972 = vmul.f32 %v806, 0.5
    %v973 = vmul.f32 %v808, 0.5
    %v974 = vmul.f32 %v424, 0.5
    %v975 = vmul.f32 %v426, 0.5
    %v976 = vmul.f32 %v617, 0.5
    %v977 = vmul.f32 %v619, 0.5
    %v978 = vmul.f32 %v810, 0.5
    %v979 = vmul.f32 %v812, 0.5
    %v980 = vmul.f32 %v430, 0.5
    %v981 = vmul.f32 %v432, 0.5
    %v982 = vmul.f32 %v623, 0.5
    %v983 = vmul.f32 %v625, 0.5
    %v984 = vmul.f32 %v816, 0.5
    %v985 = vmul.f32 %v818, 0.5
    %v986 = vmul.f32 %v434, 0.5
    %v987 = vmul.f32 %v436, 0.5
    %v988 = vmul.f32 %v627, 0.5
    %v989 = vmul.f32 %v629, 0.5
    %v990 = vmul.f32 %v820, 0.5
    %v991 = vmul.f32 %v822, 0.5
    %v992 = vmul.f32 %v440, 0.5
    %v993 = vmul.f32 %v442, 0.5
    %v994 = vmul.f32 %v633, 0.5
    %v995 = vmul.f32 %v635, 0.5
    %v996 = vmul.f32 %v826, 0.5
    %v997 = vmul.f32 %v828, 0.5
    %v998 = vmul.f32 %v444, 0.5
    %v999 = vmul.f32 %v446, 0.5
    %v1000 = vmul.f32 %v637, 0.5
    %v1001 = vmul.f32 %v639, 0.5
    %v1002 = vmul.f32 %v830, 0.5
    %v1003 = vmul.f32 %v832, 0.5
    %v1004 = vmul.f32 %v450, 0.5
    %v1005 = vmul.f32 %v452, 0.5
    %v1006 = vmul.f32 %v643, 0.5
    %v1007 = vmul.f32 %v645, 0.5
    %v1008 = vmul.f32 %v836, 0.5
    %v1009 = vmul.f32 %v838, 0.5
    %v1010 = vmul.f32 %v454, 0.5
    %v1011 = vmul.f32 %v456, 0.5
    %v1012 = vmul.f32 %v647, 0.5
    %v1013 = vmul.f32 %v649, 0.5
    %v1014 = vmul.f32 %v840, 0.5
    %v1015 = vmul.f32 %v842, 0.5
    %v1016 = vmul.f32 %v460, 0.5
    %v1017 = vmul.f32 %v462, 0.5
    %v1018 = vmul.f32 %v653, 0.5
    %v1019 = vmul.f32 %v655, 0.5
    %v1020 = vmul.f32 %v846, 0.5
    %v1021 = vmul.f32 %v848, 0.5
    %v1022 = vmul.f32 %v464, 0.5
    %v1023 = vmul.f32 %v466, 0.5
    %v1024 = vmul.f32 %v657, 0.5
    %v1025 = vmul.f32 %v659, 0.5
    %v1026 = vmul.f32 %v850, 0.5
    %v1027 = vmul.f32 %v852, 0.5
    %v1028 = vmul.f32 %v470, 0.5
    %v1029 = vmul.f32 %v472, 0.5
    %v1030 = vmul.f32 %v663, 0.5
    %v1031 = vmul.f32 %v665, 0.5
    %v1032 = vmul.f32 %v856, 0.5
    %v1033 = vmul.f32 %v858, 0.5
    %v1034 = vmul.f32 %v474, 0.5
    %v1035 = vmul.f32 %v476, 0.5
    %v1036 = vmul.f32 %v667, 0.5
    %v1037 = vmul.f32 %v669, 0.5
    %v1038 = vmul.f32 %v860, 0.5
    %v1039 = vmul.f32 %v862, 0.5
    %v1040 = vmul.f32 %v480, 0.5
    %v1041 = vmul.f32 %v482, 0.5
    %v1042 = vmul.f32 %v673, 0.5
    %v1043 = vmul.f32 %v675, 0.5
    %v1044 = vmul.f32 %v866, 0.5
    %v1045 = vmul.f32 %v868, 0.5
    %v1046 = vmul.f32 %v484, 0.5
    %v1047 = vmul.f32 %v486, 0.5
    %v1048 = vmul.f32 %v677, 0.5
    %v1049 = vmul.f32 %v679, 0.5
    %v1050 = vmul.f32 %v870, 0.5
    %v1051 = vmul.f32 %v872, 0.5
    %v1052 = vmul.f32 %v490, 0.5
    %v1053 = vmul.f32 %v492, 0.5
    %v1054 = vmul.f32 %v683, 0.5
    %v1055 = vmul.f32 %v685, 0.5
    %v1056 = vmul.f32 %v876, 0.5
    %v1057 = vmul.f32 %v878, 0.5
    %v1058 = vmul.f32 %v494, 0.5
    %v1059 = vmul.f32 %v496, 0.5
    %v1060 = vmul.f32 %v687, 0.5
    %v1061 = vmul.f32 %v689, 0.5
    %v1062 = vmul.f32 %v880, 0.5
    %v1063 = vmul.f32 %v882, 0.5
    %v1064 = vmul.f32 %v500, 0.5
    %v1065 = vmul.f32 %v502, 0.5
    %v1066 = vmul.f32 %v693, 0.5
    %v1067 = vmul.f32 %v695, 0.5
    %v1068 = vmul.f32 %v886, 0.5
    %v1069 = vmul.f32 %v888, 0.5
    %v1070 = vmul.f32 %v504, 0.5
    %v1071 = vmul.f32 %v506, 0.5
    %v1072 = vmul.f32 %v697, 0.5
    %v1073 = vmul.f32 %v699, 0.5
    %v1074 = vmul.f32 %v890, 0.5
    %v1075 = vmul.f32 %v892, 0.5
    %v1076 = vmul.f32 %v510, 0.5
    %v1077 = vmul.f32 %v512, 0.5
    %v1078 = vmul.f32 %v703, 0.5
    %v1079 = vmul.f32 %v705, 0.5
    %v1080 = vmul.f32 %v896, 0.5
    %v1081 = vmul.f32 %v898, 0.5
    %v1082 = vmul.f32 %v514, 0.5
    %v1083 = vmul.f32 %v516, 0.5
    %v1084 = vmul.f32 %v707, 0.5
    %v1085 = vmul.f32 %v709, 0.5
    %v1086 = vmul.f32 %v900, 0.5
    %v1087 = vmul.f32 %v902, 0.5
    %v1088 = vmul.f32 %v520, 0.5
    %v1089 = vmul.f32 %v522, 0.5
    %v1090 = vmul.f32 %v713, 0.5
    %v1091 = vmul.f32 %v715, 0.5
    %v1092 = vmul.f32 %v906, 0.5
    %v1093 = vmul.f32 %v908, 0.5
    %v1094 = vmul.f32 %v524, 0.5
    %v1095 = vmul.f32 %v526, 0.5
    %v1096 = vmul.f32 %v717, 0.5
    %v1097 = vmul.f32 %v719, 0.5
    %v1098 = vmul.f32 %v910, 0.5
    %v1099 = vmul.f32 %v912, 0.5
    %v1100 = vmul.f32 %v530, 0.5
    %v1101 = vmul.f32 %v532, 0.5
    %v1102 = vmul.f32 %v723, 0.5
    %v1103 = vmul.f32 %v725, 0.5
    %v1104 = vmul.f32 %v916, 0.5
    %v1105 = vmul.f32 %v918, 0.5
    %v1106 = vmul.f32 %v534, 0.5
    %v1107 = vmul.f32 %v536, 0.5
    %v1108 = vmul.f32 %v727, 0.5
    %v1109 = vmul.f32 %v729, 0.5
    %v1110 = vmul.f32 %v920, 0.5
    %v1111 = vmul.f32 %v922, 0.5
    %v1112 = vmul.f32 %v540, 0.5
    %v1113 = vmul.f32 %v542, 0.5
    %v1114 = vmul.f32 %v733, 0.5
    %v1115 = vmul.f32 %v735, 0.5
    %v1116 = vmul.f32 %v926, 0.5
    %v1117 = vmul.f32 %v928, 0.5
    %v1118 = vmul.f32 %v544, 0.5
    %v1119 = vmul.f32 %v546, 0.5
    %v1120 = vmul.f32 %v737, 0.5
    %v1121 = vmul.f32 %v739, 0.5
    %v1122 = vmul.f32 %v930, 0.5
    %v1123 = vmul.f32 %v932, 0.5
    %v1124 = vmul.f32 %v550, 0.5
    %v1125 = vmul.f32 %v552, 0.5
    %v1126 = vmul.f32 %v743, 0.5
    %v1127 = vmul.f32 %v745, 0.5
    %v1128 = vmul.f32 %v936, 0.5
    %v1129 = vmul.f32 %v938, 0.5
    %v1130 = vmul.f32 %v554, 0.5
    %v1131 = vmul.f32 %v556, 0.5
    %v1132 = vmul.f32 %v747, 0.5
    %v1133 = vmul.f32 %v749, 0.5
    %v1134 = vmul.f32 %v940, 0.5
    %v1135 = vmul.f32 %v942, 0.5
    %v1136 = vtanh.pop %v944
    %v1137 = vtanh.pop %v945
    %v1138 = vtanh.pop %v946
    %v1139 = vtanh.pop %v947
    %v1140 = vtanh.pop %v948
    %v1141 = vtanh.pop %v949
    %v1142 = vtanh.pop %v950
    %v1143 = vtanh.pop %v951
    %v1144 = vtanh.pop %v952
    %v1145 = vtanh.pop %v953
    %v1146 = vtanh.pop %v954
    %v1147 = vtanh.pop %v955
    %v1148 = vtanh.pop %v956
    %v1149 = vtanh.pop %v957
    %v1150 = vtanh.pop %v958
    %v1151 = vtanh.pop %v959
    %v1152 = vtanh.pop %v960
    %v1153 = vtanh.pop %v961
    %v1154 = vtanh.pop %v962
    %v1155 = vtanh.pop %v963
    %v1156 = vtanh.pop %v964
    %v1157 = vtanh.pop %v965
    %v1158 = vtanh.pop %v966
    %v1159 = vtanh.pop %v967
    %v1160 = vtanh.pop %v968
    %v1161 = vtanh.pop %v969
    %v1162 = vtanh.pop %v970
    %v1163 = vtanh.pop %v971
    %v1164 = vtanh.pop %v972
    %v1165 = vtanh.pop %v973
    %v1166 = vtanh.pop %v974
    %v1167 = vtanh.pop %v975
    %v1168 = vtanh.pop %v976
    %v1169 = vtanh.pop %v977
    %v1170 = vtanh.pop %v978
    %v1171 = vtanh.pop %v979
    %v1172 = vtanh.pop %v980
    %v1173 = vtanh.pop %v981
    %v1174 = vtanh.pop %v982
    %v1175 = vtanh.pop %v983
    %v1176 = vtanh.pop %v984
    %v1177 = vtanh.pop %v985
    %v1178 = vtanh.pop %v986
    %v1179 = vtanh.pop %v987
    %v1180 = vtanh.pop %v988
    %v1181 = vtanh.pop %v989
    %v1182 = vtanh.pop %v990
    %v1183 = vtanh.pop %v991
    %v1184 = vtanh.pop %v992
    %v1185 = vtanh.pop %v993
    %v1186 = vtanh.pop %v994
    %v1187 = vtanh.pop %v995
    %v1188 = vtanh.pop %v996
    %v1189 = vtanh.pop %v997
    %v1190 = vtanh.pop %v998
    %v1191 = vtanh.pop %v999
    %v1192 = vtanh.pop %v1000
    %v1193 = vtanh.pop %v1001
    %v1194 = vtanh.pop %v1002
    %v1195 = vtanh.pop %v1003
    %v1196 = vtanh.pop %v1004
    %v1197 = vtanh.pop %v1005
    %v1198 = vtanh.pop %v1006
    %v1199 = vtanh.pop %v1007
    %v1200 = vtanh.pop %v1008
    %v1201 = vtanh.pop %v1009
    %v1202 = vtanh.pop %v1010
    %v1203 = vtanh.pop %v1011
    %v1204 = vtanh.pop %v1012
    %v1205 = vtanh.pop %v1013
    %v1206 = vtanh.pop %v1014
    %v1207 = vtanh.pop %v1015
    %v1208 = vtanh.pop %v1016
    %v1209 = vtanh.pop %v1017
    %v1210 = vtanh.pop %v1018
    %v1211 = vtanh.pop %v1019
    %v1212 = vtanh.pop %v1020
    %v1213 = vtanh.pop %v1021
    %v1214 = vtanh.pop %v1022
    %v1215 = vtanh.pop %v1023
    %v1216 = vtanh.pop %v1024
    %v1217 = vtanh.pop %v1025
    %v1218 = vtanh.pop %v1026
    %v1219 = vtanh.pop %v1027
    %v1220 = vtanh.pop %v1028
    %v1221 = vtanh.pop %v1029
    %v1222 = vtanh.pop %v1030
    %v1223 = vtanh.pop %v1031
    %v1224 = vtanh.pop %v1032
    %v1225 = vtanh.pop %v1033
    %v1226 = vtanh.pop %v1034
    %v1227 = vtanh.pop %v1035
    %v1228 = vtanh.pop %v1036
    %v1229 = vtanh.pop %v1037
    %v1230 = vtanh.pop %v1038
    %v1231 = vtanh.pop %v1039
    %v1232 = vtanh.pop %v1040
    %v1233 = vtanh.pop %v1041
    %v1234 = vtanh.pop %v1042
    %v1235 = vtanh.pop %v1043
    %v1236 = vtanh.pop %v1044
    %v1237 = vtanh.pop %v1045
    %v1238 = vtanh.pop %v1046
    %v1239 = vtanh.pop %v1047
    %v1240 = vtanh.pop %v1048
    %v1241 = vtanh.pop %v1049
    %v1242 = vtanh.pop %v1050
    %v1243 = vtanh.pop %v1051
    %v1244 = vtanh.pop %v1052
    %v1245 = vtanh.pop %v1053
    %v1246 = vtanh.pop %v1054
    %v1247 = vtanh.pop %v1055
    %v1248 = vtanh.pop %v1056
    %v1249 = vtanh.pop %v1057
    %v1250 = vtanh.pop %v1058
    %v1251 = vtanh.pop %v1059
    %v1252 = vtanh.pop %v1060
    %v1253 = vtanh.pop %v1061
    %v1254 = vtanh.pop %v1062
    %v1255 = vtanh.pop %v1063
    %v1256 = vtanh.pop %v1064
    %v1257 = vtanh.pop %v1065
    %v1258 = vtanh.pop %v1066
    %v1259 = vtanh.pop %v1067
    %v1260 = vtanh.pop %v1068
    %v1261 = vtanh.pop %v1069
    %v1262 = vtanh.pop %v1070
    %v1263 = vtanh.pop %v1071
    %v1264 = vtanh.pop %v1072
    %v1265 = vtanh.pop %v1073
    %v1266 = vtanh.pop %v1074
    %v1267 = vtanh.pop %v1075
    %v1268 = vtanh.pop %v1076
    %v1269 = vtanh.pop %v1077
    %v1270 = vtanh.pop %v1078
    %v1271 = vtanh.pop %v1079
    %v1272 = vtanh.pop %v1080
    %v1273 = vtanh.pop %v1081
    %v1274 = vtanh.pop %v1082
    %v1275 = vtanh.pop %v1083
    %v1276 = vtanh.pop %v1084
    %v1277 = vtanh.pop %v1085
    %v1278 = vtanh.pop %v1086
    %v1279 = vtanh.pop %v1087
    %v1280 = vtanh.pop %v1088
    %v1281 = vtanh.pop %v1089
    %v1282 = vtanh.pop %v1090
    %v1283 = vtanh.pop %v1091
    %v1284 = vtanh.pop %v1092
    %v1285 = vtanh.pop %v1093
    %v1286 = vtanh.pop %v1094
    %v1287 = vtanh.pop %v1095
    %v1288 = vtanh.pop %v1096
    %v1289 = vtanh.pop %v1097
    %v1290 = vtanh.pop %v1098
    %v1291 = vtanh.pop %v1099
    %v1292 = vtanh.pop %v1100
    %v1293 = vtanh.pop %v1101
    %v1294 = vtanh.pop %v1102
    %v1295 = vtanh.pop %v1103
    %v1296 = vtanh.pop %v1104
    %v1297 = vtanh.pop %v1105
    %v1298 = vtanh.pop %v1106
    %v1299 = vtanh.pop %v1107
    %v1300 = vtanh.pop %v1108
    %v1301 = vtanh.pop %v1109
    %v1302 = vtanh.pop %v1110
    %v1303 = vtanh.pop %v1111
    %v1304 = vtanh.pop %v1112
    %v1305 = vtanh.pop %v1113
    %v1306 = vtanh.pop %v1114
    %v1307 = vtanh.pop %v1115
    %v1308 = vtanh.pop %v1116
    %v1309 = vtanh.pop %v1117
    %v1310 = vtanh.pop %v1118
    %v1311 = vtanh.pop %v1119
    %v1312 = vtanh.pop %v1120
    %v1313 = vtanh.pop %v1121
    %v1314 = vtanh.pop %v1122
    %v1315 = vtanh.pop %v1123
    %v1316 = vtanh.pop %v1124
    %v1317 = vtanh.pop %v1125
    %v1318 = vtanh.pop %v1126
    %v1319 = vtanh.pop %v1127
    %v1320 = vtanh.pop %v1128
    %v1321 = vtanh.pop %v1129
    %v1322 = vtanh.pop %v1130
    %v1323 = vtanh.pop %v1131
    %v1324 = vtanh.pop %v1132
    %v1325 = vtanh.pop %v1133
    %v1326 = vtanh.pop %v1134
    %v1327 = vtanh.pop %v1135
    %v1328 = vmul.f32 %v1136, 0.5
    %v1329 = vmul.f32 %v1137, 0.5
    %v1330 = vmul.f32 %v1138, 0.5
    %v1331 = vmul.f32 %v1139, 0.5
    %v1332 = vmul.f32 %v1140, 0.5
    %v1333 = vmul.f32 %v1141, 0.5
    %v1334 = vmul.f32 %v1142, 0.5
    %v1335 = vmul.f32 %v1143, 0.5
    %v1336 = vmul.f32 %v1144, 0.5
    %v1337 = vmul.f32 %v1145, 0.5
    %v1338 = vmul.f32 %v1146, 0.5
    %v1339 = vmul.f32 %v1147, 0.5
    %v1340 = vmul.f32 %v1148, 0.5
    %v1341 = vmul.f32 %v1149, 0.5
    %v1342 = vmul.f32 %v1150, 0.5
    %v1343 = vmul.f32 %v1151, 0.5
    %v1344 = vmul.f32 %v1152, 0.5
    %v1345 = vmul.f32 %v1153, 0.5
    %v1346 = vmul.f32 %v1154, 0.5
    %v1347 = vmul.f32 %v1155, 0.5
    %v1348 = vmul.f32 %v1156, 0.5
    %v1349 = vmul.f32 %v1157, 0.5
    %v1350 = vmul.f32 %v1158, 0.5
    %v1351 = vmul.f32 %v1159, 0.5
    %v1352 = vmul.f32 %v1160, 0.5
    %v1353 = vmul.f32 %v1161, 0.5
    %v1354 = vmul.f32 %v1162, 0.5
    %v1355 = vmul.f32 %v1163, 0.5
    %v1356 = vmul.f32 %v1164, 0.5
    %v1357 = vmul.f32 %v1165, 0.5
    %v1358 = vmul.f32 %v1166, 0.5
    %v1359 = vmul.f32 %v1167, 0.5
    %v1360 = vmul.f32 %v1168, 0.5
    %v1361 = vmul.f32 %v1169, 0.5
    %v1362 = vmul.f32 %v1170, 0.5
    %v1363 = vmul.f32 %v1171, 0.5
    %v1364 = vmul.f32 %v1172, 0.5
    %v1365 = vmul.f32 %v1173, 0.5
    %v1366 = vmul.f32 %v1174, 0.5
    %v1367 = vmul.f32 %v1175, 0.5
    %v1368 = vmul.f32 %v1176, 0.5
    %v1369 = vmul.f32 %v1177, 0.5
    %v1370 = vmul.f32 %v1178, 0.5
    %v1371 = vmul.f32 %v1179, 0.5
    %v1372 = vmul.f32 %v1180, 0.5
    %v1373 = vmul.f32 %v1181, 0.5
    %v1374 = vmul.f32 %v1182, 0.5
    %v1375 = vmul.f32 %v1183, 0.5
    %v1376 = vmul.f32 %v1184, 0.5
    %v1377 = vmul.f32 %v1185, 0.5
    %v1378 = vmul.f32 %v1186, 0.5
    %v1379 = vmul.f32 %v1187, 0.5
    %v1380 = vmul.f32 %v1188, 0.5
    %v1381 = vmul.f32 %v1189, 0.5
    %v1382 = vmul.f32 %v1190, 0.5
    %v1383 = vmul.f32 %v1191, 0.5
    %v1384 = vmul.f32 %v1192, 0.5
    %v1385 = vmul.f32 %v1193, 0.5
    %v1386 = vmul.f32 %v1194, 0.5
    %v1387 = vmul.f32 %v1195, 0.5
    %v1388 = vmul.f32 %v1196, 0.5
    %v1389 = vmul.f32 %v1197, 0.5
    %v1390 = vmul.f32 %v1198, 0.5
    %v1391 = vmul.f32 %v1199, 0.5
    %v1392 = vmul.f32 %v1200, 0.5
    %v1393 = vmul.f32 %v1201, 0.5
    %v1394 = vmul.f32 %v1202, 0.5
    %v1395 = vmul.f32 %v1203, 0.5
    %v1396 = vmul.f32 %v1204, 0.5
    %v1397 = vmul.f32 %v1205, 0.5
    %v1398 = vmul.f32 %v1206, 0.5
    %v1399 = vmul.f32 %v1207, 0.5
    %v1400 = vmul.f32 %v1208, 0.5
    %v1401 = vmul.f32 %v1209, 0.5
    %v1402 = vmul.f32 %v1210, 0.5
    %v1403 = vmul.f32 %v1211, 0.5
    %v1404 = vmul.f32 %v1212, 0.5
    %v1405 = vmul.f32 %v1213, 0.5
    %v1406 = vmul.f32 %v1214, 0.5
    %v1407 = vmul.f32 %v1215, 0.5
    %v1408 = vmul.f32 %v1216, 0.5
    %v1409 = vmul.f32 %v1217, 0.5
    %v1410 = vmul.f32 %v1218, 0.5
    %v1411 = vmul.f32 %v1219, 0.5
    %v1412 = vmul.f32 %v1220, 0.5
    %v1413 = vmul.f32 %v1221, 0.5
    %v1414 = vmul.f32 %v1222, 0.5
    %v1415 = vmul.f32 %v1223, 0.5
    %v1416 = vmul.f32 %v1224, 0.5
    %v1417 = vmul.f32 %v1225, 0.5
    %v1418 = vmul.f32 %v1226, 0.5
    %v1419 = vmul.f32 %v1227, 0.5
    %v1420 = vmul.f32 %v1228, 0.5
    %v1421 = vmul.f32 %v1229, 0.5
    %v1422 = vmul.f32 %v1230, 0.5
    %v1423 = vmul.f32 %v1231, 0.5
    %v1424 = vmul.f32 %v1232, 0.5
    %v1425 = vmul.f32 %v1233, 0.5
    %v1426 = vmul.f32 %v1234, 0.5
    %v1427 = vmul.f32 %v1235, 0.5
    %v1428 = vmul.f32 %v1236, 0.5
    %v1429 = vmul.f32 %v1237, 0.5
    %v1430 = vmul.f32 %v1238, 0.5
    %v1431 = vmul.f32 %v1239, 0.5
    %v1432 = vmul.f32 %v1240, 0.5
    %v1433 = vmul.f32 %v1241, 0.5
    %v1434 = vmul.f32 %v1242, 0.5
    %v1435 = vmul.f32 %v1243, 0.5
    %v1436 = vmul.f32 %v1244, 0.5
    %v1437 = vmul.f32 %v1245, 0.5
    %v1438 = vmul.f32 %v1246, 0.5
    %v1439 = vmul.f32 %v1247, 0.5
    %v1440 = vmul.f32 %v1248, 0.5
    %v1441 = vmul.f32 %v1249, 0.5
    %v1442 = vmul.f32 %v1250, 0.5
    %v1443 = vmul.f32 %v1251, 0.5
    %v1444 = vmul.f32 %v1252, 0.5
    %v1445 = vmul.f32 %v1253, 0.5
    %v1446 = vmul.f32 %v1254, 0.5
    %v1447 = vmul.f32 %v1255, 0.5
    %v1448 = vmul.f32 %v1256, 0.5
    %v1449 = vmul.f32 %v1257, 0.5
    %v1450 = vmul.f32 %v1258, 0.5
    %v1451 = vmul.f32 %v1259, 0.5
    %v1452 = vmul.f32 %v1260, 0.5
    %v1453 = vmul.f32 %v1261, 0.5
    %v1454 = vmul.f32 %v1262, 0.5
    %v1455 = vmul.f32 %v1263, 0.5
    %v1456 = vmul.f32 %v1264, 0.5
    %v1457 = vmul.f32 %v1265, 0.5
    %v1458 = vmul.f32 %v1266, 0.5
    %v1459 = vmul.f32 %v1267, 0.5
    %v1460 = vmul.f32 %v1268, 0.5
    %v1461 = vmul.f32 %v1269, 0.5
    %v1462 = vmul.f32 %v1270, 0.5
    %v1463 = vmul.f32 %v1271, 0.5
    %v1464 = vmul.f32 %v1272, 0.5
    %v1465 = vmul.f32 %v1273, 0.5
    %v1466 = vmul.f32 %v1274, 0.5
    %v1467 = vmul.f32 %v1275, 0.5
    %v1468 = vmul.f32 %v1276, 0.5
    %v1469 = vmul.f32 %v1277, 0.5
    %v1470 = vmul.f32 %v1278, 0.5
    %v1471 = vmul.f32 %v1279, 0.5
    %v1472 = vmul.f32 %v1280, 0.5
    %v1473 = vmul.f32 %v1281, 0.5
    %v1474 = vmul.f32 %v1282, 0.5
    %v1475 = vmul.f32 %v1283, 0.5
    %v1476 = vmul.f32 %v1284, 0.5
    %v1477 = vmul.f32 %v1285, 0.5
    %v1478 = vmul.f32 %v1286, 0.5
    %v1479 = vmul.f32 %v1287, 0.5
    %v1480 = vmul.f32 %v1288, 0.5
    %v1481 = vmul.f32 %v1289, 0.5
    %v1482 = vmul.f32 %v1290, 0.5
    %v1483 = vmul.f32 %v1291, 0.5
    %v1484 = vmul.f32 %v1292, 0.5
    %v1485 = vmul.f32 %v1293, 0.5
    %v1486 = vmul.f32 %v1294, 0.5
    %v1487 = vmul.f32 %v1295, 0.5
    %v1488 = vmul.f32 %v1296, 0.5
    %v1489 = vmul.f32 %v1297, 0.5
    %v1490 = vmul.f32 %v1298, 0.5
    %v1491 = vmul.f32 %v1299, 0.5
    %v1492 = vmul.f32 %v1300, 0.5
    %v1493 = vmul.f32 %v1301, 0.5
    %v1494 = vmul.f32 %v1302, 0.5
    %v1495 = vmul.f32 %v1303, 0.5
    %v1496 = vmul.f32 %v1304, 0.5
    %v1497 = vmul.f32 %v1305, 0.5
    %v1498 = vmul.f32 %v1306, 0.5
    %v1499 = vmul.f32 %v1307, 0.5
    %v1500 = vmul.f32 %v1308, 0.5
    %v1501 = vmul.f32 %v1309, 0.5
    %v1502 = vmul.f32 %v1310, 0.5
    %v1503 = vmul.f32 %v1311, 0.5
    %v1504 = vmul.f32 %v1312, 0.5
    %v1505 = vmul.f32 %v1313, 0.5
    %v1506 = vmul.f32 %v1314, 0.5
    %v1507 = vmul.f32 %v1315, 0.5
    %v1508 = vmul.f32 %v1316, 0.5
    %v1509 = vmul.f32 %v1317, 0.5
    %v1510 = vmul.f32 %v1318, 0.5
    %v1511 = vmul.f32 %v1319, 0.5
    %v1512 = vmul.f32 %v1320, 0.5
    %v1513 = vmul.f32 %v1321, 0.5
    %v1514 = vmul.f32 %v1322, 0.5
    %v1515 = vmul.f32 %v1323, 0.5
    %v1516 = vmul.f32 %v1324, 0.5
    %v1517 = vmul.f32 %v1325, 0.5
    %v1518 = vmul.f32 %v1326, 0.5
    %v1519 = vmul.f32 %v1327, 0.5
    %v1520 = vadd.f32 %v1328, 0.5
    %v1521 = vadd.f32 %v1329, 0.5
    %v1522 = vadd.f32 %v1330, 0.5
    %v1523 = vadd.f32 %v1331, 0.5
    %v1524 = vadd.f32 %v1332, 0.5
    %v1525 = vadd.f32 %v1333, 0.5
    %v1526 = vadd.f32 %v1334, 0.5
    %v1527 = vadd.f32 %v1335, 0.5
    %v1528 = vadd.f32 %v1336, 0.5
    %v1529 = vadd.f32 %v1337, 0.5
    %v1530 = vadd.f32 %v1338, 0.5
    %v1531 = vadd.f32 %v1339, 0.5
    %v1532 = vadd.f32 %v1340, 0.5
    %v1533 = vadd.f32 %v1341, 0.5
    %v1534 = vadd.f32 %v1342, 0.5
    %v1535 = vadd.f32 %v1343, 0.5
    %v1536 = vadd.f32 %v1344, 0.5
    %v1537 = vadd.f32 %v1345, 0.5
    %v1538 = vadd.f32 %v1346, 0.5
    %v1539 = vadd.f32 %v1347, 0.5
    %v1540 = vadd.f32 %v1348, 0.5
    %v1541 = vadd.f32 %v1349, 0.5
    %v1542 = vadd.f32 %v1350, 0.5
    %v1543 = vadd.f32 %v1351, 0.5
    %v1544 = vadd.f32 %v1352, 0.5
    %v1545 = vadd.f32 %v1353, 0.5
    %v1546 = vadd.f32 %v1354, 0.5
    %v1547 = vadd.f32 %v1355, 0.5
    %v1548 = vadd.f32 %v1356, 0.5
    %v1549 = vadd.f32 %v1357, 0.5
    %v1550 = vadd.f32 %v1358, 0.5
    %v1551 = vadd.f32 %v1359, 0.5
    %v1552 = vadd.f32 %v1360, 0.5
    %v1553 = vadd.f32 %v1361, 0.5
    %v1554 = vadd.f32 %v1362, 0.5
    %v1555 = vadd.f32 %v1363, 0.5
    %v1556 = vadd.f32 %v1364, 0.5
    %v1557 = vadd.f32 %v1365, 0.5
    %v1558 = vadd.f32 %v1366, 0.5
    %v1559 = vadd.f32 %v1367, 0.5
    %v1560 = vadd.f32 %v1368, 0.5
    %v1561 = vadd.f32 %v1369, 0.5
    %v1562 = vadd.f32 %v1370, 0.5
    %v1563 = vadd.f32 %v1371, 0.5
    %v1564 = vadd.f32 %v1372, 0.5
    %v1565 = vadd.f32 %v1373, 0.5
    %v1566 = vadd.f32 %v1374, 0.5
    %v1567 = vadd.f32 %v1375, 0.5
    %v1568 = vadd.f32 %v1376, 0.5
    %v1569 = vadd.f32 %v1377, 0.5
    %v1570 = vadd.f32 %v1378, 0.5
    %v1571 = vadd.f32 %v1379, 0.5
    %v1572 = vadd.f32 %v1380, 0.5
    %v1573 = vadd.f32 %v1381, 0.5
    %v1574 = vadd.f32 %v1382, 0.5
    %v1575 = vadd.f32 %v1383, 0.5
    %v1576 = vadd.f32 %v1384, 0.5
    %v1577 = vadd.f32 %v1385, 0.5
    %v1578 = vadd.f32 %v1386, 0.5
    %v1579 = vadd.f32 %v1387, 0.5
    %v1580 = vadd.f32 %v1388, 0.5
    %v1581 = vadd.f32 %v1389, 0.5
    %v1582 = vadd.f32 %v1390, 0.5
    %v1583 = vadd.f32 %v1391, 0.5
    %v1584 = vadd.f32 %v1392, 0.5
    %v1585 = vadd.f32 %v1393, 0.5
    %v1586 = vadd.f32 %v1394, 0.5
    %v1587 = vadd.f32 %v1395, 0.5
    %v1588 = vadd.f32 %v1396, 0.5
    %v1589 = vadd.f32 %v1397, 0.5
    %v1590 = vadd.f32 %v1398, 0.5
    %v1591 = vadd.f32 %v1399, 0.5
    %v1592 = vadd.f32 %v1400, 0.5
    %v1593 = vadd.f32 %v1401, 0.5
    %v1594 = vadd.f32 %v1402, 0.5
    %v1595 = vadd.f32 %v1403, 0.5
    %v1596 = vadd.f32 %v1404, 0.5
    %v1597 = vadd.f32 %v1405, 0.5
    %v1598 = vadd.f32 %v1406, 0.5
    %v1599 = vadd.f32 %v1407, 0.5
    %v1600 = vadd.f32 %v1408, 0.5
    %v1601 = vadd.f32 %v1409, 0.5
    %v1602 = vadd.f32 %v1410, 0.5
    %v1603 = vadd.f32 %v1411, 0.5
    %v1604 = vadd.f32 %v1412, 0.5
    %v1605 = vadd.f32 %v1413, 0.5
    %v1606 = vadd.f32 %v1414, 0.5
    %v1607 = vadd.f32 %v1415, 0.5
    %v1608 = vadd.f32 %v1416, 0.5
    %v1609 = vadd.f32 %v1417, 0.5
    %v1610 = vadd.f32 %v1418, 0.5
    %v1611 = vadd.f32 %v1419, 0.5
    %v1612 = vadd.f32 %v1420, 0.5
    %v1613 = vadd.f32 %v1421, 0.5
    %v1614 = vadd.f32 %v1422, 0.5
    %v1615 = vadd.f32 %v1423, 0.5
    %v1616 = vadd.f32 %v1424, 0.5
    %v1617 = vadd.f32 %v1425, 0.5
    %v1618 = vadd.f32 %v1426, 0.5
    %v1619 = vadd.f32 %v1427, 0.5
    %v1620 = vadd.f32 %v1428, 0.5
    %v1621 = vadd.f32 %v1429, 0.5
    %v1622 = vadd.f32 %v1430, 0.5
    %v1623 = vadd.f32 %v1431, 0.5
    %v1624 = vadd.f32 %v1432, 0.5
    %v1625 = vadd.f32 %v1433, 0.5
    %v1626 = vadd.f32 %v1434, 0.5
    %v1627 = vadd.f32 %v1435, 0.5
    %v1628 = vadd.f32 %v1436, 0.5
    %v1629 = vadd.f32 %v1437, 0.5
    %v1630 = vadd.f32 %v1438, 0.5
    %v1631 = vadd.f32 %v1439, 0.5
    %v1632 = vadd.f32 %v1440, 0.5
    %v1633 = vadd.f32 %v1441, 0.5
    %v1634 = vadd.f32 %v1442, 0.5
    %v1635 = vadd.f32 %v1443, 0.5
    %v1636 = vadd.f32 %v1444, 0.5
    %v1637 = vadd.f32 %v1445, 0.5
    %v1638 = vadd.f32 %v1446, 0.5
    %v1639 = vadd.f32 %v1447, 0.5
    %v1640 = vadd.f32 %v1448, 0.5
    %v1641 = vadd.f32 %v1449, 0.5
    %v1642 = vadd.f32 %v1450, 0.5
    %v1643 = vadd.f32 %v1451, 0.5
    %v1644 = vadd.f32 %v1452, 0.5
    %v1645 = vadd.f32 %v1453, 0.5
    %v1646 = vadd.f32 %v1454, 0.5
    %v1647 = vadd.f32 %v1455, 0.5
    %v1648 = vadd.f32 %v1456, 0.5
    %v1649 = vadd.f32 %v1457, 0.5
    %v1650 = vadd.f32 %v1458, 0.5
    %v1651 = vadd.f32 %v1459, 0.5
    %v1652 = vadd.f32 %v1460, 0.5
    %v1653 = vadd.f32 %v1461, 0.5
    %v1654 = vadd.f32 %v1462, 0.5
    %v1655 = vadd.f32 %v1463, 0.5
    %v1656 = vadd.f32 %v1464, 0.5
    %v1657 = vadd.f32 %v1465, 0.5
    %v1658 = vadd.f32 %v1466, 0.5
    %v1659 = vadd.f32 %v1467, 0.5
    %v1660 = vadd.f32 %v1468, 0.5
    %v1661 = vadd.f32 %v1469, 0.5
    %v1662 = vadd.f32 %v1470, 0.5
    %v1663 = vadd.f32 %v1471, 0.5
    %v1664 = vadd.f32 %v1472, 0.5
    %v1665 = vadd.f32 %v1473, 0.5
    %v1666 = vadd.f32 %v1474, 0.5
    %v1667 = vadd.f32 %v1475, 0.5
    %v1668 = vadd.f32 %v1476, 0.5
    %v1669 = vadd.f32 %v1477, 0.5
    %v1670 = vadd.f32 %v1478, 0.5
    %v1671 = vadd.f32 %v1479, 0.5
    %v1672 = vadd.f32 %v1480, 0.5
    %v1673 = vadd.f32 %v1481, 0.5
    %v1674 = vadd.f32 %v1482, 0.5
    %v1675 = vadd.f32 %v1483, 0.5
    %v1676 = vadd.f32 %v1484, 0.5
    %v1677 = vadd.f32 %v1485, 0.5
    %v1678 = vadd.f32 %v1486, 0.5
    %v1679 = vadd.f32 %v1487, 0.5
    %v1680 = vadd.f32 %v1488, 0.5
    %v1681 = vadd.f32 %v1489, 0.5
    %v1682 = vadd.f32 %v1490, 0.5
    %v1683 = vadd.f32 %v1491, 0.5
    %v1684 = vadd.f32 %v1492, 0.5
    %v1685 = vadd.f32 %v1493, 0.5
    %v1686 = vadd.f32 %v1494, 0.5
    %v1687 = vadd.f32 %v1495, 0.5
    %v1688 = vadd.f32 %v1496, 0.5
    %v1689 = vadd.f32 %v1497, 0.5
    %v1690 = vadd.f32 %v1498, 0.5
    %v1691 = vadd.f32 %v1499, 0.5
    %v1692 = vadd.f32 %v1500, 0.5
    %v1693 = vadd.f32 %v1501, 0.5
    %v1694 = vadd.f32 %v1502, 0.5
    %v1695 = vadd.f32 %v1503, 0.5
    %v1696 = vadd.f32 %v1504, 0.5
    %v1697 = vadd.f32 %v1505, 0.5
    %v1698 = vadd.f32 %v1506, 0.5
    %v1699 = vadd.f32 %v1507, 0.5
    %v1700 = vadd.f32 %v1508, 0.5
    %v1701 = vadd.f32 %v1509, 0.5
    %v1702 = vadd.f32 %v1510, 0.5
    %v1703 = vadd.f32 %v1511, 0.5
    %v1704 = vadd.f32 %v1512, 0.5
    %v1705 = vadd.f32 %v1513, 0.5
    %v1706 = vadd.f32 %v1514, 0.5
    %v1707 = vadd.f32 %v1515, 0.5
    %v1708 = vadd.f32 %v1516, 0.5
    %v1709 = vadd.f32 %v1517, 0.5
    %v1710 = vadd.f32 %v1518, 0.5
    %v1711 = vadd.f32 %v1519, 0.5
    %v1712 = vpack.c.bf16 %v1526, %v1520
    %v1713 = vpack.c.bf16 %v1527, %v1521
    %v1714 = vpack.c.bf16 %v1528, %v1522
    %v1715 = vpack.c.bf16 %v1529, %v1523
    %v1716 = vpack.c.bf16 %v1530, %v1524
    %v1717 = vpack.c.bf16 %v1531, %v1525
    %v1718 = vpack.c.bf16 %v1538, %v1532
    %v1719 = vpack.c.bf16 %v1539, %v1533
    %v1720 = vpack.c.bf16 %v1540, %v1534
    %v1721 = vpack.c.bf16 %v1541, %v1535
    %v1722 = vpack.c.bf16 %v1542, %v1536
    %v1723 = vpack.c.bf16 %v1543, %v1537
    %v1724 = vpack.c.bf16 %v1550, %v1544
    %v1725 = vpack.c.bf16 %v1551, %v1545
    %v1726 = vpack.c.bf16 %v1552, %v1546
    %v1727 = vpack.c.bf16 %v1553, %v1547
    %v1728 = vpack.c.bf16 %v1554, %v1548
    %v1729 = vpack.c.bf16 %v1555, %v1549
    %v1730 = vpack.c.bf16 %v1562, %v1556
    %v1731 = vpack.c.bf16 %v1563, %v1557
    %v1732 = vpack.c.bf16 %v1564, %v1558
    %v1733 = vpack.c.bf16 %v1565, %v1559
    %v1734 = vpack.c.bf16 %v1566, %v1560
    %v1735 = vpack.c.bf16 %v1567, %v1561
    %v1736 = vpack.c.bf16 %v1574, %v1568
    %v1737 = vpack.c.bf16 %v1575, %v1569
    %v1738 = vpack.c.bf16 %v1576, %v1570
    %v1739 = vpack.c.bf16 %v1577, %v1571
    %v1740 = vpack.c.bf16 %v1578, %v1572
    %v1741 = vpack.c.bf16 %v1579, %v1573
    %v1742 = vpack.c.bf16 %v1586, %v1580
    %v1743 = vpack.c.bf16 %v1587, %v1581
    %v1744 = vpack.c.bf16 %v1588, %v1582
    %v1745 = vpack.c.bf16 %v1589, %v1583
    %v1746 = vpack.c.bf16 %v1590, %v1584
    %v1747 = vpack.c.bf16 %v1591, %v1585
    %v1748 = vpack.c.bf16 %v1598, %v1592
    %v1749 = vpack.c.bf16 %v1599, %v1593
    %v1750 = vpack.c.bf16 %v1600, %v1594
    %v1751 = vpack.c.bf16 %v1601, %v1595
    %v1752 = vpack.c.bf16 %v1602, %v1596
    %v1753 = vpack.c.bf16 %v1603, %v1597
    %v1754 = vpack.c.bf16 %v1610, %v1604
    %v1755 = vpack.c.bf16 %v1611, %v1605
    %v1756 = vpack.c.bf16 %v1612, %v1606
    %v1757 = vpack.c.bf16 %v1613, %v1607
    %v1758 = vpack.c.bf16 %v1614, %v1608
    %v1759 = vpack.c.bf16 %v1615, %v1609
    %v1760 = vpack.c.bf16 %v1622, %v1616
    %v1761 = vpack.c.bf16 %v1623, %v1617
    %v1762 = vpack.c.bf16 %v1624, %v1618
    %v1763 = vpack.c.bf16 %v1625, %v1619
    %v1764 = vpack.c.bf16 %v1626, %v1620
    %v1765 = vpack.c.bf16 %v1627, %v1621
    %v1766 = vpack.c.bf16 %v1634, %v1628
    %v1767 = vpack.c.bf16 %v1635, %v1629
    %v1768 = vpack.c.bf16 %v1636, %v1630
    %v1769 = vpack.c.bf16 %v1637, %v1631
    %v1770 = vpack.c.bf16 %v1638, %v1632
    %v1771 = vpack.c.bf16 %v1639, %v1633
    %v1772 = vpack.c.bf16 %v1646, %v1640
    %v1773 = vpack.c.bf16 %v1647, %v1641
    %v1774 = vpack.c.bf16 %v1648, %v1642
    %v1775 = vpack.c.bf16 %v1649, %v1643
    %v1776 = vpack.c.bf16 %v1650, %v1644
    %v1777 = vpack.c.bf16 %v1651, %v1645
    %v1778 = vpack.c.bf16 %v1658, %v1652
    %v1779 = vpack.c.bf16 %v1659, %v1653
    %v1780 = vpack.c.bf16 %v1660, %v1654
    %v1781 = vpack.c.bf16 %v1661, %v1655
    %v1782 = vpack.c.bf16 %v1662, %v1656
    %v1783 = vpack.c.bf16 %v1663, %v1657
    %v1784 = vpack.c.bf16 %v1670, %v1664
    %v1785 = vpack.c.bf16 %v1671, %v1665
    %v1786 = vpack.c.bf16 %v1672, %v1666
    %v1787 = vpack.c.bf16 %v1673, %v1667
    %v1788 = vpack.c.bf16 %v1674, %v1668
    %v1789 = vpack.c.bf16 %v1675, %v1669
    %v1790 = vpack.c.bf16 %v1682, %v1676
    %v1791 = vpack.c.bf16 %v1683, %v1677
    %v1792 = vpack.c.bf16 %v1684, %v1678
    %v1793 = vpack.c.bf16 %v1685, %v1679
    %v1794 = vpack.c.bf16 %v1686, %v1680
    %v1795 = vpack.c.bf16 %v1687, %v1681
    %v1796 = vpack.c.bf16 %v1694, %v1688
    %v1797 = vpack.c.bf16 %v1695, %v1689
    %v1798 = vpack.c.bf16 %v1696, %v1690
    %v1799 = vpack.c.bf16 %v1697, %v1691
    %v1800 = vpack.c.bf16 %v1698, %v1692
    %v1801 = vpack.c.bf16 %v1699, %v1693
    %v1802 = vpack.c.bf16 %v1706, %v1700
    %v1803 = vpack.c.bf16 %v1707, %v1701
    %v1804 = vpack.c.bf16 %v1708, %v1702
    %v1805 = vpack.c.bf16 %v1709, %v1703
    %v1806 = vpack.c.bf16 %v1710, %v1704
    %v1807 = vpack.c.bf16 %v1711, %v1705
    %v1808 = vld [vmem:[#allocation5] sm:$0xff]
    %v1809 = vld [vmem:[#allocation5 + $0x8] sm:$0xff]
    %v1810 = vld [vmem:[#allocation5 + $0x10] sm:$0xff]
    %v1811 = vld [vmem:[#allocation5 + $0x18] sm:$0xff]
    %v1812 = vld [vmem:[#allocation5 + $0x20] sm:$0xff]
    %v1813 = vld [vmem:[#allocation5 + $0x28] sm:$0xff]
    %v1814 = vld [vmem:[#allocation5 + $0x30] sm:$0xff]
    %v1815 = vld [vmem:[#allocation5 + $0x38] sm:$0xff]
    %v1816 = vld [vmem:[#allocation5 + $0x40] sm:$0xff]
    %v1817 = vld [vmem:[#allocation5 + $0x48] sm:$0xff]
    %v1818 = vld [vmem:[#allocation5 + $0x50] sm:$0xff]
    %v1819 = vld [vmem:[#allocation5 + $0x58] sm:$0xff]
    %v1820 = vld [vmem:[#allocation5 + $0x60] sm:$0xff]
    %v1821 = vld [vmem:[#allocation5 + $0x68] sm:$0xff]
    %v1822 = vld [vmem:[#allocation5 + $0x70] sm:$0xff]
    %v1823 = vld [vmem:[#allocation5 + $0x78] sm:$0xff]
    %v1824 = vld [vmem:[#allocation5 + $0x80] sm:$0xff]
    %v1825 = vld [vmem:[#allocation5 + $0x88] sm:$0xff]
    %v1826 = vld [vmem:[#allocation5 + $0x90] sm:$0xff]
    %v1827 = vld [vmem:[#allocation5 + $0x98] sm:$0xff]
    %v1828 = vld [vmem:[#allocation5 + $0xa0] sm:$0xff]
    %v1829 = vld [vmem:[#allocation5 + $0xa8] sm:$0xff]
    %v1830 = vld [vmem:[#allocation5 + $0xb0] sm:$0xff]
    %v1831 = vld [vmem:[#allocation5 + $0xb8] sm:$0xff]
    %v1832 = vld [vmem:[#allocation5 + $0xc0] sm:$0xff]
    %v1833 = vld [vmem:[#allocation5 + $0xc8] sm:$0xff]
    %v1834 = vld [vmem:[#allocation5 + $0xd0] sm:$0xff]
    %v1835 = vld [vmem:[#allocation5 + $0xd8] sm:$0xff]
    %v1836 = vld [vmem:[#allocation5 + $0xe0] sm:$0xff]
    %v1837 = vld [vmem:[#allocation5 + $0xe8] sm:$0xff]
    %v1838 = vld [vmem:[#allocation5 + $0xf0] sm:$0xff]
    %v1839 = vld [vmem:[#allocation5 + $0xf8] sm:$0xff]
    %v1840 = vld [vmem:[#allocation5 + $0x100] sm:$0xff]
    %v1841 = vld [vmem:[#allocation5 + $0x108] sm:$0xff]
    %v1842 = vld [vmem:[#allocation5 + $0x110] sm:$0xff]
    %v1843 = vld [vmem:[#allocation5 + $0x118] sm:$0xff]
    %v1844 = vld [vmem:[#allocation5 + $0x120] sm:$0xff]
    %v1845 = vld [vmem:[#allocation5 + $0x128] sm:$0xff]
    %v1846 = vld [vmem:[#allocation5 + $0x130] sm:$0xff]
    %v1847 = vld [vmem:[#allocation5 + $0x138] sm:$0xff]
    %v1848 = vld [vmem:[#allocation5 + $0x140] sm:$0xff]
    %v1849 = vld [vmem:[#allocation5 + $0x148] sm:$0xff]
    %v1850 = vld [vmem:[#allocation5 + $0x150] sm:$0xff]
    %v1851 = vld [vmem:[#allocation5 + $0x158] sm:$0xff]
    %v1852 = vld [vmem:[#allocation5 + $0x160] sm:$0xff]
    %v1853 = vld [vmem:[#allocation5 + $0x168] sm:$0xff]
    %v1854 = vld [vmem:[#allocation5 + $0x170] sm:$0xff]
    %v1855 = vld [vmem:[#allocation5 + $0x178] sm:$0xff]
    %v1856 = vld [vmem:[#allocation5 + $0x180] sm:$0xff]
    %v1857 = vld [vmem:[#allocation5 + $0x188] sm:$0xff]
    %v1858 = vld [vmem:[#allocation5 + $0x190] sm:$0xff]
    %v1859 = vld [vmem:[#allocation5 + $0x198] sm:$0xff]
    %v1860 = vld [vmem:[#allocation5 + $0x1a0] sm:$0xff]
    %v1861 = vld [vmem:[#allocation5 + $0x1a8] sm:$0xff]
    %v1862 = vld [vmem:[#allocation5 + $0x1b0] sm:$0xff]
    %v1863 = vld [vmem:[#allocation5 + $0x1b8] sm:$0xff]
    %v1864 = vld [vmem:[#allocation5 + $0x1c0] sm:$0xff]
    %v1865 = vld [vmem:[#allocation5 + $0x1c8] sm:$0xff]
    %v1866 = vld [vmem:[#allocation5 + $0x1d0] sm:$0xff]
    %v1867 = vld [vmem:[#allocation5 + $0x1d8] sm:$0xff]
    %v1868 = vld [vmem:[#allocation5 + $0x1e0] sm:$0xff]
    %v1869 = vld [vmem:[#allocation5 + $0x1e8] sm:$0xff]
    %v1870 = vld [vmem:[#allocation5 + $0x1f0] sm:$0xff]
    %v1871 = vld [vmem:[#allocation5 + $0x1f8] sm:$0xff]
    %v1872 = vld [vmem:[#allocation5 + $0x200] sm:$0xff]
    %v1873 = vld [vmem:[#allocation5 + $0x208] sm:$0xff]
    %v1874 = vld [vmem:[#allocation5 + $0x210] sm:$0xff]
    %v1875 = vld [vmem:[#allocation5 + $0x218] sm:$0xff]
    %v1876 = vld [vmem:[#allocation5 + $0x220] sm:$0xff]
    %v1877 = vld [vmem:[#allocation5 + $0x228] sm:$0xff]
    %v1878 = vld [vmem:[#allocation5 + $0x230] sm:$0xff]
    %v1879 = vld [vmem:[#allocation5 + $0x238] sm:$0xff]
    %v1880 = vld [vmem:[#allocation5 + $0x240] sm:$0xff]
    %v1881 = vld [vmem:[#allocation5 + $0x248] sm:$0xff]
    %v1882 = vld [vmem:[#allocation5 + $0x250] sm:$0xff]
    %v1883 = vld [vmem:[#allocation5 + $0x258] sm:$0xff]
    %v1884 = vld [vmem:[#allocation5 + $0x260] sm:$0xff]
    %v1885 = vld [vmem:[#allocation5 + $0x268] sm:$0xff]
    %v1886 = vld [vmem:[#allocation5 + $0x270] sm:$0xff]
    %v1887 = vld [vmem:[#allocation5 + $0x278] sm:$0xff]
    %v1888 = vld [vmem:[#allocation5 + $0x280] sm:$0xff]
    %v1889 = vld [vmem:[#allocation5 + $0x288] sm:$0xff]
    %v1890 = vld [vmem:[#allocation5 + $0x290] sm:$0xff]
    %v1891 = vld [vmem:[#allocation5 + $0x298] sm:$0xff]
    %v1892 = vld [vmem:[#allocation5 + $0x2a0] sm:$0xff]
    %v1893 = vld [vmem:[#allocation5 + $0x2a8] sm:$0xff]
    %v1894 = vld [vmem:[#allocation5 + $0x2b0] sm:$0xff]
    %v1895 = vld [vmem:[#allocation5 + $0x2b8] sm:$0xff]
    %v1896 = vld [vmem:[#allocation5 + $0x2c0] sm:$0xff]
    %v1897 = vld [vmem:[#allocation5 + $0x2c8] sm:$0xff]
    %v1898 = vld [vmem:[#allocation5 + $0x2d0] sm:$0xff]
    %v1899 = vld [vmem:[#allocation5 + $0x2d8] sm:$0xff]
    %v1900 = vld [vmem:[#allocation5 + $0x2e0] sm:$0xff]
    %v1901 = vld [vmem:[#allocation5 + $0x2e8] sm:$0xff]
    %v1902 = vld [vmem:[#allocation5 + $0x2f0] sm:$0xff]
    %v1903 = vld [vmem:[#allocation5 + $0x2f8] sm:$0xff]
    %v1904 = vld [vmem:[#allocation5 + $0x300] sm:$0xff]
    %v1905 = vld [vmem:[#allocation5 + $0x308] sm:$0xff]
    %v1906 = vld [vmem:[#allocation5 + $0x310] sm:$0xff]
    %v1907 = vld [vmem:[#allocation5 + $0x318] sm:$0xff]
    %v1908 = vld [vmem:[#allocation5 + $0x320] sm:$0xff]
    %v1909 = vld [vmem:[#allocation5 + $0x328] sm:$0xff]
    %v1910 = vld [vmem:[#allocation5 + $0x330] sm:$0xff]
    %v1911 = vld [vmem:[#allocation5 + $0x338] sm:$0xff]
    %v1912 = vld [vmem:[#allocation5 + $0x340] sm:$0xff]
    %v1913 = vld [vmem:[#allocation5 + $0x348] sm:$0xff]
    %v1914 = vld [vmem:[#allocation5 + $0x350] sm:$0xff]
    %v1915 = vld [vmem:[#allocation5 + $0x358] sm:$0xff]
    %v1916 = vld [vmem:[#allocation5 + $0x360] sm:$0xff]
    %v1917 = vld [vmem:[#allocation5 + $0x368] sm:$0xff]
    %v1918 = vld [vmem:[#allocation5 + $0x370] sm:$0xff]
    %v1919 = vld [vmem:[#allocation5 + $0x378] sm:$0xff]
    %v1920 = vld [vmem:[#allocation5 + $0x380] sm:$0xff]
    %v1921 = vld [vmem:[#allocation5 + $0x388] sm:$0xff]
    %v1922 = vld [vmem:[#allocation5 + $0x390] sm:$0xff]
    %v1923 = vld [vmem:[#allocation5 + $0x398] sm:$0xff]
    %v1924 = vld [vmem:[#allocation5 + $0x3a0] sm:$0xff]
    %v1925 = vld [vmem:[#allocation5 + $0x3a8] sm:$0xff]
    %v1926 = vld [vmem:[#allocation5 + $0x3b0] sm:$0xff]
    %v1927 = vld [vmem:[#allocation5 + $0x3b8] sm:$0xff]
    %v1928 = vld [vmem:[#allocation5 + $0x3c0] sm:$0xff]
    %v1929 = vld [vmem:[#allocation5 + $0x3c8] sm:$0xff]
    %v1930 = vld [vmem:[#allocation5 + $0x3d0] sm:$0xff]
    %v1931 = vld [vmem:[#allocation5 + $0x3d8] sm:$0xff]
    %v1932 = vld [vmem:[#allocation5 + $0x3e0] sm:$0xff]
    %v1933 = vld [vmem:[#allocation5 + $0x3e8] sm:$0xff]
    %v1934 = vld [vmem:[#allocation5 + $0x3f0] sm:$0xff]
    %v1935 = vld [vmem:[#allocation5 + $0x3f8] sm:$0xff]
    %v1936 = vld [vmem:[#allocation5 + $0x400] sm:$0xff]
    %v1937 = vld [vmem:[#allocation5 + $0x408] sm:$0xff]
    %v1938 = vld [vmem:[#allocation5 + $0x410] sm:$0xff]
    %v1939 = vld [vmem:[#allocation5 + $0x418] sm:$0xff]
    %v1940 = vld [vmem:[#allocation5 + $0x420] sm:$0xff]
    %v1941 = vld [vmem:[#allocation5 + $0x428] sm:$0xff]
    %v1942 = vld [vmem:[#allocation5 + $0x430] sm:$0xff]
    %v1943 = vld [vmem:[#allocation5 + $0x438] sm:$0xff]
    %v1944 = vld [vmem:[#allocation5 + $0x440] sm:$0xff]
    %v1945 = vld [vmem:[#allocation5 + $0x448] sm:$0xff]
    %v1946 = vld [vmem:[#allocation5 + $0x450] sm:$0xff]
    %v1947 = vld [vmem:[#allocation5 + $0x458] sm:$0xff]
    %v1948 = vld [vmem:[#allocation5 + $0x460] sm:$0xff]
    %v1949 = vld [vmem:[#allocation5 + $0x468] sm:$0xff]
    %v1950 = vld [vmem:[#allocation5 + $0x470] sm:$0xff]
    %v1951 = vld [vmem:[#allocation5 + $0x478] sm:$0xff]
    %v1952 = vld [vmem:[#allocation5 + $0x480] sm:$0xff]
    %v1953 = vld [vmem:[#allocation5 + $0x488] sm:$0xff]
    %v1954 = vld [vmem:[#allocation5 + $0x490] sm:$0xff]
    %v1955 = vld [vmem:[#allocation5 + $0x498] sm:$0xff]
    %v1956 = vld [vmem:[#allocation5 + $0x4a0] sm:$0xff]
    %v1957 = vld [vmem:[#allocation5 + $0x4a8] sm:$0xff]
    %v1958 = vld [vmem:[#allocation5 + $0x4b0] sm:$0xff]
    %v1959 = vld [vmem:[#allocation5 + $0x4b8] sm:$0xff]
    %v1960 = vld [vmem:[#allocation5 + $0x4c0] sm:$0xff]
    %v1961 = vld [vmem:[#allocation5 + $0x4c8] sm:$0xff]
    %v1962 = vld [vmem:[#allocation5 + $0x4d0] sm:$0xff]
    %v1963 = vld [vmem:[#allocation5 + $0x4d8] sm:$0xff]
    %v1964 = vld [vmem:[#allocation5 + $0x4e0] sm:$0xff]
    %v1965 = vld [vmem:[#allocation5 + $0x4e8] sm:$0xff]
    %v1966 = vld [vmem:[#allocation5 + $0x4f0] sm:$0xff]
    %v1967 = vld [vmem:[#allocation5 + $0x4f8] sm:$0xff]
    %v1968 = vld [vmem:[#allocation5 + $0x500] sm:$0xff]
    %v1969 = vld [vmem:[#allocation5 + $0x508] sm:$0xff]
    %v1970 = vld [vmem:[#allocation5 + $0x510] sm:$0xff]
    %v1971 = vld [vmem:[#allocation5 + $0x518] sm:$0xff]
    %v1972 = vld [vmem:[#allocation5 + $0x520] sm:$0xff]
    %v1973 = vld [vmem:[#allocation5 + $0x528] sm:$0xff]
    %v1974 = vld [vmem:[#allocation5 + $0x530] sm:$0xff]
    %v1975 = vld [vmem:[#allocation5 + $0x538] sm:$0xff]
    %v1976 = vld [vmem:[#allocation5 + $0x540] sm:$0xff]
    %v1977 = vld [vmem:[#allocation5 + $0x548] sm:$0xff]
    %v1978 = vld [vmem:[#allocation5 + $0x550] sm:$0xff]
    %v1979 = vld [vmem:[#allocation5 + $0x558] sm:$0xff]
    %v1980 = vld [vmem:[#allocation5 + $0x560] sm:$0xff]
    %v1981 = vld [vmem:[#allocation5 + $0x568] sm:$0xff]
    %v1982 = vld [vmem:[#allocation5 + $0x570] sm:$0xff]
    %v1983 = vld [vmem:[#allocation5 + $0x578] sm:$0xff]
    %v1984 = vld [vmem:[#allocation5 + $0x580] sm:$0xff]
    %v1985 = vld [vmem:[#allocation5 + $0x588] sm:$0xff]
    %v1986 = vld [vmem:[#allocation5 + $0x590] sm:$0xff]
    %v1987 = vld [vmem:[#allocation5 + $0x598] sm:$0xff]
    %v1988 = vld [vmem:[#allocation5 + $0x5a0] sm:$0xff]
    %v1989 = vld [vmem:[#allocation5 + $0x5a8] sm:$0xff]
    %v1990 = vld [vmem:[#allocation5 + $0x5b0] sm:$0xff]
    %v1991 = vld [vmem:[#allocation5 + $0x5b8] sm:$0xff]
    %v1992 = vld [vmem:[#allocation5 + $0x5c0] sm:$0xff]
    %v1993 = vld [vmem:[#allocation5 + $0x5c8] sm:$0xff]
    %v1994 = vld [vmem:[#allocation5 + $0x5d0] sm:$0xff]
    %v1995 = vld [vmem:[#allocation5 + $0x5d8] sm:$0xff]
    %v1996 = vld [vmem:[#allocation5 + $0x5e0] sm:$0xff]
    %v1997 = vld [vmem:[#allocation5 + $0x5e8] sm:$0xff]
    %v1998 = vld [vmem:[#allocation5 + $0x5f0] sm:$0xff]
    %v1999 = vld [vmem:[#allocation5 + $0x5f8] sm:$0xff]
    %v2000 = vld [vmem:[%s4] sm:$0xf]
    %v2002 = vlaneseq
    %v2003 = vshrl.u32 %v2002, 7
    %v2004 = vsub.s32 0, %v2003
    %v2005 = vrot.slane %v2000, %v2004
    %v2006 = vlaneseq
    %v2007 = vshrl.u32 %v2006, 7
    %v2008 = vsub.s32 1, %v2007
    %v2009 = vrot.slane %v2000, %v2008
    %v2010 = vlaneseq
    %v2011 = vshrl.u32 %v2010, 7
    %v2012 = vsub.s32 2, %v2011
    %v2013 = vrot.slane %v2000, %v2012
    %v2014 = vlaneseq
    %v2015 = vshrl.u32 %v2014, 7
    %v2016 = vsub.s32 3, %v2015
    %v2017 = vrot.slane %v2000, %v2016
    %v2214 = vunpack.c.l.b16 %v1808
    %v2215 = vunpack.c.h.b16 %v1808
    %v2216 = vunpack.c.l.b16 %v1809
    %v2217 = vunpack.c.h.b16 %v1809
    %v2218 = vunpack.c.l.b16 %v1810
    %v2219 = vunpack.c.h.b16 %v1810
    %v2220 = vunpack.c.l.b16 %v1811
    %v2221 = vunpack.c.h.b16 %v1811
    %v2222 = vunpack.c.l.b16 %v1812
    %v2223 = vunpack.c.h.b16 %v1812
    %v2224 = vunpack.c.l.b16 %v1813
    %v2225 = vunpack.c.h.b16 %v1813
    %v2226 = vunpack.c.l.b16 %v1814
    %v2227 = vunpack.c.h.b16 %v1814
    %v2228 = vunpack.c.l.b16 %v1815
    %v2229 = vunpack.c.h.b16 %v1815
    %v2230 = vunpack.c.l.b16 %v1816
    %v2231 = vunpack.c.h.b16 %v1816
    %v2232 = vunpack.c.l.b16 %v1817
    %v2233 = vunpack.c.h.b16 %v1817
    %v2234 = vunpack.c.l.b16 %v1818
    %v2235 = vunpack.c.h.b16 %v1818
    %v2236 = vunpack.c.l.b16 %v1819
    %v2237 = vunpack.c.h.b16 %v1819
    %v2238 = vunpack.c.l.b16 %v1820
    %v2239 = vunpack.c.h.b16 %v1820
    %v2240 = vunpack.c.l.b16 %v1821
    %v2241 = vunpack.c.h.b16 %v1821
    %v2242 = vunpack.c.l.b16 %v1822
    %v2243 = vunpack.c.h.b16 %v1822
    %v2244 = vunpack.c.l.b16 %v1823
    %v2245 = vunpack.c.h.b16 %v1823
    %v2246 = vunpack.c.l.b16 %v1824
    %v2247 = vunpack.c.h.b16 %v1824
    %v2248 = vunpack.c.l.b16 %v1825
    %v2249 = vunpack.c.h.b16 %v1825
    %v2250 = vunpack.c.l.b16 %v1826
    %v2251 = vunpack.c.h.b16 %v1826
    %v2252 = vunpack.c.l.b16 %v1827
    %v2253 = vunpack.c.h.b16 %v1827
    %v2254 = vunpack.c.l.b16 %v1828
    %v2255 = vunpack.c.h.b16 %v1828
    %v2256 = vunpack.c.l.b16 %v1829
    %v2257 = vunpack.c.h.b16 %v1829
    %v2258 = vunpack.c.l.b16 %v1830
    %v2259 = vunpack.c.h.b16 %v1830
    %v2260 = vunpack.c.l.b16 %v1831
    %v2261 = vunpack.c.h.b16 %v1831
    %v2262 = vunpack.c.l.b16 %v1832
    %v2263 = vunpack.c.h.b16 %v1832
    %v2264 = vunpack.c.l.b16 %v1833
    %v2265 = vunpack.c.h.b16 %v1833
    %v2266 = vunpack.c.l.b16 %v1834
    %v2267 = vunpack.c.h.b16 %v1834
    %v2268 = vunpack.c.l.b16 %v1835
    %v2269 = vunpack.c.h.b16 %v1835
    %v2270 = vunpack.c.l.b16 %v1836
    %v2271 = vunpack.c.h.b16 %v1836
    %v2272 = vunpack.c.l.b16 %v1837
    %v2273 = vunpack.c.h.b16 %v1837
    %v2274 = vunpack.c.l.b16 %v1838
    %v2275 = vunpack.c.h.b16 %v1838
    %v2276 = vunpack.c.l.b16 %v1839
    %v2277 = vunpack.c.h.b16 %v1839
    %v2278 = vunpack.c.l.b16 %v1840
    %v2279 = vunpack.c.h.b16 %v1840
    %v2280 = vunpack.c.l.b16 %v1841
    %v2281 = vunpack.c.h.b16 %v1841
    %v2282 = vunpack.c.l.b16 %v1842
    %v2283 = vunpack.c.h.b16 %v1842
    %v2284 = vunpack.c.l.b16 %v1843
    %v2285 = vunpack.c.h.b16 %v1843
    %v2286 = vunpack.c.l.b16 %v1844
    %v2287 = vunpack.c.h.b16 %v1844
    %v2288 = vunpack.c.l.b16 %v1845
    %v2289 = vunpack.c.h.b16 %v1845
    %v2290 = vunpack.c.l.b16 %v1846
    %v2291 = vunpack.c.h.b16 %v1846
    %v2292 = vunpack.c.l.b16 %v1847
    %v2293 = vunpack.c.h.b16 %v1847
    %v2294 = vunpack.c.l.b16 %v1848
    %v2295 = vunpack.c.h.b16 %v1848
    %v2296 = vunpack.c.l.b16 %v1849
    %v2297 = vunpack.c.h.b16 %v1849
    %v2298 = vunpack.c.l.b16 %v1850
    %v2299 = vunpack.c.h.b16 %v1850
    %v2300 = vunpack.c.l.b16 %v1851
    %v2301 = vunpack.c.h.b16 %v1851
    %v2302 = vunpack.c.l.b16 %v1852
    %v2303 = vunpack.c.h.b16 %v1852
    %v2304 = vunpack.c.l.b16 %v1853
    %v2305 = vunpack.c.h.b16 %v1853
    %v2306 = vunpack.c.l.b16 %v1854
    %v2307 = vunpack.c.h.b16 %v1854
    %v2308 = vunpack.c.l.b16 %v1855
    %v2309 = vunpack.c.h.b16 %v1855
    %v2310 = vunpack.c.l.b16 %v1856
    %v2311 = vunpack.c.h.b16 %v1856
    %v2312 = vunpack.c.l.b16 %v1857
    %v2313 = vunpack.c.h.b16 %v1857
    %v2314 = vunpack.c.l.b16 %v1858
    %v2315 = vunpack.c.h.b16 %v1858
    %v2316 = vunpack.c.l.b16 %v1859
    %v2317 = vunpack.c.h.b16 %v1859
    %v2318 = vunpack.c.l.b16 %v1860
    %v2319 = vunpack.c.h.b16 %v1860
    %v2320 = vunpack.c.l.b16 %v1861
    %v2321 = vunpack.c.h.b16 %v1861
    %v2322 = vunpack.c.l.b16 %v1862
    %v2323 = vunpack.c.h.b16 %v1862
    %v2324 = vunpack.c.l.b16 %v1863
    %v2325 = vunpack.c.h.b16 %v1863
    %v2326 = vunpack.c.l.b16 %v1864
    %v2327 = vunpack.c.h.b16 %v1864
    %v2328 = vunpack.c.l.b16 %v1865
    %v2329 = vunpack.c.h.b16 %v1865
    %v2330 = vunpack.c.l.b16 %v1866
    %v2331 = vunpack.c.h.b16 %v1866
    %v2332 = vunpack.c.l.b16 %v1867
    %v2333 = vunpack.c.h.b16 %v1867
    %v2334 = vunpack.c.l.b16 %v1868
    %v2335 = vunpack.c.h.b16 %v1868
    %v2336 = vunpack.c.l.b16 %v1869
    %v2337 = vunpack.c.h.b16 %v1869
    %v2338 = vunpack.c.l.b16 %v1870
    %v2339 = vunpack.c.h.b16 %v1870
    %v2340 = vunpack.c.l.b16 %v1871
    %v2341 = vunpack.c.h.b16 %v1871
    %v2342 = vunpack.c.l.b16 %v1872
    %v2343 = vunpack.c.h.b16 %v1872
    %v2344 = vunpack.c.l.b16 %v1873
    %v2345 = vunpack.c.h.b16 %v1873
    %v2346 = vunpack.c.l.b16 %v1874
    %v2347 = vunpack.c.h.b16 %v1874
    %v2348 = vunpack.c.l.b16 %v1875
    %v2349 = vunpack.c.h.b16 %v1875
    %v2350 = vunpack.c.l.b16 %v1876
    %v2351 = vunpack.c.h.b16 %v1876
    %v2352 = vunpack.c.l.b16 %v1877
    %v2353 = vunpack.c.h.b16 %v1877
    %v2354 = vunpack.c.l.b16 %v1878
    %v2355 = vunpack.c.h.b16 %v1878
    %v2356 = vunpack.c.l.b16 %v1879
    %v2357 = vunpack.c.h.b16 %v1879
    %v2358 = vunpack.c.l.b16 %v1880
    %v2359 = vunpack.c.h.b16 %v1880
    %v2360 = vunpack.c.l.b16 %v1881
    %v2361 = vunpack.c.h.b16 %v1881
    %v2362 = vunpack.c.l.b16 %v1882
    %v2363 = vunpack.c.h.b16 %v1882
    %v2364 = vunpack.c.l.b16 %v1883
    %v2365 = vunpack.c.h.b16 %v1883
    %v2366 = vunpack.c.l.b16 %v1884
    %v2367 = vunpack.c.h.b16 %v1884
    %v2368 = vunpack.c.l.b16 %v1885
    %v2369 = vunpack.c.h.b16 %v1885
    %v2370 = vunpack.c.l.b16 %v1886
    %v2371 = vunpack.c.h.b16 %v1886
    %v2372 = vunpack.c.l.b16 %v1887
    %v2373 = vunpack.c.h.b16 %v1887
    %v2374 = vunpack.c.l.b16 %v1888
    %v2375 = vunpack.c.h.b16 %v1888
    %v2376 = vunpack.c.l.b16 %v1889
    %v2377 = vunpack.c.h.b16 %v1889
    %v2378 = vunpack.c.l.b16 %v1890
    %v2379 = vunpack.c.h.b16 %v1890
    %v2380 = vunpack.c.l.b16 %v1891
    %v2381 = vunpack.c.h.b16 %v1891
    %v2382 = vunpack.c.l.b16 %v1892
    %v2383 = vunpack.c.h.b16 %v1892
    %v2384 = vunpack.c.l.b16 %v1893
    %v2385 = vunpack.c.h.b16 %v1893
    %v2386 = vunpack.c.l.b16 %v1894
    %v2387 = vunpack.c.h.b16 %v1894
    %v2388 = vunpack.c.l.b16 %v1895
    %v2389 = vunpack.c.h.b16 %v1895
    %v2390 = vunpack.c.l.b16 %v1896
    %v2391 = vunpack.c.h.b16 %v1896
    %v2392 = vunpack.c.l.b16 %v1897
    %v2393 = vunpack.c.h.b16 %v1897
    %v2394 = vunpack.c.l.b16 %v1898
    %v2395 = vunpack.c.h.b16 %v1898
    %v2396 = vunpack.c.l.b16 %v1899
    %v2397 = vunpack.c.h.b16 %v1899
    %v2398 = vunpack.c.l.b16 %v1900
    %v2399 = vunpack.c.h.b16 %v1900
    %v2400 = vunpack.c.l.b16 %v1901
    %v2401 = vunpack.c.h.b16 %v1901
    %v2402 = vunpack.c.l.b16 %v1902
    %v2403 = vunpack.c.h.b16 %v1902
    %v2404 = vunpack.c.l.b16 %v1903
    %v2405 = vunpack.c.h.b16 %v1903
    %v2406 = vunpack.c.l.b16 %v1904
    %v2407 = vunpack.c.h.b16 %v1904
    %v2408 = vunpack.c.l.b16 %v1905
    %v2409 = vunpack.c.h.b16 %v1905
    %v2410 = vunpack.c.l.b16 %v1906
    %v2411 = vunpack.c.h.b16 %v1906
    %v2412 = vunpack.c.l.b16 %v1907
    %v2413 = vunpack.c.h.b16 %v1907
    %v2414 = vunpack.c.l.b16 %v1908
    %v2415 = vunpack.c.h.b16 %v1908
    %v2416 = vunpack.c.l.b16 %v1909
    %v2417 = vunpack.c.h.b16 %v1909
    %v2418 = vunpack.c.l.b16 %v1910
    %v2419 = vunpack.c.h.b16 %v1910
    %v2420 = vunpack.c.l.b16 %v1911
    %v2421 = vunpack.c.h.b16 %v1911
    %v2422 = vunpack.c.l.b16 %v1912
    %v2423 = vunpack.c.h.b16 %v1912
    %v2424 = vunpack.c.l.b16 %v1913
    %v2425 = vunpack.c.h.b16 %v1913
    %v2426 = vunpack.c.l.b16 %v1914
    %v2427 = vunpack.c.h.b16 %v1914
    %v2428 = vunpack.c.l.b16 %v1915
    %v2429 = vunpack.c.h.b16 %v1915
    %v2430 = vunpack.c.l.b16 %v1916
    %v2431 = vunpack.c.h.b16 %v1916
    %v2432 = vunpack.c.l.b16 %v1917
    %v2433 = vunpack.c.h.b16 %v1917
    %v2434 = vunpack.c.l.b16 %v1918
    %v2435 = vunpack.c.h.b16 %v1918
    %v2436 = vunpack.c.l.b16 %v1919
    %v2437 = vunpack.c.h.b16 %v1919
    %v2438 = vunpack.c.l.b16 %v1920
    %v2439 = vunpack.c.h.b16 %v1920
    %v2440 = vunpack.c.l.b16 %v1921
    %v2441 = vunpack.c.h.b16 %v1921
    %v2442 = vunpack.c.l.b16 %v1922
    %v2443 = vunpack.c.h.b16 %v1922
    %v2444 = vunpack.c.l.b16 %v1923
    %v2445 = vunpack.c.h.b16 %v1923
    %v2446 = vunpack.c.l.b16 %v1924
    %v2447 = vunpack.c.h.b16 %v1924
    %v2448 = vunpack.c.l.b16 %v1925
    %v2449 = vunpack.c.h.b16 %v1925
    %v2450 = vunpack.c.l.b16 %v1926
    %v2451 = vunpack.c.h.b16 %v1926
    %v2452 = vunpack.c.l.b16 %v1927
    %v2453 = vunpack.c.h.b16 %v1927
    %v2454 = vunpack.c.l.b16 %v1928
    %v2455 = vunpack.c.h.b16 %v1928
    %v2456 = vunpack.c.l.b16 %v1929
    %v2457 = vunpack.c.h.b16 %v1929
    %v2458 = vunpack.c.l.b16 %v1930
    %v2459 = vunpack.c.h.b16 %v1930
    %v2460 = vunpack.c.l.b16 %v1931
    %v2461 = vunpack.c.h.b16 %v1931
    %v2462 = vunpack.c.l.b16 %v1932
    %v2463 = vunpack.c.h.b16 %v1932
    %v2464 = vunpack.c.l.b16 %v1933
    %v2465 = vunpack.c.h.b16 %v1933
    %v2466 = vunpack.c.l.b16 %v1934
    %v2467 = vunpack.c.h.b16 %v1934
    %v2468 = vunpack.c.l.b16 %v1935
    %v2469 = vunpack.c.h.b16 %v1935
    %v2470 = vunpack.c.l.b16 %v1936
    %v2471 = vunpack.c.h.b16 %v1936
    %v2472 = vunpack.c.l.b16 %v1937
    %v2473 = vunpack.c.h.b16 %v1937
    %v2474 = vunpack.c.l.b16 %v1938
    %v2475 = vunpack.c.h.b16 %v1938
    %v2476 = vunpack.c.l.b16 %v1939
    %v2477 = vunpack.c.h.b16 %v1939
    %v2478 = vunpack.c.l.b16 %v1940
    %v2479 = vunpack.c.h.b16 %v1940
    %v2480 = vunpack.c.l.b16 %v1941
    %v2481 = vunpack.c.h.b16 %v1941
    %v2482 = vunpack.c.l.b16 %v1942
    %v2483 = vunpack.c.h.b16 %v1942
    %v2484 = vunpack.c.l.b16 %v1943
    %v2485 = vunpack.c.h.b16 %v1943
    %v2486 = vunpack.c.l.b16 %v1944
    %v2487 = vunpack.c.h.b16 %v1944
    %v2488 = vunpack.c.l.b16 %v1945
    %v2489 = vunpack.c.h.b16 %v1945
    %v2490 = vunpack.c.l.b16 %v1946
    %v2491 = vunpack.c.h.b16 %v1946
    %v2492 = vunpack.c.l.b16 %v1947
    %v2493 = vunpack.c.h.b16 %v1947
    %v2494 = vunpack.c.l.b16 %v1948
    %v2495 = vunpack.c.h.b16 %v1948
    %v2496 = vunpack.c.l.b16 %v1949
    %v2497 = vunpack.c.h.b16 %v1949
    %v2498 = vunpack.c.l.b16 %v1950
    %v2499 = vunpack.c.h.b16 %v1950
    %v2500 = vunpack.c.l.b16 %v1951
    %v2501 = vunpack.c.h.b16 %v1951
    %v2502 = vunpack.c.l.b16 %v1952
    %v2503 = vunpack.c.h.b16 %v1952
    %v2504 = vunpack.c.l.b16 %v1953
    %v2505 = vunpack.c.h.b16 %v1953
    %v2506 = vunpack.c.l.b16 %v1954
    %v2507 = vunpack.c.h.b16 %v1954
    %v2508 = vunpack.c.l.b16 %v1955
    %v2509 = vunpack.c.h.b16 %v1955
    %v2510 = vunpack.c.l.b16 %v1956
    %v2511 = vunpack.c.h.b16 %v1956
    %v2512 = vunpack.c.l.b16 %v1957
    %v2513 = vunpack.c.h.b16 %v1957
    %v2514 = vunpack.c.l.b16 %v1958
    %v2515 = vunpack.c.h.b16 %v1958
    %v2516 = vunpack.c.l.b16 %v1959
    %v2517 = vunpack.c.h.b16 %v1959
    %v2518 = vunpack.c.l.b16 %v1960
    %v2519 = vunpack.c.h.b16 %v1960
    %v2520 = vunpack.c.l.b16 %v1961
    %v2521 = vunpack.c.h.b16 %v1961
    %v2522 = vunpack.c.l.b16 %v1962
    %v2523 = vunpack.c.h.b16 %v1962
    %v2524 = vunpack.c.l.b16 %v1963
    %v2525 = vunpack.c.h.b16 %v1963
    %v2526 = vunpack.c.l.b16 %v1964
    %v2527 = vunpack.c.h.b16 %v1964
    %v2528 = vunpack.c.l.b16 %v1965
    %v2529 = vunpack.c.h.b16 %v1965
    %v2530 = vunpack.c.l.b16 %v1966
    %v2531 = vunpack.c.h.b16 %v1966
    %v2532 = vunpack.c.l.b16 %v1967
    %v2533 = vunpack.c.h.b16 %v1967
    %v2534 = vunpack.c.l.b16 %v1968
    %v2535 = vunpack.c.h.b16 %v1968
    %v2536 = vunpack.c.l.b16 %v1969
    %v2537 = vunpack.c.h.b16 %v1969
    %v2538 = vunpack.c.l.b16 %v1970
    %v2539 = vunpack.c.h.b16 %v1970
    %v2540 = vunpack.c.l.b16 %v1971
    %v2541 = vunpack.c.h.b16 %v1971
    %v2542 = vunpack.c.l.b16 %v1972
    %v2543 = vunpack.c.h.b16 %v1972
    %v2544 = vunpack.c.l.b16 %v1973
    %v2545 = vunpack.c.h.b16 %v1973
    %v2546 = vunpack.c.l.b16 %v1974
    %v2547 = vunpack.c.h.b16 %v1974
    %v2548 = vunpack.c.l.b16 %v1975
    %v2549 = vunpack.c.h.b16 %v1975
    %v2550 = vunpack.c.l.b16 %v1976
    %v2551 = vunpack.c.h.b16 %v1976
    %v2552 = vunpack.c.l.b16 %v1977
    %v2553 = vunpack.c.h.b16 %v1977
    %v2554 = vunpack.c.l.b16 %v1978
    %v2555 = vunpack.c.h.b16 %v1978
    %v2556 = vunpack.c.l.b16 %v1979
    %v2557 = vunpack.c.h.b16 %v1979
    %v2558 = vunpack.c.l.b16 %v1980
    %v2559 = vunpack.c.h.b16 %v1980
    %v2560 = vunpack.c.l.b16 %v1981
    %v2561 = vunpack.c.h.b16 %v1981
    %v2562 = vunpack.c.l.b16 %v1982
    %v2563 = vunpack.c.h.b16 %v1982
    %v2564 = vunpack.c.l.b16 %v1983
    %v2565 = vunpack.c.h.b16 %v1983
    %v2566 = vunpack.c.l.b16 %v1984
    %v2567 = vunpack.c.h.b16 %v1984
    %v2568 = vunpack.c.l.b16 %v1985
    %v2569 = vunpack.c.h.b16 %v1985
    %v2570 = vunpack.c.l.b16 %v1986
    %v2571 = vunpack.c.h.b16 %v1986
    %v2572 = vunpack.c.l.b16 %v1987
    %v2573 = vunpack.c.h.b16 %v1987
    %v2574 = vunpack.c.l.b16 %v1988
    %v2575 = vunpack.c.h.b16 %v1988
    %v2576 = vunpack.c.l.b16 %v1989
    %v2577 = vunpack.c.h.b16 %v1989
    %v2578 = vunpack.c.l.b16 %v1990
    %v2579 = vunpack.c.h.b16 %v1990
    %v2580 = vunpack.c.l.b16 %v1991
    %v2581 = vunpack.c.h.b16 %v1991
    %v2582 = vunpack.c.l.b16 %v1992
    %v2583 = vunpack.c.h.b16 %v1992
    %v2584 = vunpack.c.l.b16 %v1993
    %v2585 = vunpack.c.h.b16 %v1993
    %v2586 = vunpack.c.l.b16 %v1994
    %v2587 = vunpack.c.h.b16 %v1994
    %v2588 = vunpack.c.l.b16 %v1995
    %v2589 = vunpack.c.h.b16 %v1995
    %v2590 = vunpack.c.l.b16 %v1996
    %v2591 = vunpack.c.h.b16 %v1996
    %v2592 = vunpack.c.l.b16 %v1997
    %v2593 = vunpack.c.h.b16 %v1997
    %v2594 = vunpack.c.l.b16 %v1998
    %v2595 = vunpack.c.h.b16 %v1998
    %v2596 = vunpack.c.l.b16 %v1999
    %v2597 = vunpack.c.h.b16 %v1999
    %v2598 = vpack.c.b16 %v2218, %v2214
    %v2599 = vpack.c.b16 %v2219, %v2215
    %v2600 = vpack.c.b16 %v2220, %v2216
    %v2601 = vpack.c.b16 %v2221, %v2217
    %v2602 = vpack.c.b16 %v2226, %v2222
    %v2603 = vpack.c.b16 %v2227, %v2223
    %v2604 = vpack.c.b16 %v2228, %v2224
    %v2605 = vpack.c.b16 %v2229, %v2225
    %v2606 = vpack.c.b16 %v2234, %v2230
    %v2607 = vpack.c.b16 %v2235, %v2231
    %v2608 = vpack.c.b16 %v2236, %v2232
    %v2609 = vpack.c.b16 %v2237, %v2233
    %v2610 = vpack.c.b16 %v2242, %v2238
    %v2611 = vpack.c.b16 %v2243, %v2239
    %v2612 = vpack.c.b16 %v2244, %v2240
    %v2613 = vpack.c.b16 %v2245, %v2241
    %v2614 = vpack.c.b16 %v2250, %v2246
    %v2615 = vpack.c.b16 %v2251, %v2247
    %v2616 = vpack.c.b16 %v2252, %v2248
    %v2617 = vpack.c.b16 %v2253, %v2249
    %v2618 = vpack.c.b16 %v2258, %v2254
    %v2619 = vpack.c.b16 %v2259, %v2255
    %v2620 = vpack.c.b16 %v2260, %v2256
    %v2621 = vpack.c.b16 %v2261, %v2257
    %v2622 = vpack.c.b16 %v2266, %v2262
    %v2623 = vpack.c.b16 %v2267, %v2263
    %v2624 = vpack.c.b16 %v2268, %v2264
    %v2625 = vpack.c.b16 %v2269, %v2265
    %v2626 = vpack.c.b16 %v2274, %v2270
    %v2627 = vpack.c.b16 %v2275, %v2271
    %v2628 = vpack.c.b16 %v2276, %v2272
    %v2629 = vpack.c.b16 %v2277, %v2273
    %v2630 = vpack.c.b16 %v2282, %v2278
    %v2631 = vpack.c.b16 %v2283, %v2279
    %v2632 = vpack.c.b16 %v2284, %v2280
    %v2633 = vpack.c.b16 %v2285, %v2281
    %v2634 = vpack.c.b16 %v2290, %v2286
    %v2635 = vpack.c.b16 %v2291, %v2287
    %v2636 = vpack.c.b16 %v2292, %v2288
    %v2637 = vpack.c.b16 %v2293, %v2289
    %v2638 = vpack.c.b16 %v2298, %v2294
    %v2639 = vpack.c.b16 %v2299, %v2295
    %v2640 = vpack.c.b16 %v2300, %v2296
    %v2641 = vpack.c.b16 %v2301, %v2297
    %v2642 = vpack.c.b16 %v2306, %v2302
    %v2643 = vpack.c.b16 %v2307, %v2303
    %v2644 = vpack.c.b16 %v2308, %v2304
    %v2645 = vpack.c.b16 %v2309, %v2305
    %v2646 = vpack.c.b16 %v2314, %v2310
    %v2647 = vpack.c.b16 %v2315, %v2311
    %v2648 = vpack.c.b16 %v2316, %v2312
    %v2649 = vpack.c.b16 %v2317, %v2313
    %v2650 = vpack.c.b16 %v2322, %v2318
    %v2651 = vpack.c.b16 %v2323, %v2319
    %v2652 = vpack.c.b16 %v2324, %v2320
    %v2653 = vpack.c.b16 %v2325, %v2321
    %v2654 = vpack.c.b16 %v2330, %v2326
    %v2655 = vpack.c.b16 %v2331, %v2327
    %v2656 = vpack.c.b16 %v2332, %v2328
    %v2657 = vpack.c.b16 %v2333, %v2329
    %v2658 = vpack.c.b16 %v2338, %v2334
    %v2659 = vpack.c.b16 %v2339, %v2335
    %v2660 = vpack.c.b16 %v2340, %v2336
    %v2661 = vpack.c.b16 %v2341, %v2337
    %v2662 = vpack.c.b16 %v2346, %v2342
    %v2663 = vpack.c.b16 %v2347, %v2343
    %v2664 = vpack.c.b16 %v2348, %v2344
    %v2665 = vpack.c.b16 %v2349, %v2345
    %v2666 = vpack.c.b16 %v2354, %v2350
    %v2667 = vpack.c.b16 %v2355, %v2351
    %v2668 = vpack.c.b16 %v2356, %v2352
    %v2669 = vpack.c.b16 %v2357, %v2353
    %v2670 = vpack.c.b16 %v2362, %v2358
    %v2671 = vpack.c.b16 %v2363, %v2359
    %v2672 = vpack.c.b16 %v2364, %v2360
    %v2673 = vpack.c.b16 %v2365, %v2361
    %v2674 = vpack.c.b16 %v2370, %v2366
    %v2675 = vpack.c.b16 %v2371, %v2367
    %v2676 = vpack.c.b16 %v2372, %v2368
    %v2677 = vpack.c.b16 %v2373, %v2369
    %v2678 = vpack.c.b16 %v2378, %v2374
    %v2679 = vpack.c.b16 %v2379, %v2375
    %v2680 = vpack.c.b16 %v2380, %v2376
    %v2681 = vpack.c.b16 %v2381, %v2377
    %v2682 = vpack.c.b16 %v2386, %v2382
    %v2683 = vpack.c.b16 %v2387, %v2383
    %v2684 = vpack.c.b16 %v2388, %v2384
    %v2685 = vpack.c.b16 %v2389, %v2385
    %v2686 = vpack.c.b16 %v2394, %v2390
    %v2687 = vpack.c.b16 %v2395, %v2391
    %v2688 = vpack.c.b16 %v2396, %v2392
    %v2689 = vpack.c.b16 %v2397, %v2393
    %v2690 = vpack.c.b16 %v2402, %v2398
    %v2691 = vpack.c.b16 %v2403, %v2399
    %v2692 = vpack.c.b16 %v2404, %v2400
    %v2693 = vpack.c.b16 %v2405, %v2401
    %v2694 = vpack.c.b16 %v2410, %v2406
    %v2695 = vpack.c.b16 %v2411, %v2407
    %v2696 = vpack.c.b16 %v2412, %v2408
    %v2697 = vpack.c.b16 %v2413, %v2409
    %v2698 = vpack.c.b16 %v2418, %v2414
    %v2699 = vpack.c.b16 %v2419, %v2415
    %v2700 = vpack.c.b16 %v2420, %v2416
    %v2701 = vpack.c.b16 %v2421, %v2417
    %v2702 = vpack.c.b16 %v2426, %v2422
    %v2703 = vpack.c.b16 %v2427, %v2423
    %v2704 = vpack.c.b16 %v2428, %v2424
    %v2705 = vpack.c.b16 %v2429, %v2425
    %v2706 = vpack.c.b16 %v2434, %v2430
    %v2707 = vpack.c.b16 %v2435, %v2431
    %v2708 = vpack.c.b16 %v2436, %v2432
    %v2709 = vpack.c.b16 %v2437, %v2433
    %v2710 = vpack.c.b16 %v2442, %v2438
    %v2711 = vpack.c.b16 %v2443, %v2439
    %v2712 = vpack.c.b16 %v2444, %v2440
    %v2713 = vpack.c.b16 %v2445, %v2441
    %v2714 = vpack.c.b16 %v2450, %v2446
    %v2715 = vpack.c.b16 %v2451, %v2447
    %v2716 = vpack.c.b16 %v2452, %v2448
    %v2717 = vpack.c.b16 %v2453, %v2449
    %v2718 = vpack.c.b16 %v2458, %v2454
    %v2719 = vpack.c.b16 %v2459, %v2455
    %v2720 = vpack.c.b16 %v2460, %v2456
    %v2721 = vpack.c.b16 %v2461, %v2457
    %v2722 = vpack.c.b16 %v2466, %v2462
    %v2723 = vpack.c.b16 %v2467, %v2463
    %v2724 = vpack.c.b16 %v2468, %v2464
    %v2725 = vpack.c.b16 %v2469, %v2465
    %v2726 = vpack.c.b16 %v2474, %v2470
    %v2727 = vpack.c.b16 %v2475, %v2471
    %v2728 = vpack.c.b16 %v2476, %v2472
    %v2729 = vpack.c.b16 %v2477, %v2473
    %v2730 = vpack.c.b16 %v2482, %v2478
    %v2731 = vpack.c.b16 %v2483, %v2479
    %v2732 = vpack.c.b16 %v2484, %v2480
    %v2733 = vpack.c.b16 %v2485, %v2481
    %v2734 = vpack.c.b16 %v2490, %v2486
    %v2735 = vpack.c.b16 %v2491, %v2487
    %v2736 = vpack.c.b16 %v2492, %v2488
    %v2737 = vpack.c.b16 %v2493, %v2489
    %v2738 = vpack.c.b16 %v2498, %v2494
    %v2739 = vpack.c.b16 %v2499, %v2495
    %v2740 = vpack.c.b16 %v2500, %v2496
    %v2741 = vpack.c.b16 %v2501, %v2497
    %v2742 = vpack.c.b16 %v2506, %v2502
    %v2743 = vpack.c.b16 %v2507, %v2503
    %v2744 = vpack.c.b16 %v2508, %v2504
    %v2745 = vpack.c.b16 %v2509, %v2505
    %v2746 = vpack.c.b16 %v2514, %v2510
    %v2747 = vpack.c.b16 %v2515, %v2511
    %v2748 = vpack.c.b16 %v2516, %v2512
    %v2749 = vpack.c.b16 %v2517, %v2513
    %v2750 = vpack.c.b16 %v2522, %v2518
    %v2751 = vpack.c.b16 %v2523, %v2519
    %v2752 = vpack.c.b16 %v2524, %v2520
    %v2753 = vpack.c.b16 %v2525, %v2521
    %v2754 = vpack.c.b16 %v2530, %v2526
    %v2755 = vpack.c.b16 %v2531, %v2527
    %v2756 = vpack.c.b16 %v2532, %v2528
    %v2757 = vpack.c.b16 %v2533, %v2529
    %v2758 = vpack.c.b16 %v2538, %v2534
    %v2759 = vpack.c.b16 %v2539, %v2535
    %v2760 = vpack.c.b16 %v2540, %v2536
    %v2761 = vpack.c.b16 %v2541, %v2537
    %v2762 = vpack.c.b16 %v2546, %v2542
    %v2763 = vpack.c.b16 %v2547, %v2543
    %v2764 = vpack.c.b16 %v2548, %v2544
    %v2765 = vpack.c.b16 %v2549, %v2545
    %v2766 = vpack.c.b16 %v2554, %v2550
    %v2767 = vpack.c.b16 %v2555, %v2551
    %v2768 = vpack.c.b16 %v2556, %v2552
    %v2769 = vpack.c.b16 %v2557, %v2553
    %v2770 = vpack.c.b16 %v2562, %v2558
    %v2771 = vpack.c.b16 %v2563, %v2559
    %v2772 = vpack.c.b16 %v2564, %v2560
    %v2773 = vpack.c.b16 %v2565, %v2561
    %v2774 = vpack.c.b16 %v2570, %v2566
    %v2775 = vpack.c.b16 %v2571, %v2567
    %v2776 = vpack.c.b16 %v2572, %v2568
    %v2777 = vpack.c.b16 %v2573, %v2569
    %v2778 = vpack.c.b16 %v2578, %v2574
    %v2779 = vpack.c.b16 %v2579, %v2575
    %v2780 = vpack.c.b16 %v2580, %v2576
    %v2781 = vpack.c.b16 %v2581, %v2577
    %v2782 = vpack.c.b16 %v2586, %v2582
    %v2783 = vpack.c.b16 %v2587, %v2583
    %v2784 = vpack.c.b16 %v2588, %v2584
    %v2785 = vpack.c.b16 %v2589, %v2585
    %v2786 = vpack.c.b16 %v2594, %v2590
    %v2787 = vpack.c.b16 %v2595, %v2591
    %v2788 = vpack.c.b16 %v2596, %v2592
    %v2789 = vpack.c.b16 %v2597, %v2593
    %2982 = vmatprep.subr.bf16.mxu0 %v2599
    %2983 = vmatpush1.bf16.msra.mxu0 %v2598
    %2984 = vmatprep.subr.bf16.mxu0 %v2603
    %2985 = vmatpush1.bf16.msra.mxu0 %v2602
    %2986 = vmatprep.subr.bf16.mxu0 %v2607
    %2987 = vmatpush1.bf16.msra.mxu0 %v2606
    %2988 = vmatprep.subr.bf16.mxu0 %v2611
    %2989 = vmatpush1.bf16.msra.mxu0 %v2610
    %2990 = vmatprep.subr.bf16.mxu0 %v2615
    %2991 = vmatpush1.bf16.msra.mxu0 %v2614
    %2992 = vmatprep.subr.bf16.mxu0 %v2619
    %2993 = vmatpush1.bf16.msra.mxu0 %v2618
    %2994 = vmatprep.subr.bf16.mxu0 %v2623
    %2995 = vmatpush1.bf16.msra.mxu0 %v2622
    %2996 = vmatprep.subr.bf16.mxu0 %v2627
    %2997 = vmatpush1.bf16.msra.mxu0 %v2626
    %2998 = vmatprep.subr.bf16.mxu0 %v2631
    %2999 = vmatpush1.bf16.msra.mxu0 %v2630
    %3000 = vmatprep.subr.bf16.mxu0 %v2635
    %3001 = vmatpush1.bf16.msra.mxu0 %v2634
    %3002 = vmatprep.subr.bf16.mxu0 %v2639
    %3003 = vmatpush1.bf16.msra.mxu0 %v2638
    %3004 = vmatprep.subr.bf16.mxu0 %v2643
    %3005 = vmatpush1.bf16.msra.mxu0 %v2642
    %3006 = vmatprep.subr.bf16.mxu0 %v2647
    %3007 = vmatpush1.bf16.msra.mxu0 %v2646
    %3008 = vmatprep.subr.bf16.mxu0 %v2651
    %3009 = vmatpush1.bf16.msra.mxu0 %v2650
    %3010 = vmatprep.subr.bf16.mxu0 %v2655
    %3011 = vmatpush1.bf16.msra.mxu0 %v2654
    %3012 = vmatprep.subr.bf16.mxu0 %v2659
    %3013 = vmatpush1.bf16.msra.mxu0 %v2658
    %3014 = vmatprep.mubr.bf16.mxu0 %v1713
    %3015 = vmatmul.mubr.bf16.gmra.mrb[0].mxu0 %v1712
    %v3016 = vpop.f32.mrb[0].mxu0
    %v3017 = vadd.f32 %v2005, %v3016
    %v3018 = vpop.f32.mrb[0].mxu0
    %v3019 = vadd.f32 %v2009, %v3018
    %v3020 = vpop.f32.mrb[0].mxu0
    %v3021 = vadd.f32 %v2005, %v3020
    %v3022 = vpop.f32.mrb[0].mxu0
    %v3023 = vadd.f32 %v2009, %v3022
    %3024 = vmatprep.mubr.bf16.mxu0 %v1719
    %3025 = vmatmul.mubr.bf16.gmra.mrb[0].mxu0 %v1718
    %v3026 = vpop.f32.mrb[0].mxu0
    %v3027 = vadd.f32 %v2005, %v3026
    %v3028 = vpop.f32.mrb[0].mxu0
    %v3029 = vadd.f32 %v2009, %v3028
    %v3030 = vpop.f32.mrb[0].mxu0
    %v3031 = vadd.f32 %v2005, %v3030
    %v3032 = vpop.f32.mrb[0].mxu0
    %v3033 = vadd.f32 %v2009, %v3032
    %3034 = vmatprep.mubr.bf16.mxu0 %v1725
    %3035 = vmatmul.mubr.bf16.gmra.mrb[0].mxu0 %v1724
    %v3036 = vpop.f32.mrb[0].mxu0
    %v3037 = vadd.f32 %v2005, %v3036
    %v3038 = vpop.f32.mrb[0].mxu0
    %v3039 = vadd.f32 %v2009, %v3038
    %v3040 = vpop.f32.mrb[0].mxu0
    %v3041 = vadd.f32 %v2005, %v3040
    %v3042 = vpop.f32.mrb[0].mxu0
    %v3043 = vadd.f32 %v2009, %v3042
    %3044 = vmatprep.mubr.bf16.mxu0 %v1731
    %3045 = vmatmul.mubr.bf16.gmra.mrb[0].mxu0 %v1730
    %v3046 = vpop.f32.mrb[0].mxu0
    %v3047 = vadd.f32 %v2005, %v3046
    %v3048 = vpop.f32.mrb[0].mxu0
    %v3049 = vadd.f32 %v2009, %v3048
    %v3050 = vpop.f32.mrb[0].mxu0
    %v3051 = vadd.f32 %v2005, %v3050
    %v3052 = vpop.f32.mrb[0].mxu0
    %v3053 = vadd.f32 %v2009, %v3052
    %3054 = vmatprep.mubr.bf16.mxu0 %v1737
    %3055 = vmatmul.mubr.bf16.gmra.mrb[0].mxu0 %v1736
    %v3056 = vpop.f32.mrb[0].mxu0
    %v3057 = vadd.f32 %v2005, %v3056
    %v3058 = vpop.f32.mrb[0].mxu0
    %v3059 = vadd.f32 %v2009, %v3058
    %v3060 = vpop.f32.mrb[0].mxu0
    %v3061 = vadd.f32 %v2005, %v3060
    %v3062 = vpop.f32.mrb[0].mxu0
    %v3063 = vadd.f32 %v2009, %v3062
    %3064 = vmatprep.mubr.bf16.mxu0 %v1743
    %3065 = vmatmul.mubr.bf16.gmra.mrb[0].mxu0 %v1742
    %v3066 = vpop.f32.mrb[0].mxu0
    %v3067 = vadd.f32 %v2005, %v3066
    %v3068 = vpop.f32.mrb[0].mxu0
    %v3069 = vadd.f32 %v2009, %v3068
    %v3070 = vpop.f32.mrb[0].mxu0
    %v3071 = vadd.f32 %v2005, %v3070
    %v3072 = vpop.f32.mrb[0].mxu0
    %v3073 = vadd.f32 %v2009, %v3072
    %3074 = vmatprep.mubr.bf16.mxu0 %v1749
    %3075 = vmatmul.mubr.bf16.gmra.mrb[0].mxu0 %v1748
    %v3076 = vpop.f32.mrb[0].mxu0
    %v3077 = vadd.f32 %v2005, %v3076
    %v3078 = vpop.f32.mrb[0].mxu0
    %v3079 = vadd.f32 %v2009, %v3078
    %v3080 = vpop.f32.mrb[0].mxu0
    %v3081 = vadd.f32 %v2005, %v3080
    %v3082 = vpop.f32.mrb[0].mxu0
    %v3083 = vadd.f32 %v2009, %v3082
    %3084 = vmatprep.mubr.bf16.mxu0 %v1755
    %3085 = vmatmul.mubr.bf16.gmra.mrb[0].mxu0 %v1754
    %v3086 = vpop.f32.mrb[0].mxu0
    %v3087 = vadd.f32 %v2005, %v3086
    %v3088 = vpop.f32.mrb[0].mxu0
    %v3089 = vadd.f32 %v2009, %v3088
    %v3090 = vpop.f32.mrb[0].mxu0
    %v3091 = vadd.f32 %v2005, %v3090
    %v3092 = vpop.f32.mrb[0].mxu0
    %v3093 = vadd.f32 %v2009, %v3092
    %3094 = vmatprep.mubr.bf16.mxu0 %v1761
    %3095 = vmatmul.mubr.bf16.gmra.mrb[0].mxu0 %v1760
    %v3096 = vpop.f32.mrb[0].mxu0
    %v3097 = vadd.f32 %v2005, %v3096
    %v3098 = vpop.f32.mrb[0].mxu0
    %v3099 = vadd.f32 %v2009, %v3098
    %v3100 = vpop.f32.mrb[0].mxu0
    %v3101 = vadd.f32 %v2005, %v3100
    %v3102 = vpop.f32.mrb[0].mxu0
    %v3103 = vadd.f32 %v2009, %v3102
    %3104 = vmatprep.mubr.bf16.mxu0 %v1767
    %3105 = vmatmul.mubr.bf16.gmra.mrb[0].mxu0 %v1766
    %v3106 = vpop.f32.mrb[0].mxu0
    %v3107 = vadd.f32 %v2005, %v3106
    %v3108 = vpop.f32.mrb[0].mxu0
    %v3109 = vadd.f32 %v2009, %v3108
    %v3110 = vpop.f32.mrb[0].mxu0
    %v3111 = vadd.f32 %v2005, %v3110
    %v3112 = vpop.f32.mrb[0].mxu0
    %v3113 = vadd.f32 %v2009, %v3112
    %3114 = vmatprep.mubr.bf16.mxu0 %v1773
    %3115 = vmatmul.mubr.bf16.gmra.mrb[0].mxu0 %v1772
    %v3116 = vpop.f32.mrb[0].mxu0
    %v3117 = vadd.f32 %v2005, %v3116
    %v3118 = vpop.f32.mrb[0].mxu0
    %v3119 = vadd.f32 %v2009, %v3118
    %v3120 = vpop.f32.mrb[0].mxu0
    %v3121 = vadd.f32 %v2005, %v3120
    %v3122 = vpop.f32.mrb[0].mxu0
    %v3123 = vadd.f32 %v2009, %v3122
    %3124 = vmatprep.mubr.bf16.mxu0 %v1779
    %3125 = vmatmul.mubr.bf16.gmra.mrb[0].mxu0 %v1778
    %v3126 = vpop.f32.mrb[0].mxu0
    %v3127 = vadd.f32 %v2005, %v3126
    %v3128 = vpop.f32.mrb[0].mxu0
    %v3129 = vadd.f32 %v2009, %v3128
    %v3130 = vpop.f32.mrb[0].mxu0
    %v3131 = vadd.f32 %v2005, %v3130
    %v3132 = vpop.f32.mrb[0].mxu0
    %v3133 = vadd.f32 %v2009, %v3132
    %3134 = vmatprep.mubr.bf16.mxu0 %v1785
    %3135 = vmatmul.mubr.bf16.gmra.mrb[0].mxu0 %v1784
    %v3136 = vpop.f32.mrb[0].mxu0
    %v3137 = vadd.f32 %v2005, %v3136
    %v3138 = vpop.f32.mrb[0].mxu0
    %v3139 = vadd.f32 %v2009, %v3138
    %v3140 = vpop.f32.mrb[0].mxu0
    %v3141 = vadd.f32 %v2005, %v3140
    %v3142 = vpop.f32.mrb[0].mxu0
    %v3143 = vadd.f32 %v2009, %v3142
    %3144 = vmatprep.mubr.bf16.mxu0 %v1791
    %3145 = vmatmul.mubr.bf16.gmra.mrb[0].mxu0 %v1790
    %v3146 = vpop.f32.mrb[0].mxu0
    %v3147 = vadd.f32 %v2005, %v3146
    %v3148 = vpop.f32.mrb[0].mxu0
    %v3149 = vadd.f32 %v2009, %v3148
    %v3150 = vpop.f32.mrb[0].mxu0
    %v3151 = vadd.f32 %v2005, %v3150
    %v3152 = vpop.f32.mrb[0].mxu0
    %v3153 = vadd.f32 %v2009, %v3152
    %3154 = vmatprep.mubr.bf16.mxu0 %v1797
    %3155 = vmatmul.mubr.bf16.gmra.mrb[0].mxu0 %v1796
    %v3156 = vpop.f32.mrb[0].mxu0
    %v3157 = vadd.f32 %v2005, %v3156
    %v3158 = vpop.f32.mrb[0].mxu0
    %v3159 = vadd.f32 %v2009, %v3158
    %v3160 = vpop.f32.mrb[0].mxu0
    %v3161 = vadd.f32 %v2005, %v3160
    %v3162 = vpop.f32.mrb[0].mxu0
    %v3163 = vadd.f32 %v2009, %v3162
    %3164 = vmatprep.mubr.bf16.mxu0 %v1803
    %3165 = vmatmul.mubr.bf16.gmra.mrb[0].mxu0 %v1802
    %v3166 = vpop.f32.mrb[0].mxu0
    %v3167 = vadd.f32 %v2005, %v3166
    %v3168 = vpop.f32.mrb[0].mxu0
    %v3169 = vadd.f32 %v2009, %v3168
    %v3170 = vpop.f32.mrb[0].mxu0
    %v3171 = vadd.f32 %v2005, %v3170
    %v3172 = vpop.f32.mrb[0].mxu0
    %v3173 = vadd.f32 %v2009, %v3172
    %3174 = vdwg.mxu0
    %3175 = vmatprep.subr.bf16.mxu0 %v2663
    %3176 = vmatpush1.bf16.msra.mxu0 %v2662
    %3177 = vmatprep.subr.bf16.mxu0 %v2667
    %3178 = vmatpush1.bf16.msra.mxu0 %v2666
    %3179 = vmatprep.subr.bf16.mxu0 %v2671
    %3180 = vmatpush1.bf16.msra.mxu0 %v2670
    %3181 = vmatprep.subr.bf16.mxu0 %v2675
    %3182 = vmatpush1.bf16.msra.mxu0 %v2674
    %3183 = vmatprep.subr.bf16.mxu0 %v2679
    %3184 = vmatpush1.bf16.msra.mxu0 %v2678
    %3185 = vmatprep.subr.bf16.mxu0 %v2683
    %3186 = vmatpush1.bf16.msra.mxu0 %v2682
    %3187 = vmatprep.subr.bf16.mxu0 %v2687
    %3188 = vmatpush1.bf16.msra.mxu0 %v2686
    %3189 = vmatprep.subr.bf16.mxu0 %v2691
    %3190 = vmatpush1.bf16.msra.mxu0 %v2690
    %3191 = vmatprep.subr.bf16.mxu0 %v2695
    %3192 = vmatpush1.bf16.msra.mxu0 %v2694
    %3193 = vmatprep.subr.bf16.mxu0 %v2699
    %3194 = vmatpush1.bf16.msra.mxu0 %v2698
    %3195 = vmatprep.subr.bf16.mxu0 %v2703
    %3196 = vmatpush1.bf16.msra.mxu0 %v2702
    %3197 = vmatprep.subr.bf16.mxu0 %v2707
    %3198 = vmatpush1.bf16.msra.mxu0 %v2706
    %3199 = vmatprep.subr.bf16.mxu0 %v2711
    %3200 = vmatpush1.bf16.msra.mxu0 %v2710
    %3201 = vmatprep.subr.bf16.mxu0 %v2715
    %3202 = vmatpush1.bf16.msra.mxu0 %v2714
    %3203 = vmatprep.subr.bf16.mxu0 %v2719
    %3204 = vmatpush1.bf16.msra.mxu0 %v2718
    %3205 = vmatprep.subr.bf16.mxu0 %v2723
    %3206 = vmatpush1.bf16.msra.mxu0 %v2722
    %3207 = vmatprep.mubr.bf16.mxu0 %v1715
    %3208 = vmatmul.mubr.bf16.gmra.mrb[0].mxu0 %v1714
    %v3209 = vpop.f32.mrb[0].mxu0
    %v3210 = vadd.f32 %v3017, %v3209
    %v3211 = vpop.f32.mrb[0].mxu0
    %v3212 = vadd.f32 %v3019, %v3211
    %v3213 = vpop.f32.mrb[0].mxu0
    %v3214 = vadd.f32 %v3021, %v3213
    %v3215 = vpop.f32.mrb[0].mxu0
    %v3216 = vadd.f32 %v3023, %v3215
    %3217 = vmatprep.mubr.bf16.mxu0 %v1721
    %3218 = vmatmul.mubr.bf16.gmra.mrb[0].mxu0 %v1720
    %v3219 = vpop.f32.mrb[0].mxu0
    %v3220 = vadd.f32 %v3027, %v3219
    %v3221 = vpop.f32.mrb[0].mxu0
    %v3222 = vadd.f32 %v3029, %v3221
    %v3223 = vpop.f32.mrb[0].mxu0
    %v3224 = vadd.f32 %v3031, %v3223
    %v3225 = vpop.f32.mrb[0].mxu0
    %v3226 = vadd.f32 %v3033, %v3225
    %3227 = vmatprep.mubr.bf16.mxu0 %v1727
    %3228 = vmatmul.mubr.bf16.gmra.mrb[0].mxu0 %v1726
    %v3229 = vpop.f32.mrb[0].mxu0
    %v3230 = vadd.f32 %v3037, %v3229
    %v3231 = vpop.f32.mrb[0].mxu0
    %v3232 = vadd.f32 %v3039, %v3231
    %v3233 = vpop.f32.mrb[0].mxu0
    %v3234 = vadd.f32 %v3041, %v3233
    %v3235 = vpop.f32.mrb[0].mxu0
    %v3236 = vadd.f32 %v3043, %v3235
    %3237 = vmatprep.mubr.bf16.mxu0 %v1733
    %3238 = vmatmul.mubr.bf16.gmra.mrb[0].mxu0 %v1732
    %v3239 = vpop.f32.mrb[0].mxu0
    %v3240 = vadd.f32 %v3047, %v3239
    %v3241 = vpop.f32.mrb[0].mxu0
    %v3242 = vadd.f32 %v3049, %v3241
    %v3243 = vpop.f32.mrb[0].mxu0
    %v3244 = vadd.f32 %v3051, %v3243
    %v3245 = vpop.f32.mrb[0].mxu0
    %v3246 = vadd.f32 %v3053, %v3245
    %3247 = vmatprep.mubr.bf16.mxu0 %v1739
    %3248 = vmatmul.mubr.bf16.gmra.mrb[0].mxu0 %v1738
    %v3249 = vpop.f32.mrb[0].mxu0
    %v3250 = vadd.f32 %v3057, %v3249
    %v3251 = vpop.f32.mrb[0].mxu0
    %v3252 = vadd.f32 %v3059, %v3251
    %v3253 = vpop.f32.mrb[0].mxu0
    %v3254 = vadd.f32 %v3061, %v3253
    %v3255 = vpop.f32.mrb[0].mxu0
    %v3256 = vadd.f32 %v3063, %v3255
    %3257 = vmatprep.mubr.bf16.mxu0 %v1745
    %3258 = vmatmul.mubr.bf16.gmra.mrb[0].mxu0 %v1744
    %v3259 = vpop.f32.mrb[0].mxu0
    %v3260 = vadd.f32 %v3067, %v3259
    %v3261 = vpop.f32.mrb[0].mxu0
    %v3262 = vadd.f32 %v3069, %v3261
    %v3263 = vpop.f32.mrb[0].mxu0
    %v3264 = vadd.f32 %v3071, %v3263
    %v3265 = vpop.f32.mrb[0].mxu0
    %v3266 = vadd.f32 %v3073, %v3265
    %3267 = vmatprep.mubr.bf16.mxu0 %v1751
    %3268 = vmatmul.mubr.bf16.gmra.mrb[0].mxu0 %v1750
    %v3269 = vpop.f32.mrb[0].mxu0
    %v3270 = vadd.f32 %v3077, %v3269
    %v3271 = vpop.f32.mrb[0].mxu0
    %v3272 = vadd.f32 %v3079, %v3271
    %v3273 = vpop.f32.mrb[0].mxu0
    %v3274 = vadd.f32 %v3081, %v3273
    %v3275 = vpop.f32.mrb[0].mxu0
    %v3276 = vadd.f32 %v3083, %v3275
    %3277 = vmatprep.mubr.bf16.mxu0 %v1757
    %3278 = vmatmul.mubr.bf16.gmra.mrb[0].mxu0 %v1756
    %v3279 = vpop.f32.mrb[0].mxu0
    %v3280 = vadd.f32 %v3087, %v3279
    %v3281 = vpop.f32.mrb[0].mxu0
    %v3282 = vadd.f32 %v3089, %v3281
    %v3283 = vpop.f32.mrb[0].mxu0
    %v3284 = vadd.f32 %v3091, %v3283
    %v3285 = vpop.f32.mrb[0].mxu0
    %v3286 = vadd.f32 %v3093, %v3285
    %3287 = vmatprep.mubr.bf16.mxu0 %v1763
    %3288 = vmatmul.mubr.bf16.gmra.mrb[0].mxu0 %v1762
    %v3289 = vpop.f32.mrb[0].mxu0
    %v3290 = vadd.f32 %v3097, %v3289
    %v3291 = vpop.f32.mrb[0].mxu0
    %v3292 = vadd.f32 %v3099, %v3291
    %v3293 = vpop.f32.mrb[0].mxu0
    %v3294 = vadd.f32 %v3101, %v3293
    %v3295 = vpop.f32.mrb[0].mxu0
    %v3296 = vadd.f32 %v3103, %v3295
    %3297 = vmatprep.mubr.bf16.mxu0 %v1769
    %3298 = vmatmul.mubr.bf16.gmra.mrb[0].mxu0 %v1768
    %v3299 = vpop.f32.mrb[0].mxu0
    %v3300 = vadd.f32 %v3107, %v3299
    %v3301 = vpop.f32.mrb[0].mxu0
    %v3302 = vadd.f32 %v3109, %v3301
    %v3303 = vpop.f32.mrb[0].mxu0
    %v3304 = vadd.f32 %v3111, %v3303
    %v3305 = vpop.f32.mrb[0].mxu0
    %v3306 = vadd.f32 %v3113, %v3305
    %3307 = vmatprep.mubr.bf16.mxu0 %v1775
    %3308 = vmatmul.mubr.bf16.gmra.mrb[0].mxu0 %v1774
    %v3309 = vpop.f32.mrb[0].mxu0
    %v3310 = vadd.f32 %v3117, %v3309
    %v3311 = vpop.f32.mrb[0].mxu0
    %v3312 = vadd.f32 %v3119, %v3311
    %v3313 = vpop.f32.mrb[0].mxu0
    %v3314 = vadd.f32 %v3121, %v3313
    %v3315 = vpop.f32.mrb[0].mxu0
    %v3316 = vadd.f32 %v3123, %v3315
    %3317 = vmatprep.mubr.bf16.mxu0 %v1781
    %3318 = vmatmul.mubr.bf16.gmra.mrb[0].mxu0 %v1780
    %v3319 = vpop.f32.mrb[0].mxu0
    %v3320 = vadd.f32 %v3127, %v3319
    %v3321 = vpop.f32.mrb[0].mxu0
    %v3322 = vadd.f32 %v3129, %v3321
    %v3323 = vpop.f32.mrb[0].mxu0
    %v3324 = vadd.f32 %v3131, %v3323
    %v3325 = vpop.f32.mrb[0].mxu0
    %v3326 = vadd.f32 %v3133, %v3325
    %3327 = vmatprep.mubr.bf16.mxu0 %v1787
    %3328 = vmatmul.mubr.bf16.gmra.mrb[0].mxu0 %v1786
    %v3329 = vpop.f32.mrb[0].mxu0
    %v3330 = vadd.f32 %v3137, %v3329
    %v3331 = vpop.f32.mrb[0].mxu0
    %v3332 = vadd.f32 %v3139, %v3331
    %v3333 = vpop.f32.mrb[0].mxu0
    %v3334 = vadd.f32 %v3141, %v3333
    %v3335 = vpop.f32.mrb[0].mxu0
    %v3336 = vadd.f32 %v3143, %v3335
    %3337 = vmatprep.mubr.bf16.mxu0 %v1793
    %3338 = vmatmul.mubr.bf16.gmra.mrb[0].mxu0 %v1792
    %v3339 = vpop.f32.mrb[0].mxu0
    %v3340 = vadd.f32 %v3147, %v3339
    %v3341 = vpop.f32.mrb[0].mxu0
    %v3342 = vadd.f32 %v3149, %v3341
    %v3343 = vpop.f32.mrb[0].mxu0
    %v3344 = vadd.f32 %v3151, %v3343
    %v3345 = vpop.f32.mrb[0].mxu0
    %v3346 = vadd.f32 %v3153, %v3345
    %3347 = vmatprep.mubr.bf16.mxu0 %v1799
    %3348 = vmatmul.mubr.bf16.gmra.mrb[0].mxu0 %v1798
    %v3349 = vpop.f32.mrb[0].mxu0
    %v3350 = vadd.f32 %v3157, %v3349
    %v3351 = vpop.f32.mrb[0].mxu0
    %v3352 = vadd.f32 %v3159, %v3351
    %v3353 = vpop.f32.mrb[0].mxu0
    %v3354 = vadd.f32 %v3161, %v3353
    %v3355 = vpop.f32.mrb[0].mxu0
    %v3356 = vadd.f32 %v3163, %v3355
    %3357 = vmatprep.mubr.bf16.mxu0 %v1805
    %3358 = vmatmul.mubr.bf16.gmra.mrb[0].mxu0 %v1804
    %v3359 = vpop.f32.mrb[0].mxu0
    %v3360 = vadd.f32 %v3167, %v3359
    %v3361 = vpop.f32.mrb[0].mxu0
    %v3362 = vadd.f32 %v3169, %v3361
    %v3363 = vpop.f32.mrb[0].mxu0
    %v3364 = vadd.f32 %v3171, %v3363
    %v3365 = vpop.f32.mrb[0].mxu0
    %v3366 = vadd.f32 %v3173, %v3365
    %3367 = vdwg.mxu0
    %3368 = vmatprep.subr.bf16.mxu0 %v2727
    %3369 = vmatpush1.bf16.msra.mxu0 %v2726
    %3370 = vmatprep.subr.bf16.mxu0 %v2731
    %3371 = vmatpush1.bf16.msra.mxu0 %v2730
    %3372 = vmatprep.subr.bf16.mxu0 %v2735
    %3373 = vmatpush1.bf16.msra.mxu0 %v2734
    %3374 = vmatprep.subr.bf16.mxu0 %v2739
    %3375 = vmatpush1.bf16.msra.mxu0 %v2738
    %3376 = vmatprep.subr.bf16.mxu0 %v2743
    %3377 = vmatpush1.bf16.msra.mxu0 %v2742
    %3378 = vmatprep.subr.bf16.mxu0 %v2747
    %3379 = vmatpush1.bf16.msra.mxu0 %v2746
    %3380 = vmatprep.subr.bf16.mxu0 %v2751
    %3381 = vmatpush1.bf16.msra.mxu0 %v2750
    %3382 = vmatprep.subr.bf16.mxu0 %v2755
    %3383 = vmatpush1.bf16.msra.mxu0 %v2754
    %3384 = vmatprep.subr.bf16.mxu0 %v2759
    %3385 = vmatpush1.bf16.msra.mxu0 %v2758
    %3386 = vmatprep.subr.bf16.mxu0 %v2763
    %3387 = vmatpush1.bf16.msra.mxu0 %v2762
    %3388 = vmatprep.subr.bf16.mxu0 %v2767
    %3389 = vmatpush1.bf16.msra.mxu0 %v2766
    %3390 = vmatprep.subr.bf16.mxu0 %v2771
    %3391 = vmatpush1.bf16.msra.mxu0 %v2770
    %3392 = vmatprep.subr.bf16.mxu0 %v2775
    %3393 = vmatpush1.bf16.msra.mxu0 %v2774
    %3394 = vmatprep.subr.bf16.mxu0 %v2779
    %3395 = vmatpush1.bf16.msra.mxu0 %v2778
    %3396 = vmatprep.subr.bf16.mxu0 %v2783
    %3397 = vmatpush1.bf16.msra.mxu0 %v2782
    %3398 = vmatprep.subr.bf16.mxu0 %v2787
    %3399 = vmatpush1.bf16.msra.mxu0 %v2786
    %3400 = vmatprep.mubr.bf16.mxu0 %v1717
    %3401 = vmatmul.mubr.bf16.gmra.mrb[0].mxu0 %v1716
    %v3402 = vpop.f32.mrb[0].mxu0
    %v3403 = vadd.f32 %v3210, %v3402
    %v3404 = vpop.f32.mrb[0].mxu0
    %v3405 = vadd.f32 %v3212, %v3404
    %v3406 = vpop.f32.mrb[0].mxu0
    %v3407 = vadd.f32 %v3214, %v3406
    %v3408 = vpop.f32.mrb[0].mxu0
    %v3409 = vadd.f32 %v3216, %v3408
    %3410 = vmatprep.mubr.bf16.mxu0 %v1723
    %3411 = vmatmul.mubr.bf16.gmra.mrb[0].mxu0 %v1722
    %v3412 = vpop.f32.mrb[0].mxu0
    %v3413 = vadd.f32 %v3220, %v3412
    %v3414 = vpop.f32.mrb[0].mxu0
    %v3415 = vadd.f32 %v3222, %v3414
    %v3416 = vpop.f32.mrb[0].mxu0
    %v3417 = vadd.f32 %v3224, %v3416
    %v3418 = vpop.f32.mrb[0].mxu0
    %v3419 = vadd.f32 %v3226, %v3418
    %3420 = vmatprep.mubr.bf16.mxu0 %v1729
    %3421 = vmatmul.mubr.bf16.gmra.mrb[0].mxu0 %v1728
    %v3422 = vpop.f32.mrb[0].mxu0
    %v3423 = vadd.f32 %v3230, %v3422
    %v3424 = vpop.f32.mrb[0].mxu0
    %v3425 = vadd.f32 %v3232, %v3424
    %v3426 = vpop.f32.mrb[0].mxu0
    %v3427 = vadd.f32 %v3234, %v3426
    %v3428 = vpop.f32.mrb[0].mxu0
    %v3429 = vadd.f32 %v3236, %v3428
    %3430 = vmatprep.mubr.bf16.mxu0 %v1735
    %3431 = vmatmul.mubr.bf16.gmra.mrb[0].mxu0 %v1734
    %v3432 = vpop.f32.mrb[0].mxu0
    %v3433 = vadd.f32 %v3240, %v3432
    %v3434 = vpop.f32.mrb[0].mxu0
    %v3435 = vadd.f32 %v3242, %v3434
    %v3436 = vpop.f32.mrb[0].mxu0
    %v3437 = vadd.f32 %v3244, %v3436
    %v3438 = vpop.f32.mrb[0].mxu0
    %v3439 = vadd.f32 %v3246, %v3438
    %3440 = vmatprep.mubr.bf16.mxu0 %v1741
    %3441 = vmatmul.mubr.bf16.gmra.mrb[0].mxu0 %v1740
    %v3442 = vpop.f32.mrb[0].mxu0
    %v3443 = vadd.f32 %v3250, %v3442
    %v3444 = vpop.f32.mrb[0].mxu0
    %v3445 = vadd.f32 %v3252, %v3444
    %v3446 = vpop.f32.mrb[0].mxu0
    %v3447 = vadd.f32 %v3254, %v3446
    %v3448 = vpop.f32.mrb[0].mxu0
    %v3449 = vadd.f32 %v3256, %v3448
    %3450 = vmatprep.mubr.bf16.mxu0 %v1747
    %3451 = vmatmul.mubr.bf16.gmra.mrb[0].mxu0 %v1746
    %v3452 = vpop.f32.mrb[0].mxu0
    %v3453 = vadd.f32 %v3260, %v3452
    %v3454 = vpop.f32.mrb[0].mxu0
    %v3455 = vadd.f32 %v3262, %v3454
    %v3456 = vpop.f32.mrb[0].mxu0
    %v3457 = vadd.f32 %v3264, %v3456
    %v3458 = vpop.f32.mrb[0].mxu0
    %v3459 = vadd.f32 %v3266, %v3458
    %3460 = vmatprep.mubr.bf16.mxu0 %v1753
    %3461 = vmatmul.mubr.bf16.gmra.mrb[0].mxu0 %v1752
    %v3462 = vpop.f32.mrb[0].mxu0
    %v3463 = vadd.f32 %v3270, %v3462
    %v3464 = vpop.f32.mrb[0].mxu0
    %v3465 = vadd.f32 %v3272, %v3464
    %v3466 = vpop.f32.mrb[0].mxu0
    %v3467 = vadd.f32 %v3274, %v3466
    %v3468 = vpop.f32.mrb[0].mxu0
    %v3469 = vadd.f32 %v3276, %v3468
    %3470 = vmatprep.mubr.bf16.mxu0 %v1759
    %3471 = vmatmul.mubr.bf16.gmra.mrb[0].mxu0 %v1758
    %v3472 = vpop.f32.mrb[0].mxu0
    %v3473 = vadd.f32 %v3280, %v3472
    %v3474 = vpop.f32.mrb[0].mxu0
    %v3475 = vadd.f32 %v3282, %v3474
    %v3476 = vpop.f32.mrb[0].mxu0
    %v3477 = vadd.f32 %v3284, %v3476
    %v3478 = vpop.f32.mrb[0].mxu0
    %v3479 = vadd.f32 %v3286, %v3478
    %3480 = vmatprep.mubr.bf16.mxu0 %v1765
    %3481 = vmatmul.mubr.bf16.gmra.mrb[0].mxu0 %v1764
    %v3482 = vpop.f32.mrb[0].mxu0
    %v3483 = vadd.f32 %v3290, %v3482
    %v3484 = vpop.f32.mrb[0].mxu0
    %v3485 = vadd.f32 %v3292, %v3484
    %v3486 = vpop.f32.mrb[0].mxu0
    %v3487 = vadd.f32 %v3294, %v3486
    %v3488 = vpop.f32.mrb[0].mxu0
    %v3489 = vadd.f32 %v3296, %v3488
    %3490 = vmatprep.mubr.bf16.mxu0 %v1771
    %3491 = vmatmul.mubr.bf16.gmra.mrb[0].mxu0 %v1770
    %v3492 = vpop.f32.mrb[0].mxu0
    %v3493 = vadd.f32 %v3300, %v3492
    %v3494 = vpop.f32.mrb[0].mxu0
    %v3495 = vadd.f32 %v3302, %v3494
    %v3496 = vpop.f32.mrb[0].mxu0
    %v3497 = vadd.f32 %v3304, %v3496
    %v3498 = vpop.f32.mrb[0].mxu0
    %v3499 = vadd.f32 %v3306, %v3498
    %3500 = vmatprep.mubr.bf16.mxu0 %v1777
    %3501 = vmatmul.mubr.bf16.gmra.mrb[0].mxu0 %v1776
    %v3502 = vpop.f32.mrb[0].mxu0
    %v3503 = vadd.f32 %v3310, %v3502
    %v3504 = vpop.f32.mrb[0].mxu0
    %v3505 = vadd.f32 %v3312, %v3504
    %v3506 = vpop.f32.mrb[0].mxu0
    %v3507 = vadd.f32 %v3314, %v3506
    %v3508 = vpop.f32.mrb[0].mxu0
    %v3509 = vadd.f32 %v3316, %v3508
    %3510 = vmatprep.mubr.bf16.mxu0 %v1783
    %3511 = vmatmul.mubr.bf16.gmra.mrb[0].mxu0 %v1782
    %v3512 = vpop.f32.mrb[0].mxu0
    %v3513 = vadd.f32 %v3320, %v3512
    %v3514 = vpop.f32.mrb[0].mxu0
    %v3515 = vadd.f32 %v3322, %v3514
    %v3516 = vpop.f32.mrb[0].mxu0
    %v3517 = vadd.f32 %v3324, %v3516
    %v3518 = vpop.f32.mrb[0].mxu0
    %v3519 = vadd.f32 %v3326, %v3518
    %3520 = vmatprep.mubr.bf16.mxu0 %v1789
    %3521 = vmatmul.mubr.bf16.gmra.mrb[0].mxu0 %v1788
    %v3522 = vpop.f32.mrb[0].mxu0
    %v3523 = vadd.f32 %v3330, %v3522
    %v3524 = vpop.f32.mrb[0].mxu0
    %v3525 = vadd.f32 %v3332, %v3524
    %v3526 = vpop.f32.mrb[0].mxu0
    %v3527 = vadd.f32 %v3334, %v3526
    %v3528 = vpop.f32.mrb[0].mxu0
    %v3529 = vadd.f32 %v3336, %v3528
    %3530 = vmatprep.mubr.bf16.mxu0 %v1795
    %3531 = vmatmul.mubr.bf16.gmra.mrb[0].mxu0 %v1794
    %v3532 = vpop.f32.mrb[0].mxu0
    %v3533 = vadd.f32 %v3340, %v3532
    %v3534 = vpop.f32.mrb[0].mxu0
    %v3535 = vadd.f32 %v3342, %v3534
    %v3536 = vpop.f32.mrb[0].mxu0
    %v3537 = vadd.f32 %v3344, %v3536
    %v3538 = vpop.f32.mrb[0].mxu0
    %v3539 = vadd.f32 %v3346, %v3538
    %3540 = vmatprep.mubr.bf16.mxu0 %v1801
    %3541 = vmatmul.mubr.bf16.gmra.mrb[0].mxu0 %v1800
    %v3542 = vpop.f32.mrb[0].mxu0
    %v3543 = vadd.f32 %v3350, %v3542
    %v3544 = vpop.f32.mrb[0].mxu0
    %v3545 = vadd.f32 %v3352, %v3544
    %v3546 = vpop.f32.mrb[0].mxu0
    %v3547 = vadd.f32 %v3354, %v3546
    %v3548 = vpop.f32.mrb[0].mxu0
    %v3549 = vadd.f32 %v3356, %v3548
    %3550 = vmatprep.mubr.bf16.mxu0 %v1807
    %3551 = vmatmul.mubr.bf16.gmra.mrb[0].mxu0 %v1806
    %v3552 = vpop.f32.mrb[0].mxu0
    %v3553 = vadd.f32 %v3360, %v3552
    %v3554 = vpop.f32.mrb[0].mxu0
    %v3555 = vadd.f32 %v3362, %v3554
    %v3556 = vpop.f32.mrb[0].mxu0
    %v3557 = vadd.f32 %v3364, %v3556
    %v3558 = vpop.f32.mrb[0].mxu0
    %v3559 = vadd.f32 %v3366, %v3558
    %3560 = vdwg.mxu0
    %3561 = vmatprep.subr.bf16.mxu0 %v2601
    %3562 = vmatpush1.bf16.msra.mxu0 %v2600
    %3563 = vmatprep.subr.bf16.mxu0 %v2605
    %3564 = vmatpush1.bf16.msra.mxu0 %v2604
    %3565 = vmatprep.subr.bf16.mxu0 %v2609
    %3566 = vmatpush1.bf16.msra.mxu0 %v2608
    %3567 = vmatprep.subr.bf16.mxu0 %v2613
    %3568 = vmatpush1.bf16.msra.mxu0 %v2612
    %3569 = vmatprep.subr.bf16.mxu0 %v2617
    %3570 = vmatpush1.bf16.msra.mxu0 %v2616
    %3571 = vmatprep.subr.bf16.mxu0 %v2621
    %3572 = vmatpush1.bf16.msra.mxu0 %v2620
    %3573 = vmatprep.subr.bf16.mxu0 %v2625
    %3574 = vmatpush1.bf16.msra.mxu0 %v2624
    %3575 = vmatprep.subr.bf16.mxu0 %v2629
    %3576 = vmatpush1.bf16.msra.mxu0 %v2628
    %3577 = vmatprep.subr.bf16.mxu0 %v2633
    %3578 = vmatpush1.bf16.msra.mxu0 %v2632
    %3579 = vmatprep.subr.bf16.mxu0 %v2637
    %3580 = vmatpush1.bf16.msra.mxu0 %v2636
    %3581 = vmatprep.subr.bf16.mxu0 %v2641
    %3582 = vmatpush1.bf16.msra.mxu0 %v2640
    %3583 = vmatprep.subr.bf16.mxu0 %v2645
    %3584 = vmatpush1.bf16.msra.mxu0 %v2644
    %3585 = vmatprep.subr.bf16.mxu0 %v2649
    %3586 = vmatpush1.bf16.msra.mxu0 %v2648
    %3587 = vmatprep.subr.bf16.mxu0 %v2653
    %3588 = vmatpush1.bf16.msra.mxu0 %v2652
    %3589 = vmatprep.subr.bf16.mxu0 %v2657
    %3590 = vmatpush1.bf16.msra.mxu0 %v2656
    %3591 = vmatprep.subr.bf16.mxu0 %v2661
    %3592 = vmatpush1.bf16.msra.mxu0 %v2660
    %3593 = vmatprep.mubr.bf16.mxu0 %v1713
    %3594 = vmatmul.mubr.bf16.gmra.mrb[0].mxu0 %v1712
    %v3595 = vpop.f32.mrb[0].mxu0
    %v3596 = vadd.f32 %v2013, %v3595
    %v3597 = vpop.f32.mrb[0].mxu0
    %v3598 = vadd.f32 %v2017, %v3597
    %v3599 = vpop.f32.mrb[0].mxu0
    %v3600 = vadd.f32 %v2013, %v3599
    %v3601 = vpop.f32.mrb[0].mxu0
    %v3602 = vadd.f32 %v2017, %v3601
    %3603 = vmatprep.mubr.bf16.mxu0 %v1719
    %3604 = vmatmul.mubr.bf16.gmra.mrb[0].mxu0 %v1718
    %v3605 = vpop.f32.mrb[0].mxu0
    %v3606 = vadd.f32 %v2013, %v3605
    %v3607 = vpop.f32.mrb[0].mxu0
    %v3608 = vadd.f32 %v2017, %v3607
    %v3609 = vpop.f32.mrb[0].mxu0
    %v3610 = vadd.f32 %v2013, %v3609
    %v3611 = vpop.f32.mrb[0].mxu0
    %v3612 = vadd.f32 %v2017, %v3611
    %3613 = vmatprep.mubr.bf16.mxu0 %v1725
    %3614 = vmatmul.mubr.bf16.gmra.mrb[0].mxu0 %v1724
    %v3615 = vpop.f32.mrb[0].mxu0
    %v3616 = vadd.f32 %v2013, %v3615
    %v3617 = vpop.f32.mrb[0].mxu0
    %v3618 = vadd.f32 %v2017, %v3617
    %v3619 = vpop.f32.mrb[0].mxu0
    %v3620 = vadd.f32 %v2013, %v3619
    %v3621 = vpop.f32.mrb[0].mxu0
    %v3622 = vadd.f32 %v2017, %v3621
    %3623 = vmatprep.mubr.bf16.mxu0 %v1731
    %3624 = vmatmul.mubr.bf16.gmra.mrb[0].mxu0 %v1730
    %v3625 = vpop.f32.mrb[0].mxu0
    %v3626 = vadd.f32 %v2013, %v3625
    %v3627 = vpop.f32.mrb[0].mxu0
    %v3628 = vadd.f32 %v2017, %v3627
    %v3629 = vpop.f32.mrb[0].mxu0
    %v3630 = vadd.f32 %v2013, %v3629
    %v3631 = vpop.f32.mrb[0].mxu0
    %v3632 = vadd.f32 %v2017, %v3631
    %3633 = vmatprep.mubr.bf16.mxu0 %v1737
    %3634 = vmatmul.mubr.bf16.gmra.mrb[0].mxu0 %v1736
    %v3635 = vpop.f32.mrb[0].mxu0
    %v3636 = vadd.f32 %v2013, %v3635
    %v3637 = vpop.f32.mrb[0].mxu0
    %v3638 = vadd.f32 %v2017, %v3637
    %v3639 = vpop.f32.mrb[0].mxu0
    %v3640 = vadd.f32 %v2013, %v3639
    %v3641 = vpop.f32.mrb[0].mxu0
    %v3642 = vadd.f32 %v2017, %v3641
    %3643 = vmatprep.mubr.bf16.mxu0 %v1743
    %3644 = vmatmul.mubr.bf16.gmra.mrb[0].mxu0 %v1742
    %v3645 = vpop.f32.mrb[0].mxu0
    %v3646 = vadd.f32 %v2013, %v3645
    %v3647 = vpop.f32.mrb[0].mxu0
    %v3648 = vadd.f32 %v2017, %v3647
    %v3649 = vpop.f32.mrb[0].mxu0
    %v3650 = vadd.f32 %v2013, %v3649
    %v3651 = vpop.f32.mrb[0].mxu0
    %v3652 = vadd.f32 %v2017, %v3651
    %3653 = vmatprep.mubr.bf16.mxu0 %v1749
    %3654 = vmatmul.mubr.bf16.gmra.mrb[0].mxu0 %v1748
    %v3655 = vpop.f32.mrb[0].mxu0
    %v3656 = vadd.f32 %v2013, %v3655
    %v3657 = vpop.f32.mrb[0].mxu0
    %v3658 = vadd.f32 %v2017, %v3657
    %v3659 = vpop.f32.mrb[0].mxu0
    %v3660 = vadd.f32 %v2013, %v3659
    %v3661 = vpop.f32.mrb[0].mxu0
    %v3662 = vadd.f32 %v2017, %v3661
    %3663 = vmatprep.mubr.bf16.mxu0 %v1755
    %3664 = vmatmul.mubr.bf16.gmra.mrb[0].mxu0 %v1754
    %v3665 = vpop.f32.mrb[0].mxu0
    %v3666 = vadd.f32 %v2013, %v3665
    %v3667 = vpop.f32.mrb[0].mxu0
    %v3668 = vadd.f32 %v2017, %v3667
    %v3669 = vpop.f32.mrb[0].mxu0
    %v3670 = vadd.f32 %v2013, %v3669
    %v3671 = vpop.f32.mrb[0].mxu0
    %v3672 = vadd.f32 %v2017, %v3671
    %3673 = vmatprep.mubr.bf16.mxu0 %v1761
    %3674 = vmatmul.mubr.bf16.gmra.mrb[0].mxu0 %v1760
    %v3675 = vpop.f32.mrb[0].mxu0
    %v3676 = vadd.f32 %v2013, %v3675
    %v3677 = vpop.f32.mrb[0].mxu0
    %v3678 = vadd.f32 %v2017, %v3677
    %v3679 = vpop.f32.mrb[0].mxu0
    %v3680 = vadd.f32 %v2013, %v3679
    %v3681 = vpop.f32.mrb[0].mxu0
    %v3682 = vadd.f32 %v2017, %v3681
    %3683 = vmatprep.mubr.bf16.mxu0 %v1767
    %3684 = vmatmul.mubr.bf16.gmra.mrb[0].mxu0 %v1766
    %v3685 = vpop.f32.mrb[0].mxu0
    %v3686 = vadd.f32 %v2013, %v3685
    %v3687 = vpop.f32.mrb[0].mxu0
    %v3688 = vadd.f32 %v2017, %v3687
    %v3689 = vpop.f32.mrb[0].mxu0
    %v3690 = vadd.f32 %v2013, %v3689
    %v3691 = vpop.f32.mrb[0].mxu0
    %v3692 = vadd.f32 %v2017, %v3691
    %3693 = vmatprep.mubr.bf16.mxu0 %v1773
    %3694 = vmatmul.mubr.bf16.gmra.mrb[0].mxu0 %v1772
    %v3695 = vpop.f32.mrb[0].mxu0
    %v3696 = vadd.f32 %v2013, %v3695
    %v3697 = vpop.f32.mrb[0].mxu0
    %v3698 = vadd.f32 %v2017, %v3697
    %v3699 = vpop.f32.mrb[0].mxu0
    %v3700 = vadd.f32 %v2013, %v3699
    %v3701 = vpop.f32.mrb[0].mxu0
    %v3702 = vadd.f32 %v2017, %v3701
    %3703 = vmatprep.mubr.bf16.mxu0 %v1779
    %3704 = vmatmul.mubr.bf16.gmra.mrb[0].mxu0 %v1778
    %v3705 = vpop.f32.mrb[0].mxu0
    %v3706 = vadd.f32 %v2013, %v3705
    %v3707 = vpop.f32.mrb[0].mxu0
    %v3708 = vadd.f32 %v2017, %v3707
    %v3709 = vpop.f32.mrb[0].mxu0
    %v3710 = vadd.f32 %v2013, %v3709
    %v3711 = vpop.f32.mrb[0].mxu0
    %v3712 = vadd.f32 %v2017, %v3711
    %3713 = vmatprep.mubr.bf16.mxu0 %v1785
    %3714 = vmatmul.mubr.bf16.gmra.mrb[0].mxu0 %v1784
    %v3715 = vpop.f32.mrb[0].mxu0
    %v3716 = vadd.f32 %v2013, %v3715
    %v3717 = vpop.f32.mrb[0].mxu0
    %v3718 = vadd.f32 %v2017, %v3717
    %v3719 = vpop.f32.mrb[0].mxu0
    %v3720 = vadd.f32 %v2013, %v3719
    %v3721 = vpop.f32.mrb[0].mxu0
    %v3722 = vadd.f32 %v2017, %v3721
    %3723 = vmatprep.mubr.bf16.mxu0 %v1791
    %3724 = vmatmul.mubr.bf16.gmra.mrb[0].mxu0 %v1790
    %v3725 = vpop.f32.mrb[0].mxu0
    %v3726 = vadd.f32 %v2013, %v3725
    %v3727 = vpop.f32.mrb[0].mxu0
    %v3728 = vadd.f32 %v2017, %v3727
    %v3729 = vpop.f32.mrb[0].mxu0
    %v3730 = vadd.f32 %v2013, %v3729
    %v3731 = vpop.f32.mrb[0].mxu0
    %v3732 = vadd.f32 %v2017, %v3731
    %3733 = vmatprep.mubr.bf16.mxu0 %v1797
    %3734 = vmatmul.mubr.bf16.gmra.mrb[0].mxu0 %v1796
    %v3735 = vpop.f32.mrb[0].mxu0
    %v3736 = vadd.f32 %v2013, %v3735
    %v3737 = vpop.f32.mrb[0].mxu0
    %v3738 = vadd.f32 %v2017, %v3737
    %v3739 = vpop.f32.mrb[0].mxu0
    %v3740 = vadd.f32 %v2013, %v3739
    %v3741 = vpop.f32.mrb[0].mxu0
    %v3742 = vadd.f32 %v2017, %v3741
    %3743 = vmatprep.mubr.bf16.mxu0 %v1803
    %3744 = vmatmul.mubr.bf16.gmra.mrb[0].mxu0 %v1802
    %v3745 = vpop.f32.mrb[0].mxu0
    %v3746 = vadd.f32 %v2013, %v3745
    %v3747 = vpop.f32.mrb[0].mxu0
    %v3748 = vadd.f32 %v2017, %v3747
    %v3749 = vpop.f32.mrb[0].mxu0
    %v3750 = vadd.f32 %v2013, %v3749
    %v3751 = vpop.f32.mrb[0].mxu0
    %v3752 = vadd.f32 %v2017, %v3751
    %3753 = vdwg.mxu0
    %3754 = vmatprep.subr.bf16.mxu0 %v2665
    %3755 = vmatpush1.bf16.msra.mxu0 %v2664
    %3756 = vmatprep.subr.bf16.mxu0 %v2669
    %3757 = vmatpush1.bf16.msra.mxu0 %v2668
    %3758 = vmatprep.subr.bf16.mxu0 %v2673
    %3759 = vmatpush1.bf16.msra.mxu0 %v2672
    %3760 = vmatprep.subr.bf16.mxu0 %v2677
    %3761 = vmatpush1.bf16.msra.mxu0 %v2676
    %3762 = vmatprep.subr.bf16.mxu0 %v2681
    %3763 = vmatpush1.bf16.msra.mxu0 %v2680
    %3764 = vmatprep.subr.bf16.mxu0 %v2685
    %3765 = vmatpush1.bf16.msra.mxu0 %v2684
    %3766 = vmatprep.subr.bf16.mxu0 %v2689
    %3767 = vmatpush1.bf16.msra.mxu0 %v2688
    %3768 = vmatprep.subr.bf16.mxu0 %v2693
    %3769 = vmatpush1.bf16.msra.mxu0 %v2692
    %3770 = vmatprep.subr.bf16.mxu0 %v2697
    %3771 = vmatpush1.bf16.msra.mxu0 %v2696
    %3772 = vmatprep.subr.bf16.mxu0 %v2701
    %3773 = vmatpush1.bf16.msra.mxu0 %v2700
    %3774 = vmatprep.subr.bf16.mxu0 %v2705
    %3775 = vmatpush1.bf16.msra.mxu0 %v2704
    %3776 = vmatprep.subr.bf16.mxu0 %v2709
    %3777 = vmatpush1.bf16.msra.mxu0 %v2708
    %3778 = vmatprep.subr.bf16.mxu0 %v2713
    %3779 = vmatpush1.bf16.msra.mxu0 %v2712
    %3780 = vmatprep.subr.bf16.mxu0 %v2717
    %3781 = vmatpush1.bf16.msra.mxu0 %v2716
    %3782 = vmatprep.subr.bf16.mxu0 %v2721
    %3783 = vmatpush1.bf16.msra.mxu0 %v2720
    %3784 = vmatprep.subr.bf16.mxu0 %v2725
    %3785 = vmatpush1.bf16.msra.mxu0 %v2724
    %3786 = vmatprep.mubr.bf16.mxu0 %v1715
    %3787 = vmatmul.mubr.bf16.gmra.mrb[0].mxu0 %v1714
    %v3788 = vpop.f32.mrb[0].mxu0
    %v3789 = vadd.f32 %v3596, %v3788
    %v3790 = vpop.f32.mrb[0].mxu0
    %v3791 = vadd.f32 %v3598, %v3790
    %v3792 = vpop.f32.mrb[0].mxu0
    %v3793 = vadd.f32 %v3600, %v3792
    %v3794 = vpop.f32.mrb[0].mxu0
    %v3795 = vadd.f32 %v3602, %v3794
    %3796 = vmatprep.mubr.bf16.mxu0 %v1721
    %3797 = vmatmul.mubr.bf16.gmra.mrb[0].mxu0 %v1720
    %v3798 = vpop.f32.mrb[0].mxu0
    %v3799 = vadd.f32 %v3606, %v3798
    %v3800 = vpop.f32.mrb[0].mxu0
    %v3801 = vadd.f32 %v3608, %v3800
    %v3802 = vpop.f32.mrb[0].mxu0
    %v3803 = vadd.f32 %v3610, %v3802
    %v3804 = vpop.f32.mrb[0].mxu0
    %v3805 = vadd.f32 %v3612, %v3804
    %3806 = vmatprep.mubr.bf16.mxu0 %v1727
    %3807 = vmatmul.mubr.bf16.gmra.mrb[0].mxu0 %v1726
    %v3808 = vpop.f32.mrb[0].mxu0
    %v3809 = vadd.f32 %v3616, %v3808
    %v3810 = vpop.f32.mrb[0].mxu0
    %v3811 = vadd.f32 %v3618, %v3810
    %v3812 = vpop.f32.mrb[0].mxu0
    %v3813 = vadd.f32 %v3620, %v3812
    %v3814 = vpop.f32.mrb[0].mxu0
    %v3815 = vadd.f32 %v3622, %v3814
    %3816 = vmatprep.mubr.bf16.mxu0 %v1733
    %3817 = vmatmul.mubr.bf16.gmra.mrb[0].mxu0 %v1732
    %v3818 = vpop.f32.mrb[0].mxu0
    %v3819 = vadd.f32 %v3626, %v3818
    %v3820 = vpop.f32.mrb[0].mxu0
    %v3821 = vadd.f32 %v3628, %v3820
    %v3822 = vpop.f32.mrb[0].mxu0
    %v3823 = vadd.f32 %v3630, %v3822
    %v3824 = vpop.f32.mrb[0].mxu0
    %v3825 = vadd.f32 %v3632, %v3824
    %3826 = vmatprep.mubr.bf16.mxu0 %v1739
    %3827 = vmatmul.mubr.bf16.gmra.mrb[0].mxu0 %v1738
    %v3828 = vpop.f32.mrb[0].mxu0
    %v3829 = vadd.f32 %v3636, %v3828
    %v3830 = vpop.f32.mrb[0].mxu0
    %v3831 = vadd.f32 %v3638, %v3830
    %v3832 = vpop.f32.mrb[0].mxu0
    %v3833 = vadd.f32 %v3640, %v3832
    %v3834 = vpop.f32.mrb[0].mxu0
    %v3835 = vadd.f32 %v3642, %v3834
    %3836 = vmatprep.mubr.bf16.mxu0 %v1745
    %3837 = vmatmul.mubr.bf16.gmra.mrb[0].mxu0 %v1744
    %v3838 = vpop.f32.mrb[0].mxu0
    %v3839 = vadd.f32 %v3646, %v3838
    %v3840 = vpop.f32.mrb[0].mxu0
    %v3841 = vadd.f32 %v3648, %v3840
    %v3842 = vpop.f32.mrb[0].mxu0
    %v3843 = vadd.f32 %v3650, %v3842
    %v3844 = vpop.f32.mrb[0].mxu0
    %v3845 = vadd.f32 %v3652, %v3844
    %3846 = vmatprep.mubr.bf16.mxu0 %v1751
    %3847 = vmatmul.mubr.bf16.gmra.mrb[0].mxu0 %v1750
    %v3848 = vpop.f32.mrb[0].mxu0
    %v3849 = vadd.f32 %v3656, %v3848
    %v3850 = vpop.f32.mrb[0].mxu0
    %v3851 = vadd.f32 %v3658, %v3850
    %v3852 = vpop.f32.mrb[0].mxu0
    %v3853 = vadd.f32 %v3660, %v3852
    %v3854 = vpop.f32.mrb[0].mxu0
    %v3855 = vadd.f32 %v3662, %v3854
    %3856 = vmatprep.mubr.bf16.mxu0 %v1757
    %3857 = vmatmul.mubr.bf16.gmra.mrb[0].mxu0 %v1756
    %v3858 = vpop.f32.mrb[0].mxu0
    %v3859 = vadd.f32 %v3666, %v3858
    %v3860 = vpop.f32.mrb[0].mxu0
    %v3861 = vadd.f32 %v3668, %v3860
    %v3862 = vpop.f32.mrb[0].mxu0
    %v3863 = vadd.f32 %v3670, %v3862
    %v3864 = vpop.f32.mrb[0].mxu0
    %v3865 = vadd.f32 %v3672, %v3864
    %3866 = vmatprep.mubr.bf16.mxu0 %v1763
    %3867 = vmatmul.mubr.bf16.gmra.mrb[0].mxu0 %v1762
    %v3868 = vpop.f32.mrb[0].mxu0
    %v3869 = vadd.f32 %v3676, %v3868
    %v3870 = vpop.f32.mrb[0].mxu0
    %v3871 = vadd.f32 %v3678, %v3870
    %v3872 = vpop.f32.mrb[0].mxu0
    %v3873 = vadd.f32 %v3680, %v3872
    %v3874 = vpop.f32.mrb[0].mxu0
    %v3875 = vadd.f32 %v3682, %v3874
    %3876 = vmatprep.mubr.bf16.mxu0 %v1769
    %3877 = vmatmul.mubr.bf16.gmra.mrb[0].mxu0 %v1768
    %v3878 = vpop.f32.mrb[0].mxu0
    %v3879 = vadd.f32 %v3686, %v3878
    %v3880 = vpop.f32.mrb[0].mxu0
    %v3881 = vadd.f32 %v3688, %v3880
    %v3882 = vpop.f32.mrb[0].mxu0
    %v3883 = vadd.f32 %v3690, %v3882
    %v3884 = vpop.f32.mrb[0].mxu0
    %v3885 = vadd.f32 %v3692, %v3884
    %3886 = vmatprep.mubr.bf16.mxu0 %v1775
    %3887 = vmatmul.mubr.bf16.gmra.mrb[0].mxu0 %v1774
    %v3888 = vpop.f32.mrb[0].mxu0
    %v3889 = vadd.f32 %v3696, %v3888
    %v3890 = vpop.f32.mrb[0].mxu0
    %v3891 = vadd.f32 %v3698, %v3890
    %v3892 = vpop.f32.mrb[0].mxu0
    %v3893 = vadd.f32 %v3700, %v3892
    %v3894 = vpop.f32.mrb[0].mxu0
    %v3895 = vadd.f32 %v3702, %v3894
    %3896 = vmatprep.mubr.bf16.mxu0 %v1781
    %3897 = vmatmul.mubr.bf16.gmra.mrb[0].mxu0 %v1780
    %v3898 = vpop.f32.mrb[0].mxu0
    %v3899 = vadd.f32 %v3706, %v3898
    %v3900 = vpop.f32.mrb[0].mxu0
    %v3901 = vadd.f32 %v3708, %v3900
    %v3902 = vpop.f32.mrb[0].mxu0
    %v3903 = vadd.f32 %v3710, %v3902
    %v3904 = vpop.f32.mrb[0].mxu0
    %v3905 = vadd.f32 %v3712, %v3904
    %3906 = vmatprep.mubr.bf16.mxu0 %v1787
    %3907 = vmatmul.mubr.bf16.gmra.mrb[0].mxu0 %v1786
    %v3908 = vpop.f32.mrb[0].mxu0
    %v3909 = vadd.f32 %v3716, %v3908
    %v3910 = vpop.f32.mrb[0].mxu0
    %v3911 = vadd.f32 %v3718, %v3910
    %v3912 = vpop.f32.mrb[0].mxu0
    %v3913 = vadd.f32 %v3720, %v3912
    %v3914 = vpop.f32.mrb[0].mxu0
    %v3915 = vadd.f32 %v3722, %v3914
    %3916 = vmatprep.mubr.bf16.mxu0 %v1793
    %3917 = vmatmul.mubr.bf16.gmra.mrb[0].mxu0 %v1792
    %v3918 = vpop.f32.mrb[0].mxu0
    %v3919 = vadd.f32 %v3726, %v3918
    %v3920 = vpop.f32.mrb[0].mxu0
    %v3921 = vadd.f32 %v3728, %v3920
    %v3922 = vpop.f32.mrb[0].mxu0
    %v3923 = vadd.f32 %v3730, %v3922
    %v3924 = vpop.f32.mrb[0].mxu0
    %v3925 = vadd.f32 %v3732, %v3924
    %3926 = vmatprep.mubr.bf16.mxu0 %v1799
    %3927 = vmatmul.mubr.bf16.gmra.mrb[0].mxu0 %v1798
    %v3928 = vpop.f32.mrb[0].mxu0
    %v3929 = vadd.f32 %v3736, %v3928
    %v3930 = vpop.f32.mrb[0].mxu0
    %v3931 = vadd.f32 %v3738, %v3930
    %v3932 = vpop.f32.mrb[0].mxu0
    %v3933 = vadd.f32 %v3740, %v3932
    %v3934 = vpop.f32.mrb[0].mxu0
    %v3935 = vadd.f32 %v3742, %v3934
    %3936 = vmatprep.mubr.bf16.mxu0 %v1805
    %3937 = vmatmul.mubr.bf16.gmra.mrb[0].mxu0 %v1804
    %v3938 = vpop.f32.mrb[0].mxu0
    %v3939 = vadd.f32 %v3746, %v3938
    %v3940 = vpop.f32.mrb[0].mxu0
    %v3941 = vadd.f32 %v3748, %v3940
    %v3942 = vpop.f32.mrb[0].mxu0
    %v3943 = vadd.f32 %v3750, %v3942
    %v3944 = vpop.f32.mrb[0].mxu0
    %v3945 = vadd.f32 %v3752, %v3944
    %3946 = vdwg.mxu0
    %3947 = vmatprep.subr.bf16.mxu0 %v2729
    %3948 = vmatpush1.bf16.msra.mxu0 %v2728
    %3949 = vmatprep.subr.bf16.mxu0 %v2733
    %3950 = vmatpush1.bf16.msra.mxu0 %v2732
    %3951 = vmatprep.subr.bf16.mxu0 %v2737
    %3952 = vmatpush1.bf16.msra.mxu0 %v2736
    %3953 = vmatprep.subr.bf16.mxu0 %v2741
    %3954 = vmatpush1.bf16.msra.mxu0 %v2740
    %3955 = vmatprep.subr.bf16.mxu0 %v2745
    %3956 = vmatpush1.bf16.msra.mxu0 %v2744
    %3957 = vmatprep.subr.bf16.mxu0 %v2749
    %3958 = vmatpush1.bf16.msra.mxu0 %v2748
    %3959 = vmatprep.subr.bf16.mxu0 %v2753
    %3960 = vmatpush1.bf16.msra.mxu0 %v2752
    %3961 = vmatprep.subr.bf16.mxu0 %v2757
    %3962 = vmatpush1.bf16.msra.mxu0 %v2756
    %3963 = vmatprep.subr.bf16.mxu0 %v2761
    %3964 = vmatpush1.bf16.msra.mxu0 %v2760
    %3965 = vmatprep.subr.bf16.mxu0 %v2765
    %3966 = vmatpush1.bf16.msra.mxu0 %v2764
    %3967 = vmatprep.subr.bf16.mxu0 %v2769
    %3968 = vmatpush1.bf16.msra.mxu0 %v2768
    %3969 = vmatprep.subr.bf16.mxu0 %v2773
    %3970 = vmatpush1.bf16.msra.mxu0 %v2772
    %3971 = vmatprep.subr.bf16.mxu0 %v2777
    %3972 = vmatpush1.bf16.msra.mxu0 %v2776
    %3973 = vmatprep.subr.bf16.mxu0 %v2781
    %3974 = vmatpush1.bf16.msra.mxu0 %v2780
    %3975 = vmatprep.subr.bf16.mxu0 %v2785
    %3976 = vmatpush1.bf16.msra.mxu0 %v2784
    %3977 = vmatprep.subr.bf16.mxu0 %v2789
    %3978 = vmatpush1.bf16.msra.mxu0 %v2788
    %3979 = vmatprep.mubr.bf16.mxu0 %v1717
    %3980 = vmatmul.mubr.bf16.gmra.mrb[0].mxu0 %v1716
    %v3981 = vpop.f32.mrb[0].mxu0
    %v3982 = vadd.f32 %v3789, %v3981
    %v3983 = vpop.f32.mrb[0].mxu0
    %v3984 = vadd.f32 %v3791, %v3983
    %v3985 = vpop.f32.mrb[0].mxu0
    %v3986 = vadd.f32 %v3793, %v3985
    %v3987 = vpop.f32.mrb[0].mxu0
    %v3988 = vadd.f32 %v3795, %v3987
    %3989 = vmatprep.mubr.bf16.mxu0 %v1723
    %3990 = vmatmul.mubr.bf16.gmra.mrb[0].mxu0 %v1722
    %v3991 = vpop.f32.mrb[0].mxu0
    %v3992 = vadd.f32 %v3799, %v3991
    %v3993 = vpop.f32.mrb[0].mxu0
    %v3994 = vadd.f32 %v3801, %v3993
    %v3995 = vpop.f32.mrb[0].mxu0
    %v3996 = vadd.f32 %v3803, %v3995
    %v3997 = vpop.f32.mrb[0].mxu0
    %v3998 = vadd.f32 %v3805, %v3997
    %3999 = vmatprep.mubr.bf16.mxu0 %v1729
    %4000 = vmatmul.mubr.bf16.gmra.mrb[0].mxu0 %v1728
    %v4001 = vpop.f32.mrb[0].mxu0
    %v4002 = vadd.f32 %v3809, %v4001
    %v4003 = vpop.f32.mrb[0].mxu0
    %v4004 = vadd.f32 %v3811, %v4003
    %v4005 = vpop.f32.mrb[0].mxu0
    %v4006 = vadd.f32 %v3813, %v4005
    %v4007 = vpop.f32.mrb[0].mxu0
    %v4008 = vadd.f32 %v3815, %v4007
    %4009 = vmatprep.mubr.bf16.mxu0 %v1735
    %4010 = vmatmul.mubr.bf16.gmra.mrb[0].mxu0 %v1734
    %v4011 = vpop.f32.mrb[0].mxu0
    %v4012 = vadd.f32 %v3819, %v4011
    %v4013 = vpop.f32.mrb[0].mxu0
    %v4014 = vadd.f32 %v3821, %v4013
    %v4015 = vpop.f32.mrb[0].mxu0
    %v4016 = vadd.f32 %v3823, %v4015
    %v4017 = vpop.f32.mrb[0].mxu0
    %v4018 = vadd.f32 %v3825, %v4017
    %4019 = vmatprep.mubr.bf16.mxu0 %v1741
    %4020 = vmatmul.mubr.bf16.gmra.mrb[0].mxu0 %v1740
    %v4021 = vpop.f32.mrb[0].mxu0
    %v4022 = vadd.f32 %v3829, %v4021
    %v4023 = vpop.f32.mrb[0].mxu0
    %v4024 = vadd.f32 %v3831, %v4023
    %v4025 = vpop.f32.mrb[0].mxu0
    %v4026 = vadd.f32 %v3833, %v4025
    %v4027 = vpop.f32.mrb[0].mxu0
    %v4028 = vadd.f32 %v3835, %v4027
    %4029 = vmatprep.mubr.bf16.mxu0 %v1747
    %4030 = vmatmul.mubr.bf16.gmra.mrb[0].mxu0 %v1746
    %v4031 = vpop.f32.mrb[0].mxu0
    %v4032 = vadd.f32 %v3839, %v4031
    %v4033 = vpop.f32.mrb[0].mxu0
    %v4034 = vadd.f32 %v3841, %v4033
    %v4035 = vpop.f32.mrb[0].mxu0
    %v4036 = vadd.f32 %v3843, %v4035
    %v4037 = vpop.f32.mrb[0].mxu0
    %v4038 = vadd.f32 %v3845, %v4037
    %4039 = vmatprep.mubr.bf16.mxu0 %v1753
    %4040 = vmatmul.mubr.bf16.gmra.mrb[0].mxu0 %v1752
    %v4041 = vpop.f32.mrb[0].mxu0
    %v4042 = vadd.f32 %v3849, %v4041
    %v4043 = vpop.f32.mrb[0].mxu0
    %v4044 = vadd.f32 %v3851, %v4043
    %v4045 = vpop.f32.mrb[0].mxu0
    %v4046 = vadd.f32 %v3853, %v4045
    %v4047 = vpop.f32.mrb[0].mxu0
    %v4048 = vadd.f32 %v3855, %v4047
    %4049 = vmatprep.mubr.bf16.mxu0 %v1759
    %4050 = vmatmul.mubr.bf16.gmra.mrb[0].mxu0 %v1758
    %v4051 = vpop.f32.mrb[0].mxu0
    %v4052 = vadd.f32 %v3859, %v4051
    %v4053 = vpop.f32.mrb[0].mxu0
    %v4054 = vadd.f32 %v3861, %v4053
    %v4055 = vpop.f32.mrb[0].mxu0
    %v4056 = vadd.f32 %v3863, %v4055
    %v4057 = vpop.f32.mrb[0].mxu0
    %v4058 = vadd.f32 %v3865, %v4057
    %4059 = vmatprep.mubr.bf16.mxu0 %v1765
    %4060 = vmatmul.mubr.bf16.gmra.mrb[0].mxu0 %v1764
    %v4061 = vpop.f32.mrb[0].mxu0
    %v4062 = vadd.f32 %v3869, %v4061
    %v4063 = vpop.f32.mrb[0].mxu0
    %v4064 = vadd.f32 %v3871, %v4063
    %v4065 = vpop.f32.mrb[0].mxu0
    %v4066 = vadd.f32 %v3873, %v4065
    %v4067 = vpop.f32.mrb[0].mxu0
    %v4068 = vadd.f32 %v3875, %v4067
    %4069 = vmatprep.mubr.bf16.mxu0 %v1771
    %4070 = vmatmul.mubr.bf16.gmra.mrb[0].mxu0 %v1770
    %v4071 = vpop.f32.mrb[0].mxu0
    %v4072 = vadd.f32 %v3879, %v4071
    %v4073 = vpop.f32.mrb[0].mxu0
    %v4074 = vadd.f32 %v3881, %v4073
    %v4075 = vpop.f32.mrb[0].mxu0
    %v4076 = vadd.f32 %v3883, %v4075
    %v4077 = vpop.f32.mrb[0].mxu0
    %v4078 = vadd.f32 %v3885, %v4077
    %4079 = vmatprep.mubr.bf16.mxu0 %v1777
    %4080 = vmatmul.mubr.bf16.gmra.mrb[0].mxu0 %v1776
    %v4081 = vpop.f32.mrb[0].mxu0
    %v4082 = vadd.f32 %v3889, %v4081
    %v4083 = vpop.f32.mrb[0].mxu0
    %v4084 = vadd.f32 %v3891, %v4083
    %v4085 = vpop.f32.mrb[0].mxu0
    %v4086 = vadd.f32 %v3893, %v4085
    %v4087 = vpop.f32.mrb[0].mxu0
    %v4088 = vadd.f32 %v3895, %v4087
    %4089 = vmatprep.mubr.bf16.mxu0 %v1783
    %4090 = vmatmul.mubr.bf16.gmra.mrb[0].mxu0 %v1782
    %v4091 = vpop.f32.mrb[0].mxu0
    %v4092 = vadd.f32 %v3899, %v4091
    %v4093 = vpop.f32.mrb[0].mxu0
    %v4094 = vadd.f32 %v3901, %v4093
    %v4095 = vpop.f32.mrb[0].mxu0
    %v4096 = vadd.f32 %v3903, %v4095
    %v4097 = vpop.f32.mrb[0].mxu0
    %v4098 = vadd.f32 %v3905, %v4097
    %4099 = vmatprep.mubr.bf16.mxu0 %v1789
    %4100 = vmatmul.mubr.bf16.gmra.mrb[0].mxu0 %v1788
    %v4101 = vpop.f32.mrb[0].mxu0
    %v4102 = vadd.f32 %v3909, %v4101
    %v4103 = vpop.f32.mrb[0].mxu0
    %v4104 = vadd.f32 %v3911, %v4103
    %v4105 = vpop.f32.mrb[0].mxu0
    %v4106 = vadd.f32 %v3913, %v4105
    %v4107 = vpop.f32.mrb[0].mxu0
    %v4108 = vadd.f32 %v3915, %v4107
    %4109 = vmatprep.mubr.bf16.mxu0 %v1795
    %4110 = vmatmul.mubr.bf16.gmra.mrb[0].mxu0 %v1794
    %v4111 = vpop.f32.mrb[0].mxu0
    %v4112 = vadd.f32 %v3919, %v4111
    %v4113 = vpop.f32.mrb[0].mxu0
    %v4114 = vadd.f32 %v3921, %v4113
    %v4115 = vpop.f32.mrb[0].mxu0
    %v4116 = vadd.f32 %v3923, %v4115
    %v4117 = vpop.f32.mrb[0].mxu0
    %v4118 = vadd.f32 %v3925, %v4117
    %4119 = vmatprep.mubr.bf16.mxu0 %v1801
    %4120 = vmatmul.mubr.bf16.gmra.mrb[0].mxu0 %v1800
    %v4121 = vpop.f32.mrb[0].mxu0
    %v4122 = vadd.f32 %v3929, %v4121
    %v4123 = vpop.f32.mrb[0].mxu0
    %v4124 = vadd.f32 %v3931, %v4123
    %v4125 = vpop.f32.mrb[0].mxu0
    %v4126 = vadd.f32 %v3933, %v4125
    %v4127 = vpop.f32.mrb[0].mxu0
    %v4128 = vadd.f32 %v3935, %v4127
    %4129 = vmatprep.mubr.bf16.mxu0 %v1807
    %4130 = vmatmul.mubr.bf16.gmra.mrb[0].mxu0 %v1806
    %v4131 = vpop.f32.mrb[0].mxu0
    %v4132 = vadd.f32 %v3939, %v4131
    %v4133 = vpop.f32.mrb[0].mxu0
    %v4134 = vadd.f32 %v3941, %v4133
    %v4135 = vpop.f32.mrb[0].mxu0
    %v4136 = vadd.f32 %v3943, %v4135
    %v4137 = vpop.f32.mrb[0].mxu0
    %v4138 = vadd.f32 %v3945, %v4137
    %4139 = vdwg.mxu0
    %v4140 = vmul.f32 %v3403, 0.5
    %v4141 = vmul.f32 %v3405, 0.5
    %v4142 = vmul.f32 %v3982, 0.5
    %v4143 = vmul.f32 %v3984, 0.5
    %v4144 = vmul.f32 %v3407, 0.5
    %v4145 = vmul.f32 %v3409, 0.5
    %v4146 = vmul.f32 %v3986, 0.5
    %v4147 = vmul.f32 %v3988, 0.5
    %v4148 = vmul.f32 %v3413, 0.5
    %v4149 = vmul.f32 %v3415, 0.5
    %v4150 = vmul.f32 %v3992, 0.5
    %v4151 = vmul.f32 %v3994, 0.5
    %v4152 = vmul.f32 %v3417, 0.5
    %v4153 = vmul.f32 %v3419, 0.5
    %v4154 = vmul.f32 %v3996, 0.5
    %v4155 = vmul.f32 %v3998, 0.5
    %v4156 = vmul.f32 %v3423, 0.5
    %v4157 = vmul.f32 %v3425, 0.5
    %v4158 = vmul.f32 %v4002, 0.5
    %v4159 = vmul.f32 %v4004, 0.5
    %v4160 = vmul.f32 %v3427, 0.5
    %v4161 = vmul.f32 %v3429, 0.5
    %v4162 = vmul.f32 %v4006, 0.5
    %v4163 = vmul.f32 %v4008, 0.5
    %v4164 = vmul.f32 %v3433, 0.5
    %v4165 = vmul.f32 %v3435, 0.5
    %v4166 = vmul.f32 %v4012, 0.5
    %v4167 = vmul.f32 %v4014, 0.5
    %v4168 = vmul.f32 %v3437, 0.5
    %v4169 = vmul.f32 %v3439, 0.5
    %v4170 = vmul.f32 %v4016, 0.5
    %v4171 = vmul.f32 %v4018, 0.5
    %v4172 = vmul.f32 %v3443, 0.5
    %v4173 = vmul.f32 %v3445, 0.5
    %v4174 = vmul.f32 %v4022, 0.5
    %v4175 = vmul.f32 %v4024, 0.5
    %v4176 = vmul.f32 %v3447, 0.5
    %v4177 = vmul.f32 %v3449, 0.5
    %v4178 = vmul.f32 %v4026, 0.5
    %v4179 = vmul.f32 %v4028, 0.5
    %v4180 = vmul.f32 %v3453, 0.5
    %v4181 = vmul.f32 %v3455, 0.5
    %v4182 = vmul.f32 %v4032, 0.5
    %v4183 = vmul.f32 %v4034, 0.5
    %v4184 = vmul.f32 %v3457, 0.5
    %v4185 = vmul.f32 %v3459, 0.5
    %v4186 = vmul.f32 %v4036, 0.5
    %v4187 = vmul.f32 %v4038, 0.5
    %v4188 = vmul.f32 %v3463, 0.5
    %v4189 = vmul.f32 %v3465, 0.5
    %v4190 = vmul.f32 %v4042, 0.5
    %v4191 = vmul.f32 %v4044, 0.5
    %v4192 = vmul.f32 %v3467, 0.5
    %v4193 = vmul.f32 %v3469, 0.5
    %v4194 = vmul.f32 %v4046, 0.5
    %v4195 = vmul.f32 %v4048, 0.5
    %v4196 = vmul.f32 %v3473, 0.5
    %v4197 = vmul.f32 %v3475, 0.5
    %v4198 = vmul.f32 %v4052, 0.5
    %v4199 = vmul.f32 %v4054, 0.5
    %v4200 = vmul.f32 %v3477, 0.5
    %v4201 = vmul.f32 %v3479, 0.5
    %v4202 = vmul.f32 %v4056, 0.5
    %v4203 = vmul.f32 %v4058, 0.5
    %v4204 = vmul.f32 %v3483, 0.5
    %v4205 = vmul.f32 %v3485, 0.5
    %v4206 = vmul.f32 %v4062, 0.5
    %v4207 = vmul.f32 %v4064, 0.5
    %v4208 = vmul.f32 %v3487, 0.5
    %v4209 = vmul.f32 %v3489, 0.5
    %v4210 = vmul.f32 %v4066, 0.5
    %v4211 = vmul.f32 %v4068, 0.5
    %v4212 = vmul.f32 %v3493, 0.5
    %v4213 = vmul.f32 %v3495, 0.5
    %v4214 = vmul.f32 %v4072, 0.5
    %v4215 = vmul.f32 %v4074, 0.5
    %v4216 = vmul.f32 %v3497, 0.5
    %v4217 = vmul.f32 %v3499, 0.5
    %v4218 = vmul.f32 %v4076, 0.5
    %v4219 = vmul.f32 %v4078, 0.5
    %v4220 = vmul.f32 %v3503, 0.5
    %v4221 = vmul.f32 %v3505, 0.5
    %v4222 = vmul.f32 %v4082, 0.5
    %v4223 = vmul.f32 %v4084, 0.5
    %v4224 = vmul.f32 %v3507, 0.5
    %v4225 = vmul.f32 %v3509, 0.5
    %v4226 = vmul.f32 %v4086, 0.5
    %v4227 = vmul.f32 %v4088, 0.5
    %v4228 = vmul.f32 %v3513, 0.5
    %v4229 = vmul.f32 %v3515, 0.5
    %v4230 = vmul.f32 %v4092, 0.5
    %v4231 = vmul.f32 %v4094, 0.5
    %v4232 = vmul.f32 %v3517, 0.5
    %v4233 = vmul.f32 %v3519, 0.5
    %v4234 = vmul.f32 %v4096, 0.5
    %v4235 = vmul.f32 %v4098, 0.5
    %v4236 = vmul.f32 %v3523, 0.5
    %v4237 = vmul.f32 %v3525, 0.5
    %v4238 = vmul.f32 %v4102, 0.5
    %v4239 = vmul.f32 %v4104, 0.5
    %v4240 = vmul.f32 %v3527, 0.5
    %v4241 = vmul.f32 %v3529, 0.5
    %v4242 = vmul.f32 %v4106, 0.5
    %v4243 = vmul.f32 %v4108, 0.5
    %v4244 = vmul.f32 %v3533, 0.5
    %v4245 = vmul.f32 %v3535, 0.5
    %v4246 = vmul.f32 %v4112, 0.5
    %v4247 = vmul.f32 %v4114, 0.5
    %v4248 = vmul.f32 %v3537, 0.5
    %v4249 = vmul.f32 %v3539, 0.5
    %v4250 = vmul.f32 %v4116, 0.5
    %v4251 = vmul.f32 %v4118, 0.5
    %v4252 = vmul.f32 %v3543, 0.5
    %v4253 = vmul.f32 %v3545, 0.5
    %v4254 = vmul.f32 %v4122, 0.5
    %v4255 = vmul.f32 %v4124, 0.5
    %v4256 = vmul.f32 %v3547, 0.5
    %v4257 = vmul.f32 %v3549, 0.5
    %v4258 = vmul.f32 %v4126, 0.5
    %v4259 = vmul.f32 %v4128, 0.5
    %v4260 = vmul.f32 %v3553, 0.5
    %v4261 = vmul.f32 %v3555, 0.5
    %v4262 = vmul.f32 %v4132, 0.5
    %v4263 = vmul.f32 %v4134, 0.5
    %v4264 = vmul.f32 %v3557, 0.5
    %v4265 = vmul.f32 %v3559, 0.5
    %v4266 = vmul.f32 %v4136, 0.5
    %v4267 = vmul.f32 %v4138, 0.5
    %v4268 = vtanh.pop %v4140
    %v4269 = vtanh.pop %v4141
    %v4270 = vtanh.pop %v4142
    %v4271 = vtanh.pop %v4143
    %v4272 = vtanh.pop %v4144
    %v4273 = vtanh.pop %v4145
    %v4274 = vtanh.pop %v4146
    %v4275 = vtanh.pop %v4147
    %v4276 = vtanh.pop %v4148
    %v4277 = vtanh.pop %v4149
    %v4278 = vtanh.pop %v4150
    %v4279 = vtanh.pop %v4151
    %v4280 = vtanh.pop %v4152
    %v4281 = vtanh.pop %v4153
    %v4282 = vtanh.pop %v4154
    %v4283 = vtanh.pop %v4155
    %v4284 = vtanh.pop %v4156
    %v4285 = vtanh.pop %v4157
    %v4286 = vtanh.pop %v4158
    %v4287 = vtanh.pop %v4159
    %v4288 = vtanh.pop %v4160
    %v4289 = vtanh.pop %v4161
    %v4290 = vtanh.pop %v4162
    %v4291 = vtanh.pop %v4163
    %v4292 = vtanh.pop %v4164
    %v4293 = vtanh.pop %v4165
    %v4294 = vtanh.pop %v4166
    %v4295 = vtanh.pop %v4167
    %v4296 = vtanh.pop %v4168
    %v4297 = vtanh.pop %v4169
    %v4298 = vtanh.pop %v4170
    %v4299 = vtanh.pop %v4171
    %v4300 = vtanh.pop %v4172
    %v4301 = vtanh.pop %v4173
    %v4302 = vtanh.pop %v4174
    %v4303 = vtanh.pop %v4175
    %v4304 = vtanh.pop %v4176
    %v4305 = vtanh.pop %v4177
    %v4306 = vtanh.pop %v4178
    %v4307 = vtanh.pop %v4179
    %v4308 = vtanh.pop %v4180
    %v4309 = vtanh.pop %v4181
    %v4310 = vtanh.pop %v4182
    %v4311 = vtanh.pop %v4183
    %v4312 = vtanh.pop %v4184
    %v4313 = vtanh.pop %v4185
    %v4314 = vtanh.pop %v4186
    %v4315 = vtanh.pop %v4187
    %v4316 = vtanh.pop %v4188
    %v4317 = vtanh.pop %v4189
    %v4318 = vtanh.pop %v4190
    %v4319 = vtanh.pop %v4191
    %v4320 = vtanh.pop %v4192
    %v4321 = vtanh.pop %v4193
    %v4322 = vtanh.pop %v4194
    %v4323 = vtanh.pop %v4195
    %v4324 = vtanh.pop %v4196
    %v4325 = vtanh.pop %v4197
    %v4326 = vtanh.pop %v4198
    %v4327 = vtanh.pop %v4199
    %v4328 = vtanh.pop %v4200
    %v4329 = vtanh.pop %v4201
    %v4330 = vtanh.pop %v4202
    %v4331 = vtanh.pop %v4203
    %v4332 = vtanh.pop %v4204
    %v4333 = vtanh.pop %v4205
    %v4334 = vtanh.pop %v4206
    %v4335 = vtanh.pop %v4207
    %v4336 = vtanh.pop %v4208
    %v4337 = vtanh.pop %v4209
    %v4338 = vtanh.pop %v4210
    %v4339 = vtanh.pop %v4211
    %v4340 = vtanh.pop %v4212
    %v4341 = vtanh.pop %v4213
    %v4342 = vtanh.pop %v4214
    %v4343 = vtanh.pop %v4215
    %v4344 = vtanh.pop %v4216
    %v4345 = vtanh.pop %v4217
    %v4346 = vtanh.pop %v4218
    %v4347 = vtanh.pop %v4219
    %v4348 = vtanh.pop %v4220
    %v4349 = vtanh.pop %v4221
    %v4350 = vtanh.pop %v4222
    %v4351 = vtanh.pop %v4223
    %v4352 = vtanh.pop %v4224
    %v4353 = vtanh.pop %v4225
    %v4354 = vtanh.pop %v4226
    %v4355 = vtanh.pop %v4227
    %v4356 = vtanh.pop %v4228
    %v4357 = vtanh.pop %v4229
    %v4358 = vtanh.pop %v4230
    %v4359 = vtanh.pop %v4231
    %v4360 = vtanh.pop %v4232
    %v4361 = vtanh.pop %v4233
    %v4362 = vtanh.pop %v4234
    %v4363 = vtanh.pop %v4235
    %v4364 = vtanh.pop %v4236
    %v4365 = vtanh.pop %v4237
    %v4366 = vtanh.pop %v4238
    %v4367 = vtanh.pop %v4239
    %v4368 = vtanh.pop %v4240
    %v4369 = vtanh.pop %v4241
    %v4370 = vtanh.pop %v4242
    %v4371 = vtanh.pop %v4243
    %v4372 = vtanh.pop %v4244
    %v4373 = vtanh.pop %v4245
    %v4374 = vtanh.pop %v4246
    %v4375 = vtanh.pop %v4247
    %v4376 = vtanh.pop %v4248
    %v4377 = vtanh.pop %v4249
    %v4378 = vtanh.pop %v4250
    %v4379 = vtanh.pop %v4251
    %v4380 = vtanh.pop %v4252
    %v4381 = vtanh.pop %v4253
    %v4382 = vtanh.pop %v4254
    %v4383 = vtanh.pop %v4255
    %v4384 = vtanh.pop %v4256
    %v4385 = vtanh.pop %v4257
    %v4386 = vtanh.pop %v4258
    %v4387 = vtanh.pop %v4259
    %v4388 = vtanh.pop %v4260
    %v4389 = vtanh.pop %v4261
    %v4390 = vtanh.pop %v4262
    %v4391 = vtanh.pop %v4263
    %v4392 = vtanh.pop %v4264
    %v4393 = vtanh.pop %v4265
    %v4394 = vtanh.pop %v4266
    %v4395 = vtanh.pop %v4267
    %v4396 = vmul.f32 %v4268, 0.5
    %v4397 = vmul.f32 %v4269, 0.5
    %v4398 = vmul.f32 %v4270, 0.5
    %v4399 = vmul.f32 %v4271, 0.5
    %v4400 = vmul.f32 %v4272, 0.5
    %v4401 = vmul.f32 %v4273, 0.5
    %v4402 = vmul.f32 %v4274, 0.5
    %v4403 = vmul.f32 %v4275, 0.5
    %v4404 = vmul.f32 %v4276, 0.5
    %v4405 = vmul.f32 %v4277, 0.5
    %v4406 = vmul.f32 %v4278, 0.5
    %v4407 = vmul.f32 %v4279, 0.5
    %v4408 = vmul.f32 %v4280, 0.5
    %v4409 = vmul.f32 %v4281, 0.5
    %v4410 = vmul.f32 %v4282, 0.5
    %v4411 = vmul.f32 %v4283, 0.5
    %v4412 = vmul.f32 %v4284, 0.5
    %v4413 = vmul.f32 %v4285, 0.5
    %v4414 = vmul.f32 %v4286, 0.5
    %v4415 = vmul.f32 %v4287, 0.5
    %v4416 = vmul.f32 %v4288, 0.5
    %v4417 = vmul.f32 %v4289, 0.5
    %v4418 = vmul.f32 %v4290, 0.5
    %v4419 = vmul.f32 %v4291, 0.5
    %v4420 = vmul.f32 %v4292, 0.5
    %v4421 = vmul.f32 %v4293, 0.5
    %v4422 = vmul.f32 %v4294, 0.5
    %v4423 = vmul.f32 %v4295, 0.5
    %v4424 = vmul.f32 %v4296, 0.5
    %v4425 = vmul.f32 %v4297, 0.5
    %v4426 = vmul.f32 %v4298, 0.5
    %v4427 = vmul.f32 %v4299, 0.5
    %v4428 = vmul.f32 %v4300, 0.5
    %v4429 = vmul.f32 %v4301, 0.5
    %v4430 = vmul.f32 %v4302, 0.5
    %v4431 = vmul.f32 %v4303, 0.5
    %v4432 = vmul.f32 %v4304, 0.5
    %v4433 = vmul.f32 %v4305, 0.5
    %v4434 = vmul.f32 %v4306, 0.5
    %v4435 = vmul.f32 %v4307, 0.5
    %v4436 = vmul.f32 %v4308, 0.5
    %v4437 = vmul.f32 %v4309, 0.5
    %v4438 = vmul.f32 %v4310, 0.5
    %v4439 = vmul.f32 %v4311, 0.5
    %v4440 = vmul.f32 %v4312, 0.5
    %v4441 = vmul.f32 %v4313, 0.5
    %v4442 = vmul.f32 %v4314, 0.5
    %v4443 = vmul.f32 %v4315, 0.5
    %v4444 = vmul.f32 %v4316, 0.5
    %v4445 = vmul.f32 %v4317, 0.5
    %v4446 = vmul.f32 %v4318, 0.5
    %v4447 = vmul.f32 %v4319, 0.5
    %v4448 = vmul.f32 %v4320, 0.5
    %v4449 = vmul.f32 %v4321, 0.5
    %v4450 = vmul.f32 %v4322, 0.5
    %v4451 = vmul.f32 %v4323, 0.5
    %v4452 = vmul.f32 %v4324, 0.5
    %v4453 = vmul.f32 %v4325, 0.5
    %v4454 = vmul.f32 %v4326, 0.5
    %v4455 = vmul.f32 %v4327, 0.5
    %v4456 = vmul.f32 %v4328, 0.5
    %v4457 = vmul.f32 %v4329, 0.5
    %v4458 = vmul.f32 %v4330, 0.5
    %v4459 = vmul.f32 %v4331, 0.5
    %v4460 = vmul.f32 %v4332, 0.5
    %v4461 = vmul.f32 %v4333, 0.5
    %v4462 = vmul.f32 %v4334, 0.5
    %v4463 = vmul.f32 %v4335, 0.5
    %v4464 = vmul.f32 %v4336, 0.5
    %v4465 = vmul.f32 %v4337, 0.5
    %v4466 = vmul.f32 %v4338, 0.5
    %v4467 = vmul.f32 %v4339, 0.5
    %v4468 = vmul.f32 %v4340, 0.5
    %v4469 = vmul.f32 %v4341, 0.5
    %v4470 = vmul.f32 %v4342, 0.5
    %v4471 = vmul.f32 %v4343, 0.5
    %v4472 = vmul.f32 %v4344, 0.5
    %v4473 = vmul.f32 %v4345, 0.5
    %v4474 = vmul.f32 %v4346, 0.5
    %v4475 = vmul.f32 %v4347, 0.5
    %v4476 = vmul.f32 %v4348, 0.5
    %v4477 = vmul.f32 %v4349, 0.5
    %v4478 = vmul.f32 %v4350, 0.5
    %v4479 = vmul.f32 %v4351, 0.5
    %v4480 = vmul.f32 %v4352, 0.5
    %v4481 = vmul.f32 %v4353, 0.5
    %v4482 = vmul.f32 %v4354, 0.5
    %v4483 = vmul.f32 %v4355, 0.5
    %v4484 = vmul.f32 %v4356, 0.5
    %v4485 = vmul.f32 %v4357, 0.5
    %v4486 = vmul.f32 %v4358, 0.5
    %v4487 = vmul.f32 %v4359, 0.5
    %v4488 = vmul.f32 %v4360, 0.5
    %v4489 = vmul.f32 %v4361, 0.5
    %v4490 = vmul.f32 %v4362, 0.5
    %v4491 = vmul.f32 %v4363, 0.5
    %v4492 = vmul.f32 %v4364, 0.5
    %v4493 = vmul.f32 %v4365, 0.5
    %v4494 = vmul.f32 %v4366, 0.5
    %v4495 = vmul.f32 %v4367, 0.5
    %v4496 = vmul.f32 %v4368, 0.5
    %v4497 = vmul.f32 %v4369, 0.5
    %v4498 = vmul.f32 %v4370, 0.5
    %v4499 = vmul.f32 %v4371, 0.5
    %v4500 = vmul.f32 %v4372, 0.5
    %v4501 = vmul.f32 %v4373, 0.5
    %v4502 = vmul.f32 %v4374, 0.5
    %v4503 = vmul.f32 %v4375, 0.5
    %v4504 = vmul.f32 %v4376, 0.5
    %v4505 = vmul.f32 %v4377, 0.5
    %v4506 = vmul.f32 %v4378, 0.5
    %v4507 = vmul.f32 %v4379, 0.5
    %v4508 = vmul.f32 %v4380, 0.5
    %v4509 = vmul.f32 %v4381, 0.5
    %v4510 = vmul.f32 %v4382, 0.5
    %v4511 = vmul.f32 %v4383, 0.5
    %v4512 = vmul.f32 %v4384, 0.5
    %v4513 = vmul.f32 %v4385, 0.5
    %v4514 = vmul.f32 %v4386, 0.5
    %v4515 = vmul.f32 %v4387, 0.5
    %v4516 = vmul.f32 %v4388, 0.5
    %v4517 = vmul.f32 %v4389, 0.5
    %v4518 = vmul.f32 %v4390, 0.5
    %v4519 = vmul.f32 %v4391, 0.5
    %v4520 = vmul.f32 %v4392, 0.5
    %v4521 = vmul.f32 %v4393, 0.5
    %v4522 = vmul.f32 %v4394, 0.5
    %v4523 = vmul.f32 %v4395, 0.5
    %v4524 = vadd.f32 %v4396, 0.5
    %v4525 = vadd.f32 %v4397, 0.5
    %v4526 = vadd.f32 %v4398, 0.5
    %v4527 = vadd.f32 %v4399, 0.5
    %v4528 = vadd.f32 %v4400, 0.5
    %v4529 = vadd.f32 %v4401, 0.5
    %v4530 = vadd.f32 %v4402, 0.5
    %v4531 = vadd.f32 %v4403, 0.5
    %v4532 = vadd.f32 %v4404, 0.5
    %v4533 = vadd.f32 %v4405, 0.5
    %v4534 = vadd.f32 %v4406, 0.5
    %v4535 = vadd.f32 %v4407, 0.5
    %v4536 = vadd.f32 %v4408, 0.5
    %v4537 = vadd.f32 %v4409, 0.5
    %v4538 = vadd.f32 %v4410, 0.5
    %v4539 = vadd.f32 %v4411, 0.5
    %v4540 = vadd.f32 %v4412, 0.5
    %v4541 = vadd.f32 %v4413, 0.5
    %v4542 = vadd.f32 %v4414, 0.5
    %v4543 = vadd.f32 %v4415, 0.5
    %v4544 = vadd.f32 %v4416, 0.5
    %v4545 = vadd.f32 %v4417, 0.5
    %v4546 = vadd.f32 %v4418, 0.5
    %v4547 = vadd.f32 %v4419, 0.5
    %v4548 = vadd.f32 %v4420, 0.5
    %v4549 = vadd.f32 %v4421, 0.5
    %v4550 = vadd.f32 %v4422, 0.5
    %v4551 = vadd.f32 %v4423, 0.5
    %v4552 = vadd.f32 %v4424, 0.5
    %v4553 = vadd.f32 %v4425, 0.5
    %v4554 = vadd.f32 %v4426, 0.5
    %v4555 = vadd.f32 %v4427, 0.5
    %v4556 = vadd.f32 %v4428, 0.5
    %v4557 = vadd.f32 %v4429, 0.5
    %v4558 = vadd.f32 %v4430, 0.5
    %v4559 = vadd.f32 %v4431, 0.5
    %v4560 = vadd.f32 %v4432, 0.5
    %v4561 = vadd.f32 %v4433, 0.5
    %v4562 = vadd.f32 %v4434, 0.5
    %v4563 = vadd.f32 %v4435, 0.5
    %v4564 = vadd.f32 %v4436, 0.5
    %v4565 = vadd.f32 %v4437, 0.5
    %v4566 = vadd.f32 %v4438, 0.5
    %v4567 = vadd.f32 %v4439, 0.5
    %v4568 = vadd.f32 %v4440, 0.5
    %v4569 = vadd.f32 %v4441, 0.5
    %v4570 = vadd.f32 %v4442, 0.5
    %v4571 = vadd.f32 %v4443, 0.5
    %v4572 = vadd.f32 %v4444, 0.5
    %v4573 = vadd.f32 %v4445, 0.5
    %v4574 = vadd.f32 %v4446, 0.5
    %v4575 = vadd.f32 %v4447, 0.5
    %v4576 = vadd.f32 %v4448, 0.5
    %v4577 = vadd.f32 %v4449, 0.5
    %v4578 = vadd.f32 %v4450, 0.5
    %v4579 = vadd.f32 %v4451, 0.5
    %v4580 = vadd.f32 %v4452, 0.5
    %v4581 = vadd.f32 %v4453, 0.5
    %v4582 = vadd.f32 %v4454, 0.5
    %v4583 = vadd.f32 %v4455, 0.5
    %v4584 = vadd.f32 %v4456, 0.5
    %v4585 = vadd.f32 %v4457, 0.5
    %v4586 = vadd.f32 %v4458, 0.5
    %v4587 = vadd.f32 %v4459, 0.5
    %v4588 = vadd.f32 %v4460, 0.5
    %v4589 = vadd.f32 %v4461, 0.5
    %v4590 = vadd.f32 %v4462, 0.5
    %v4591 = vadd.f32 %v4463, 0.5
    %v4592 = vadd.f32 %v4464, 0.5
    %v4593 = vadd.f32 %v4465, 0.5
    %v4594 = vadd.f32 %v4466, 0.5
    %v4595 = vadd.f32 %v4467, 0.5
    %v4596 = vadd.f32 %v4468, 0.5
    %v4597 = vadd.f32 %v4469, 0.5
    %v4598 = vadd.f32 %v4470, 0.5
    %v4599 = vadd.f32 %v4471, 0.5
    %v4600 = vadd.f32 %v4472, 0.5
    %v4601 = vadd.f32 %v4473, 0.5
    %v4602 = vadd.f32 %v4474, 0.5
    %v4603 = vadd.f32 %v4475, 0.5
    %v4604 = vadd.f32 %v4476, 0.5
    %v4605 = vadd.f32 %v4477, 0.5
    %v4606 = vadd.f32 %v4478, 0.5
    %v4607 = vadd.f32 %v4479, 0.5
    %v4608 = vadd.f32 %v4480, 0.5
    %v4609 = vadd.f32 %v4481, 0.5
    %v4610 = vadd.f32 %v4482, 0.5
    %v4611 = vadd.f32 %v4483, 0.5
    %v4612 = vadd.f32 %v4484, 0.5
    %v4613 = vadd.f32 %v4485, 0.5
    %v4614 = vadd.f32 %v4486, 0.5
    %v4615 = vadd.f32 %v4487, 0.5
    %v4616 = vadd.f32 %v4488, 0.5
    %v4617 = vadd.f32 %v4489, 0.5
    %v4618 = vadd.f32 %v4490, 0.5
    %v4619 = vadd.f32 %v4491, 0.5
    %v4620 = vadd.f32 %v4492, 0.5
    %v4621 = vadd.f32 %v4493, 0.5
    %v4622 = vadd.f32 %v4494, 0.5
    %v4623 = vadd.f32 %v4495, 0.5
    %v4624 = vadd.f32 %v4496, 0.5
    %v4625 = vadd.f32 %v4497, 0.5
    %v4626 = vadd.f32 %v4498, 0.5
    %v4627 = vadd.f32 %v4499, 0.5
    %v4628 = vadd.f32 %v4500, 0.5
    %v4629 = vadd.f32 %v4501, 0.5
    %v4630 = vadd.f32 %v4502, 0.5
    %v4631 = vadd.f32 %v4503, 0.5
    %v4632 = vadd.f32 %v4504, 0.5
    %v4633 = vadd.f32 %v4505, 0.5
    %v4634 = vadd.f32 %v4506, 0.5
    %v4635 = vadd.f32 %v4507, 0.5
    %v4636 = vadd.f32 %v4508, 0.5
    %v4637 = vadd.f32 %v4509, 0.5
    %v4638 = vadd.f32 %v4510, 0.5
    %v4639 = vadd.f32 %v4511, 0.5
    %v4640 = vadd.f32 %v4512, 0.5
    %v4641 = vadd.f32 %v4513, 0.5
    %v4642 = vadd.f32 %v4514, 0.5
    %v4643 = vadd.f32 %v4515, 0.5
    %v4644 = vadd.f32 %v4516, 0.5
    %v4645 = vadd.f32 %v4517, 0.5
    %v4646 = vadd.f32 %v4518, 0.5
    %v4647 = vadd.f32 %v4519, 0.5
    %v4648 = vadd.f32 %v4520, 0.5
    %v4649 = vadd.f32 %v4521, 0.5
    %v4650 = vadd.f32 %v4522, 0.5
    %v4651 = vadd.f32 %v4523, 0.5
    %v4652 = vpack.c.bf16 %v4528, %v4524
    %v4653 = vpack.c.bf16 %v4529, %v4525
    %v4654 = vpack.c.bf16 %v4530, %v4526
    %v4655 = vpack.c.bf16 %v4531, %v4527
    %v4656 = vpack.c.bf16 %v4536, %v4532
    %v4657 = vpack.c.bf16 %v4537, %v4533
    %v4658 = vpack.c.bf16 %v4538, %v4534
    %v4659 = vpack.c.bf16 %v4539, %v4535
    %v4660 = vpack.c.bf16 %v4544, %v4540
    %v4661 = vpack.c.bf16 %v4545, %v4541
    %v4662 = vpack.c.bf16 %v4546, %v4542
    %v4663 = vpack.c.bf16 %v4547, %v4543
    %v4664 = vpack.c.bf16 %v4552, %v4548
    %v4665 = vpack.c.bf16 %v4553, %v4549
    %v4666 = vpack.c.bf16 %v4554, %v4550
    %v4667 = vpack.c.bf16 %v4555, %v4551
    %v4668 = vpack.c.bf16 %v4560, %v4556
    %v4669 = vpack.c.bf16 %v4561, %v4557
    %v4670 = vpack.c.bf16 %v4562, %v4558
    %v4671 = vpack.c.bf16 %v4563, %v4559
    %v4672 = vpack.c.bf16 %v4568, %v4564
    %v4673 = vpack.c.bf16 %v4569, %v4565
    %v4674 = vpack.c.bf16 %v4570, %v4566
    %v4675 = vpack.c.bf16 %v4571, %v4567
    %v4676 = vpack.c.bf16 %v4576, %v4572
    %v4677 = vpack.c.bf16 %v4577, %v4573
    %v4678 = vpack.c.bf16 %v4578, %v4574
    %v4679 = vpack.c.bf16 %v4579, %v4575
    %v4680 = vpack.c.bf16 %v4584, %v4580
    %v4681 = vpack.c.bf16 %v4585, %v4581
    %v4682 = vpack.c.bf16 %v4586, %v4582
    %v4683 = vpack.c.bf16 %v4587, %v4583
    %v4684 = vpack.c.bf16 %v4592, %v4588
    %v4685 = vpack.c.bf16 %v4593, %v4589
    %v4686 = vpack.c.bf16 %v4594, %v4590
    %v4687 = vpack.c.bf16 %v4595, %v4591
    %v4688 = vpack.c.bf16 %v4600, %v4596
    %v4689 = vpack.c.bf16 %v4601, %v4597
    %v4690 = vpack.c.bf16 %v4602, %v4598
    %v4691 = vpack.c.bf16 %v4603, %v4599
    %v4692 = vpack.c.bf16 %v4608, %v4604
    %v4693 = vpack.c.bf16 %v4609, %v4605
    %v4694 = vpack.c.bf16 %v4610, %v4606
    %v4695 = vpack.c.bf16 %v4611, %v4607
    %v4696 = vpack.c.bf16 %v4616, %v4612
    %v4697 = vpack.c.bf16 %v4617, %v4613
    %v4698 = vpack.c.bf16 %v4618, %v4614
    %v4699 = vpack.c.bf16 %v4619, %v4615
    %v4700 = vpack.c.bf16 %v4624, %v4620
    %v4701 = vpack.c.bf16 %v4625, %v4621
    %v4702 = vpack.c.bf16 %v4626, %v4622
    %v4703 = vpack.c.bf16 %v4627, %v4623
    %v4704 = vpack.c.bf16 %v4632, %v4628
    %v4705 = vpack.c.bf16 %v4633, %v4629
    %v4706 = vpack.c.bf16 %v4634, %v4630
    %v4707 = vpack.c.bf16 %v4635, %v4631
    %v4708 = vpack.c.bf16 %v4640, %v4636
    %v4709 = vpack.c.bf16 %v4641, %v4637
    %v4710 = vpack.c.bf16 %v4642, %v4638
    %v4711 = vpack.c.bf16 %v4643, %v4639
    %v4712 = vpack.c.bf16 %v4648, %v4644
    %v4713 = vpack.c.bf16 %v4649, %v4645
    %v4714 = vpack.c.bf16 %v4650, %v4646
    %v4715 = vpack.c.bf16 %v4651, %v4647
    %v4716 = vld [vmem:[%s5] sm:$0xf]
    %v4717 = vld [vmem:[%s5 + $0x4] sm:$0xf]
    %v4718 = vld [vmem:[%s5 + $0x8] sm:$0xf]
    %v4719 = vld [vmem:[%s5 + $0xc] sm:$0xf]
    %v4720 = vld [vmem:[%s5 + $0x10] sm:$0xf]
    %v4721 = vld [vmem:[%s5 + $0x14] sm:$0xf]
    %v4722 = vld [vmem:[%s5 + $0x18] sm:$0xf]
    %v4723 = vld [vmem:[%s5 + $0x1c] sm:$0xf]
    %v4724 = vld [vmem:[%s5 + $0x20] sm:$0xf]
    %v4725 = vld [vmem:[%s5 + $0x24] sm:$0xf]
    %v4726 = vld [vmem:[%s5 + $0x28] sm:$0xf]
    %v4727 = vld [vmem:[%s5 + $0x2c] sm:$0xf]
    %v4728 = vld [vmem:[%s5 + $0x30] sm:$0xf]
    %v4729 = vld [vmem:[%s5 + $0x34] sm:$0xf]
    %v4730 = vld [vmem:[%s5 + $0x38] sm:$0xf]
    %v4731 = vld [vmem:[%s5 + $0x3c] sm:$0xf]
    %v4732 = vld [vmem:[%s5 + $0x40] sm:$0xf]
    %v4733 = vld [vmem:[%s5 + $0x44] sm:$0xf]
    %v4734 = vld [vmem:[%s5 + $0x48] sm:$0xf]
    %v4735 = vld [vmem:[%s5 + $0x4c] sm:$0xf]
    %v4736 = vld [vmem:[%s5 + $0x50] sm:$0xf]
    %v4737 = vld [vmem:[%s5 + $0x54] sm:$0xf]
    %v4738 = vld [vmem:[%s5 + $0x58] sm:$0xf]
    %v4739 = vld [vmem:[%s5 + $0x5c] sm:$0xf]
    %v4740 = vld [vmem:[%s5 + $0x60] sm:$0xf]
    %v4741 = vld [vmem:[%s5 + $0x64] sm:$0xf]
    %v4742 = vld [vmem:[%s5 + $0x68] sm:$0xf]
    %v4743 = vld [vmem:[%s5 + $0x6c] sm:$0xf]
    %v4744 = vld [vmem:[%s5 + $0x70] sm:$0xf]
    %v4745 = vld [vmem:[%s5 + $0x74] sm:$0xf]
    %v4746 = vld [vmem:[%s5 + $0x78] sm:$0xf]
    %v4747 = vld [vmem:[%s5 + $0x7c] sm:$0xf]
    %v4748 = vld [vmem:[%s5 + $0x80] sm:$0xf]
    %v4749 = vld [vmem:[%s5 + $0x84] sm:$0xf]
    %v4750 = vld [vmem:[%s5 + $0x88] sm:$0xf]
    %v4751 = vld [vmem:[%s5 + $0x8c] sm:$0xf]
    %v4752 = vld [vmem:[%s5 + $0x90] sm:$0xf]
    %v4753 = vld [vmem:[%s5 + $0x94] sm:$0xf]
    %v4754 = vld [vmem:[%s5 + $0x98] sm:$0xf]
    %v4755 = vld [vmem:[%s5 + $0x9c] sm:$0xf]
    %v4756 = vld [vmem:[%s5 + $0xa0] sm:$0xf]
    %v4757 = vld [vmem:[%s5 + $0xa4] sm:$0xf]
    %v4758 = vld [vmem:[%s5 + $0xa8] sm:$0xf]
    %v4759 = vld [vmem:[%s5 + $0xac] sm:$0xf]
    %v4760 = vld [vmem:[%s5 + $0xb0] sm:$0xf]
    %v4761 = vld [vmem:[%s5 + $0xb4] sm:$0xf]
    %v4762 = vld [vmem:[%s5 + $0xb8] sm:$0xf]
    %v4763 = vld [vmem:[%s5 + $0xbc] sm:$0xf]
    %v4764 = vld [vmem:[%s5 + $0xc0] sm:$0xf]
    %v4765 = vld [vmem:[%s5 + $0xc4] sm:$0xf]
    %v4766 = vld [vmem:[%s5 + $0xc8] sm:$0xf]
    %v4767 = vld [vmem:[%s5 + $0xcc] sm:$0xf]
    %v4768 = vld [vmem:[%s5 + $0xd0] sm:$0xf]
    %v4769 = vld [vmem:[%s5 + $0xd4] sm:$0xf]
    %v4770 = vld [vmem:[%s5 + $0xd8] sm:$0xf]
    %v4771 = vld [vmem:[%s5 + $0xdc] sm:$0xf]
    %v4772 = vld [vmem:[%s5 + $0xe0] sm:$0xf]
    %v4773 = vld [vmem:[%s5 + $0xe4] sm:$0xf]
    %v4774 = vld [vmem:[%s5 + $0xe8] sm:$0xf]
    %v4775 = vld [vmem:[%s5 + $0xec] sm:$0xf]
    %v4776 = vld [vmem:[%s5 + $0xf0] sm:$0xf]
    %v4777 = vld [vmem:[%s5 + $0xf4] sm:$0xf]
    %v4778 = vld [vmem:[%s5 + $0xf8] sm:$0xf]
    %v4779 = vld [vmem:[%s5 + $0xfc] sm:$0xf]
    %v4780 = vld [vmem:[%s6] sm:$0x1]
    %v4782 = vlaneseq
    %v4783 = vshrl.u32 %v4782, 7
    %v4784 = vsub.s32 0, %v4783
    %v4785 = vrot.slane %v4780, %v4784
    %v4851 = vunpack.c.l.b16 %v4716
    %v4852 = vunpack.c.l.b16 %v4717
    %v4853 = vunpack.c.l.b16 %v4718
    %v4854 = vunpack.c.l.b16 %v4719
    %v4855 = vunpack.c.l.b16 %v4720
    %v4856 = vunpack.c.l.b16 %v4721
    %v4857 = vunpack.c.l.b16 %v4722
    %v4858 = vunpack.c.l.b16 %v4723
    %v4859 = vunpack.c.l.b16 %v4724
    %v4860 = vunpack.c.l.b16 %v4725
    %v4861 = vunpack.c.l.b16 %v4726
    %v4862 = vunpack.c.l.b16 %v4727
    %v4863 = vunpack.c.l.b16 %v4728
    %v4864 = vunpack.c.l.b16 %v4729
    %v4865 = vunpack.c.l.b16 %v4730
    %v4866 = vunpack.c.l.b16 %v4731
    %v4867 = vunpack.c.l.b16 %v4732
    %v4868 = vunpack.c.l.b16 %v4733
    %v4869 = vunpack.c.l.b16 %v4734
    %v4870 = vunpack.c.l.b16 %v4735
    %v4871 = vunpack.c.l.b16 %v4736
    %v4872 = vunpack.c.l.b16 %v4737
    %v4873 = vunpack.c.l.b16 %v4738
    %v4874 = vunpack.c.l.b16 %v4739
    %v4875 = vunpack.c.l.b16 %v4740
    %v4876 = vunpack.c.l.b16 %v4741
    %v4877 = vunpack.c.l.b16 %v4742
    %v4878 = vunpack.c.l.b16 %v4743
    %v4879 = vunpack.c.l.b16 %v4744
    %v4880 = vunpack.c.l.b16 %v4745
    %v4881 = vunpack.c.l.b16 %v4746
    %v4882 = vunpack.c.l.b16 %v4747
    %v4883 = vunpack.c.l.b16 %v4748
    %v4884 = vunpack.c.l.b16 %v4749
    %v4885 = vunpack.c.l.b16 %v4750
    %v4886 = vunpack.c.l.b16 %v4751
    %v4887 = vunpack.c.l.b16 %v4752
    %v4888 = vunpack.c.l.b16 %v4753
    %v4889 = vunpack.c.l.b16 %v4754
    %v4890 = vunpack.c.l.b16 %v4755
    %v4891 = vunpack.c.l.b16 %v4756
    %v4892 = vunpack.c.l.b16 %v4757
    %v4893 = vunpack.c.l.b16 %v4758
    %v4894 = vunpack.c.l.b16 %v4759
    %v4895 = vunpack.c.l.b16 %v4760
    %v4896 = vunpack.c.l.b16 %v4761
    %v4897 = vunpack.c.l.b16 %v4762
    %v4898 = vunpack.c.l.b16 %v4763
    %v4899 = vunpack.c.l.b16 %v4764
    %v4900 = vunpack.c.l.b16 %v4765
    %v4901 = vunpack.c.l.b16 %v4766
    %v4902 = vunpack.c.l.b16 %v4767
    %v4903 = vunpack.c.l.b16 %v4768
    %v4904 = vunpack.c.l.b16 %v4769
    %v4905 = vunpack.c.l.b16 %v4770
    %v4906 = vunpack.c.l.b16 %v4771
    %v4907 = vunpack.c.l.b16 %v4772
    %v4908 = vunpack.c.l.b16 %v4773
    %v4909 = vunpack.c.l.b16 %v4774
    %v4910 = vunpack.c.l.b16 %v4775
    %v4911 = vunpack.c.l.b16 %v4776
    %v4912 = vunpack.c.l.b16 %v4777
    %v4913 = vunpack.c.l.b16 %v4778
    %v4914 = vunpack.c.l.b16 %v4779
    %v4915 = vpack.c.b16 %v4852, %v4851
    %v4916 = vpack.c.b16 %v4854, %v4853
    %v4917 = vpack.c.b16 %v4856, %v4855
    %v4918 = vpack.c.b16 %v4858, %v4857
    %v4919 = vpack.c.b16 %v4860, %v4859
    %v4920 = vpack.c.b16 %v4862, %v4861
    %v4921 = vpack.c.b16 %v4864, %v4863
    %v4922 = vpack.c.b16 %v4866, %v4865
    %v4923 = vpack.c.b16 %v4868, %v4867
    %v4924 = vpack.c.b16 %v4870, %v4869
    %v4925 = vpack.c.b16 %v4872, %v4871
    %v4926 = vpack.c.b16 %v4874, %v4873
    %v4927 = vpack.c.b16 %v4876, %v4875
    %v4928 = vpack.c.b16 %v4878, %v4877
    %v4929 = vpack.c.b16 %v4880, %v4879
    %v4930 = vpack.c.b16 %v4882, %v4881
    %v4931 = vpack.c.b16 %v4884, %v4883
    %v4932 = vpack.c.b16 %v4886, %v4885
    %v4933 = vpack.c.b16 %v4888, %v4887
    %v4934 = vpack.c.b16 %v4890, %v4889
    %v4935 = vpack.c.b16 %v4892, %v4891
    %v4936 = vpack.c.b16 %v4894, %v4893
    %v4937 = vpack.c.b16 %v4896, %v4895
    %v4938 = vpack.c.b16 %v4898, %v4897
    %v4939 = vpack.c.b16 %v4900, %v4899
    %v4940 = vpack.c.b16 %v4902, %v4901
    %v4941 = vpack.c.b16 %v4904, %v4903
    %v4942 = vpack.c.b16 %v4906, %v4905
    %v4943 = vpack.c.b16 %v4908, %v4907
    %v4944 = vpack.c.b16 %v4910, %v4909
    %v4945 = vpack.c.b16 %v4912, %v4911
    %v4946 = vpack.c.b16 %v4914, %v4913
    %4979 = vmatprep.subr.bf16.mxu0 0
    %4980 = vmatpush1.bf16.msra.mxu0 %v4915
    %4981 = vmatprep.subr.bf16.mxu0 0
    %4982 = vmatpush1.bf16.msra.mxu0 %v4916
    %4983 = vmatprep.subr.bf16.mxu0 0
    %4984 = vmatpush1.bf16.msra.mxu0 %v4917
    %4985 = vmatprep.subr.bf16.mxu0 0
    %4986 = vmatpush1.bf16.msra.mxu0 %v4918
    %4987 = vmatprep.subr.bf16.mxu0 0
    %4988 = vmatpush1.bf16.msra.mxu0 %v4919
    %4989 = vmatprep.subr.bf16.mxu0 0
    %4990 = vmatpush1.bf16.msra.mxu0 %v4920
    %4991 = vmatprep.subr.bf16.mxu0 0
    %4992 = vmatpush1.bf16.msra.mxu0 %v4921
    %4993 = vmatprep.subr.bf16.mxu0 0
    %4994 = vmatpush1.bf16.msra.mxu0 %v4922
    %4995 = vmatprep.subr.bf16.mxu0 0
    %4996 = vmatpush1.bf16.msra.mxu0 %v4923
    %4997 = vmatprep.subr.bf16.mxu0 0
    %4998 = vmatpush1.bf16.msra.mxu0 %v4924
    %4999 = vmatprep.subr.bf16.mxu0 0
    %5000 = vmatpush1.bf16.msra.mxu0 %v4925
    %5001 = vmatprep.subr.bf16.mxu0 0
    %5002 = vmatpush1.bf16.msra.mxu0 %v4926
    %5003 = vmatprep.subr.bf16.mxu0 0
    %5004 = vmatpush1.bf16.msra.mxu0 %v4927
    %5005 = vmatprep.subr.bf16.mxu0 0
    %5006 = vmatpush1.bf16.msra.mxu0 %v4928
    %5007 = vmatprep.subr.bf16.mxu0 0
    %5008 = vmatpush1.bf16.msra.mxu0 %v4929
    %5009 = vmatprep.subr.bf16.mxu0 0
    %5010 = vmatpush1.bf16.msra.mxu0 %v4930
    %5011 = vmatprep.mubr.bf16.mxu0 %v4653
    %5012 = vmatmul.mubr.bf16.gmra.mrb[0].mxu0 %v4652
    %v5013 = vpop.f32.mrb[0].mxu0
    %v5014 = vadd.f32 %v4785, %v5013
    %v5015 = vpop.f32.mrb[0].mxu0
    %v5016 = vpop.f32.mrb[0].mxu0
    %v5017 = vadd.f32 %v4785, %v5016
    %v5018 = vpop.f32.mrb[0].mxu0
    %5019 = vmatprep.mubr.bf16.mxu0 %v4657
    %5020 = vmatmul.mubr.bf16.gmra.mrb[0].mxu0 %v4656
    %v5021 = vpop.f32.mrb[0].mxu0
    %v5022 = vadd.f32 %v4785, %v5021
    %v5023 = vpop.f32.mrb[0].mxu0
    %v5024 = vpop.f32.mrb[0].mxu0
    %v5025 = vadd.f32 %v4785, %v5024
    %v5026 = vpop.f32.mrb[0].mxu0
    %5027 = vmatprep.mubr.bf16.mxu0 %v4661
    %5028 = vmatmul.mubr.bf16.gmra.mrb[0].mxu0 %v4660
    %v5029 = vpop.f32.mrb[0].mxu0
    %v5030 = vadd.f32 %v4785, %v5029
    %v5031 = vpop.f32.mrb[0].mxu0
    %v5032 = vpop.f32.mrb[0].mxu0
    %v5033 = vadd.f32 %v4785, %v5032
    %v5034 = vpop.f32.mrb[0].mxu0
    %5035 = vmatprep.mubr.bf16.mxu0 %v4665
    %5036 = vmatmul.mubr.bf16.gmra.mrb[0].mxu0 %v4664
    %v5037 = vpop.f32.mrb[0].mxu0
    %v5038 = vadd.f32 %v4785, %v5037
    %v5039 = vpop.f32.mrb[0].mxu0
    %v5040 = vpop.f32.mrb[0].mxu0
    %v5041 = vadd.f32 %v4785, %v5040
    %v5042 = vpop.f32.mrb[0].mxu0
    %5043 = vmatprep.mubr.bf16.mxu0 %v4669
    %5044 = vmatmul.mubr.bf16.gmra.mrb[0].mxu0 %v4668
    %v5045 = vpop.f32.mrb[0].mxu0
    %v5046 = vadd.f32 %v4785, %v5045
    %v5047 = vpop.f32.mrb[0].mxu0
    %v5048 = vpop.f32.mrb[0].mxu0
    %v5049 = vadd.f32 %v4785, %v5048
    %v5050 = vpop.f32.mrb[0].mxu0
    %5051 = vmatprep.mubr.bf16.mxu0 %v4673
    %5052 = vmatmul.mubr.bf16.gmra.mrb[0].mxu0 %v4672
    %v5053 = vpop.f32.mrb[0].mxu0
    %v5054 = vadd.f32 %v4785, %v5053
    %v5055 = vpop.f32.mrb[0].mxu0
    %v5056 = vpop.f32.mrb[0].mxu0
    %v5057 = vadd.f32 %v4785, %v5056
    %v5058 = vpop.f32.mrb[0].mxu0
    %5059 = vmatprep.mubr.bf16.mxu0 %v4677
    %5060 = vmatmul.mubr.bf16.gmra.mrb[0].mxu0 %v4676
    %v5061 = vpop.f32.mrb[0].mxu0
    %v5062 = vadd.f32 %v4785, %v5061
    %v5063 = vpop.f32.mrb[0].mxu0
    %v5064 = vpop.f32.mrb[0].mxu0
    %v5065 = vadd.f32 %v4785, %v5064
    %v5066 = vpop.f32.mrb[0].mxu0
    %5067 = vmatprep.mubr.bf16.mxu0 %v4681
    %5068 = vmatmul.mubr.bf16.gmra.mrb[0].mxu0 %v4680
    %v5069 = vpop.f32.mrb[0].mxu0
    %v5070 = vadd.f32 %v4785, %v5069
    %v5071 = vpop.f32.mrb[0].mxu0
    %v5072 = vpop.f32.mrb[0].mxu0
    %v5073 = vadd.f32 %v4785, %v5072
    %v5074 = vpop.f32.mrb[0].mxu0
    %5075 = vmatprep.mubr.bf16.mxu0 %v4685
    %5076 = vmatmul.mubr.bf16.gmra.mrb[0].mxu0 %v4684
    %v5077 = vpop.f32.mrb[0].mxu0
    %v5078 = vadd.f32 %v4785, %v5077
    %v5079 = vpop.f32.mrb[0].mxu0
    %v5080 = vpop.f32.mrb[0].mxu0
    %v5081 = vadd.f32 %v4785, %v5080
    %v5082 = vpop.f32.mrb[0].mxu0
    %5083 = vmatprep.mubr.bf16.mxu0 %v4689
    %5084 = vmatmul.mubr.bf16.gmra.mrb[0].mxu0 %v4688
    %v5085 = vpop.f32.mrb[0].mxu0
    %v5086 = vadd.f32 %v4785, %v5085
    %v5087 = vpop.f32.mrb[0].mxu0
    %v5088 = vpop.f32.mrb[0].mxu0
    %v5089 = vadd.f32 %v4785, %v5088
    %v5090 = vpop.f32.mrb[0].mxu0
    %5091 = vmatprep.mubr.bf16.mxu0 %v4693
    %5092 = vmatmul.mubr.bf16.gmra.mrb[0].mxu0 %v4692
    %v5093 = vpop.f32.mrb[0].mxu0
    %v5094 = vadd.f32 %v4785, %v5093
    %v5095 = vpop.f32.mrb[0].mxu0
    %v5096 = vpop.f32.mrb[0].mxu0
    %v5097 = vadd.f32 %v4785, %v5096
    %v5098 = vpop.f32.mrb[0].mxu0
    %5099 = vmatprep.mubr.bf16.mxu0 %v4697
    %5100 = vmatmul.mubr.bf16.gmra.mrb[0].mxu0 %v4696
    %v5101 = vpop.f32.mrb[0].mxu0
    %v5102 = vadd.f32 %v4785, %v5101
    %v5103 = vpop.f32.mrb[0].mxu0
    %v5104 = vpop.f32.mrb[0].mxu0
    %v5105 = vadd.f32 %v4785, %v5104
    %v5106 = vpop.f32.mrb[0].mxu0
    %5107 = vmatprep.mubr.bf16.mxu0 %v4701
    %5108 = vmatmul.mubr.bf16.gmra.mrb[0].mxu0 %v4700
    %v5109 = vpop.f32.mrb[0].mxu0
    %v5110 = vadd.f32 %v4785, %v5109
    %v5111 = vpop.f32.mrb[0].mxu0
    %v5112 = vpop.f32.mrb[0].mxu0
    %v5113 = vadd.f32 %v4785, %v5112
    %v5114 = vpop.f32.mrb[0].mxu0
    %5115 = vmatprep.mubr.bf16.mxu0 %v4705
    %5116 = vmatmul.mubr.bf16.gmra.mrb[0].mxu0 %v4704
    %v5117 = vpop.f32.mrb[0].mxu0
    %v5118 = vadd.f32 %v4785, %v5117
    %v5119 = vpop.f32.mrb[0].mxu0
    %v5120 = vpop.f32.mrb[0].mxu0
    %v5121 = vadd.f32 %v4785, %v5120
    %v5122 = vpop.f32.mrb[0].mxu0
    %5123 = vmatprep.mubr.bf16.mxu0 %v4709
    %5124 = vmatmul.mubr.bf16.gmra.mrb[0].mxu0 %v4708
    %v5125 = vpop.f32.mrb[0].mxu0
    %v5126 = vadd.f32 %v4785, %v5125
    %v5127 = vpop.f32.mrb[0].mxu0
    %v5128 = vpop.f32.mrb[0].mxu0
    %v5129 = vadd.f32 %v4785, %v5128
    %v5130 = vpop.f32.mrb[0].mxu0
    %5131 = vmatprep.mubr.bf16.mxu0 %v4713
    %5132 = vmatmul.mubr.bf16.gmra.mrb[0].mxu0 %v4712
    %v5133 = vpop.f32.mrb[0].mxu0
    %v5134 = vadd.f32 %v4785, %v5133
    %v5135 = vpop.f32.mrb[0].mxu0
    %v5136 = vpop.f32.mrb[0].mxu0
    %v5137 = vadd.f32 %v4785, %v5136
    %v5138 = vpop.f32.mrb[0].mxu0
    %5139 = vdwg.mxu0
    %5140 = vmatprep.subr.bf16.mxu0 0
    %5141 = vmatpush1.bf16.msra.mxu0 %v4931
    %5142 = vmatprep.subr.bf16.mxu0 0
    %5143 = vmatpush1.bf16.msra.mxu0 %v4932
    %5144 = vmatprep.subr.bf16.mxu0 0
    %5145 = vmatpush1.bf16.msra.mxu0 %v4933
    %5146 = vmatprep.subr.bf16.mxu0 0
    %5147 = vmatpush1.bf16.msra.mxu0 %v4934
    %5148 = vmatprep.subr.bf16.mxu0 0
    %5149 = vmatpush1.bf16.msra.mxu0 %v4935
    %5150 = vmatprep.subr.bf16.mxu0 0
    %5151 = vmatpush1.bf16.msra.mxu0 %v4936
    %5152 = vmatprep.subr.bf16.mxu0 0
    %5153 = vmatpush1.bf16.msra.mxu0 %v4937
    %5154 = vmatprep.subr.bf16.mxu0 0
    %5155 = vmatpush1.bf16.msra.mxu0 %v4938
    %5156 = vmatprep.subr.bf16.mxu0 0
    %5157 = vmatpush1.bf16.msra.mxu0 %v4939
    %5158 = vmatprep.subr.bf16.mxu0 0
    %5159 = vmatpush1.bf16.msra.mxu0 %v4940
    %5160 = vmatprep.subr.bf16.mxu0 0
    %5161 = vmatpush1.bf16.msra.mxu0 %v4941
    %5162 = vmatprep.subr.bf16.mxu0 0
    %5163 = vmatpush1.bf16.msra.mxu0 %v4942
    %5164 = vmatprep.subr.bf16.mxu0 0
    %5165 = vmatpush1.bf16.msra.mxu0 %v4943
    %5166 = vmatprep.subr.bf16.mxu0 0
    %5167 = vmatpush1.bf16.msra.mxu0 %v4944
    %5168 = vmatprep.subr.bf16.mxu0 0
    %5169 = vmatpush1.bf16.msra.mxu0 %v4945
    %5170 = vmatprep.subr.bf16.mxu0 0
    %5171 = vmatpush1.bf16.msra.mxu0 %v4946
    %5172 = vmatprep.mubr.bf16.mxu0 %v4655
    %5173 = vmatmul.mubr.bf16.gmra.mrb[0].mxu0 %v4654
    %v5174 = vpop.f32.mrb[0].mxu0
    %v5175 = vadd.f32 %v5014, %v5174
    %v5176 = vpop.f32.mrb[0].mxu0
    %v5177 = vpop.f32.mrb[0].mxu0
    %v5178 = vadd.f32 %v5017, %v5177
    %v5179 = vpop.f32.mrb[0].mxu0
    %5180 = vmatprep.mubr.bf16.mxu0 %v4659
    %5181 = vmatmul.mubr.bf16.gmra.mrb[0].mxu0 %v4658
    %v5182 = vpop.f32.mrb[0].mxu0
    %v5183 = vadd.f32 %v5022, %v5182
    %v5184 = vpop.f32.mrb[0].mxu0
    %v5185 = vpop.f32.mrb[0].mxu0
    %v5186 = vadd.f32 %v5025, %v5185
    %v5187 = vpop.f32.mrb[0].mxu0
    %5188 = vmatprep.mubr.bf16.mxu0 %v4663
    %5189 = vmatmul.mubr.bf16.gmra.mrb[0].mxu0 %v4662
    %v5190 = vpop.f32.mrb[0].mxu0
    %v5191 = vadd.f32 %v5030, %v5190
    %v5192 = vpop.f32.mrb[0].mxu0
    %v5193 = vpop.f32.mrb[0].mxu0
    %v5194 = vadd.f32 %v5033, %v5193
    %v5195 = vpop.f32.mrb[0].mxu0
    %5196 = vmatprep.mubr.bf16.mxu0 %v4667
    %5197 = vmatmul.mubr.bf16.gmra.mrb[0].mxu0 %v4666
    %v5198 = vpop.f32.mrb[0].mxu0
    %v5199 = vadd.f32 %v5038, %v5198
    %v5200 = vpop.f32.mrb[0].mxu0
    %v5201 = vpop.f32.mrb[0].mxu0
    %v5202 = vadd.f32 %v5041, %v5201
    %v5203 = vpop.f32.mrb[0].mxu0
    %5204 = vmatprep.mubr.bf16.mxu0 %v4671
    %5205 = vmatmul.mubr.bf16.gmra.mrb[0].mxu0 %v4670
    %v5206 = vpop.f32.mrb[0].mxu0
    %v5207 = vadd.f32 %v5046, %v5206
    %v5208 = vpop.f32.mrb[0].mxu0
    %v5209 = vpop.f32.mrb[0].mxu0
    %v5210 = vadd.f32 %v5049, %v5209
    %v5211 = vpop.f32.mrb[0].mxu0
    %5212 = vmatprep.mubr.bf16.mxu0 %v4675
    %5213 = vmatmul.mubr.bf16.gmra.mrb[0].mxu0 %v4674
    %v5214 = vpop.f32.mrb[0].mxu0
    %v5215 = vadd.f32 %v5054, %v5214
    %v5216 = vpop.f32.mrb[0].mxu0
    %v5217 = vpop.f32.mrb[0].mxu0
    %v5218 = vadd.f32 %v5057, %v5217
    %v5219 = vpop.f32.mrb[0].mxu0
    %5220 = vmatprep.mubr.bf16.mxu0 %v4679
    %5221 = vmatmul.mubr.bf16.gmra.mrb[0].mxu0 %v4678
    %v5222 = vpop.f32.mrb[0].mxu0
    %v5223 = vadd.f32 %v5062, %v5222
    %v5224 = vpop.f32.mrb[0].mxu0
    %v5225 = vpop.f32.mrb[0].mxu0
    %v5226 = vadd.f32 %v5065, %v5225
    %v5227 = vpop.f32.mrb[0].mxu0
    %5228 = vmatprep.mubr.bf16.mxu0 %v4683
    %5229 = vmatmul.mubr.bf16.gmra.mrb[0].mxu0 %v4682
    %v5230 = vpop.f32.mrb[0].mxu0
    %v5231 = vadd.f32 %v5070, %v5230
    %v5232 = vpop.f32.mrb[0].mxu0
    %v5233 = vpop.f32.mrb[0].mxu0
    %v5234 = vadd.f32 %v5073, %v5233
    %v5235 = vpop.f32.mrb[0].mxu0
    %5236 = vmatprep.mubr.bf16.mxu0 %v4687
    %5237 = vmatmul.mubr.bf16.gmra.mrb[0].mxu0 %v4686
    %v5238 = vpop.f32.mrb[0].mxu0
    %v5239 = vadd.f32 %v5078, %v5238
    %v5240 = vpop.f32.mrb[0].mxu0
    %v5241 = vpop.f32.mrb[0].mxu0
    %v5242 = vadd.f32 %v5081, %v5241
    %v5243 = vpop.f32.mrb[0].mxu0
    %5244 = vmatprep.mubr.bf16.mxu0 %v4691
    %5245 = vmatmul.mubr.bf16.gmra.mrb[0].mxu0 %v4690
    %v5246 = vpop.f32.mrb[0].mxu0
    %v5247 = vadd.f32 %v5086, %v5246
    %v5248 = vpop.f32.mrb[0].mxu0
    %v5249 = vpop.f32.mrb[0].mxu0
    %v5250 = vadd.f32 %v5089, %v5249
    %v5251 = vpop.f32.mrb[0].mxu0
    %5252 = vmatprep.mubr.bf16.mxu0 %v4695
    %5253 = vmatmul.mubr.bf16.gmra.mrb[0].mxu0 %v4694
    %v5254 = vpop.f32.mrb[0].mxu0
    %v5255 = vadd.f32 %v5094, %v5254
    %v5256 = vpop.f32.mrb[0].mxu0
    %v5257 = vpop.f32.mrb[0].mxu0
    %v5258 = vadd.f32 %v5097, %v5257
    %v5259 = vpop.f32.mrb[0].mxu0
    %5260 = vmatprep.mubr.bf16.mxu0 %v4699
    %5261 = vmatmul.mubr.bf16.gmra.mrb[0].mxu0 %v4698
    %v5262 = vpop.f32.mrb[0].mxu0
    %v5263 = vadd.f32 %v5102, %v5262
    %v5264 = vpop.f32.mrb[0].mxu0
    %v5265 = vpop.f32.mrb[0].mxu0
    %v5266 = vadd.f32 %v5105, %v5265
    %v5267 = vpop.f32.mrb[0].mxu0
    %5268 = vmatprep.mubr.bf16.mxu0 %v4703
    %5269 = vmatmul.mubr.bf16.gmra.mrb[0].mxu0 %v4702
    %v5270 = vpop.f32.mrb[0].mxu0
    %v5271 = vadd.f32 %v5110, %v5270
    %v5272 = vpop.f32.mrb[0].mxu0
    %v5273 = vpop.f32.mrb[0].mxu0
    %v5274 = vadd.f32 %v5113, %v5273
    %v5275 = vpop.f32.mrb[0].mxu0
    %5276 = vmatprep.mubr.bf16.mxu0 %v4707
    %5277 = vmatmul.mubr.bf16.gmra.mrb[0].mxu0 %v4706
    %v5278 = vpop.f32.mrb[0].mxu0
    %v5279 = vadd.f32 %v5118, %v5278
    %v5280 = vpop.f32.mrb[0].mxu0
    %v5281 = vpop.f32.mrb[0].mxu0
    %v5282 = vadd.f32 %v5121, %v5281
    %v5283 = vpop.f32.mrb[0].mxu0
    %5284 = vmatprep.mubr.bf16.mxu0 %v4711
    %5285 = vmatmul.mubr.bf16.gmra.mrb[0].mxu0 %v4710
    %v5286 = vpop.f32.mrb[0].mxu0
    %v5287 = vadd.f32 %v5126, %v5286
    %v5288 = vpop.f32.mrb[0].mxu0
    %v5289 = vpop.f32.mrb[0].mxu0
    %v5290 = vadd.f32 %v5129, %v5289
    %v5291 = vpop.f32.mrb[0].mxu0
    %5292 = vmatprep.mubr.bf16.mxu0 %v4715
    %5293 = vmatmul.mubr.bf16.gmra.mrb[0].mxu0 %v4714
    %v5294 = vpop.f32.mrb[0].mxu0
    %v5295 = vadd.f32 %v5134, %v5294
    %v5296 = vpop.f32.mrb[0].mxu0
    %v5297 = vpop.f32.mrb[0].mxu0
    %v5298 = vadd.f32 %v5137, %v5297
    %v5299 = vpop.f32.mrb[0].mxu0
    %5300 = vdwg.mxu0
    %5301 = vmax.xlane.f32.xlu0 %v5175
    %v5302 = vpop.xlane.xlu0 %5301
    %5303 = vmax.xlane.f32.xlu0 %v5178
    %v5304 = vpop.xlane.xlu0 %5303
    %5305 = vmax.xlane.f32.xlu0 %v5183
    %v5306 = vpop.xlane.xlu0 %5305
    %5307 = vmax.xlane.f32.xlu0 %v5186
    %v5308 = vpop.xlane.xlu0 %5307
    %5309 = vmax.xlane.f32.xlu0 %v5191
    %v5310 = vpop.xlane.xlu0 %5309
    %5311 = vmax.xlane.f32.xlu0 %v5194
    %v5312 = vpop.xlane.xlu0 %5311
    %5313 = vmax.xlane.f32.xlu0 %v5199
    %v5314 = vpop.xlane.xlu0 %5313
    %5315 = vmax.xlane.f32.xlu0 %v5202
    %v5316 = vpop.xlane.xlu0 %5315
    %5317 = vmax.xlane.f32.xlu0 %v5207
    %v5318 = vpop.xlane.xlu0 %5317
    %5319 = vmax.xlane.f32.xlu0 %v5210
    %v5320 = vpop.xlane.xlu0 %5319
    %5321 = vmax.xlane.f32.xlu0 %v5215
    %v5322 = vpop.xlane.xlu0 %5321
    %5323 = vmax.xlane.f32.xlu0 %v5218
    %v5324 = vpop.xlane.xlu0 %5323
    %5325 = vmax.xlane.f32.xlu0 %v5223
    %v5326 = vpop.xlane.xlu0 %5325
    %5327 = vmax.xlane.f32.xlu0 %v5226
    %v5328 = vpop.xlane.xlu0 %5327
    %5329 = vmax.xlane.f32.xlu0 %v5231
    %v5330 = vpop.xlane.xlu0 %5329
    %5331 = vmax.xlane.f32.xlu0 %v5234
    %v5332 = vpop.xlane.xlu0 %5331
    %5333 = vmax.xlane.f32.xlu0 %v5239
    %v5334 = vpop.xlane.xlu0 %5333
    %5335 = vmax.xlane.f32.xlu0 %v5242
    %v5336 = vpop.xlane.xlu0 %5335
    %5337 = vmax.xlane.f32.xlu0 %v5247
    %v5338 = vpop.xlane.xlu0 %5337
    %5339 = vmax.xlane.f32.xlu0 %v5250
    %v5340 = vpop.xlane.xlu0 %5339
    %5341 = vmax.xlane.f32.xlu0 %v5255
    %v5342 = vpop.xlane.xlu0 %5341
    %5343 = vmax.xlane.f32.xlu0 %v5258
    %v5344 = vpop.xlane.xlu0 %5343
    %5345 = vmax.xlane.f32.xlu0 %v5263
    %v5346 = vpop.xlane.xlu0 %5345
    %5347 = vmax.xlane.f32.xlu0 %v5266
    %v5348 = vpop.xlane.xlu0 %5347
    %5349 = vmax.xlane.f32.xlu0 %v5271
    %v5350 = vpop.xlane.xlu0 %5349
    %5351 = vmax.xlane.f32.xlu0 %v5274
    %v5352 = vpop.xlane.xlu0 %5351
    %5353 = vmax.xlane.f32.xlu0 %v5279
    %v5354 = vpop.xlane.xlu0 %5353
    %5355 = vmax.xlane.f32.xlu0 %v5282
    %v5356 = vpop.xlane.xlu0 %5355
    %5357 = vmax.xlane.f32.xlu0 %v5287
    %v5358 = vpop.xlane.xlu0 %5357
    %5359 = vmax.xlane.f32.xlu0 %v5290
    %v5360 = vpop.xlane.xlu0 %5359
    %5361 = vmax.xlane.f32.xlu0 %v5295
    %v5362 = vpop.xlane.xlu0 %5361
    %5363 = vmax.xlane.f32.xlu0 %v5298
    %v5364 = vpop.xlane.xlu0 %5363
    %v5365 = vsub.f32 %v5175, %v5302
    %v5366 = vsub.f32 %v5178, %v5304
    %v5367 = vsub.f32 %v5183, %v5306
    %v5368 = vsub.f32 %v5186, %v5308
    %v5369 = vsub.f32 %v5191, %v5310
    %v5370 = vsub.f32 %v5194, %v5312
    %v5371 = vsub.f32 %v5199, %v5314
    %v5372 = vsub.f32 %v5202, %v5316
    %v5373 = vsub.f32 %v5207, %v5318
    %v5374 = vsub.f32 %v5210, %v5320
    %v5375 = vsub.f32 %v5215, %v5322
    %v5376 = vsub.f32 %v5218, %v5324
    %v5377 = vsub.f32 %v5223, %v5326
    %v5378 = vsub.f32 %v5226, %v5328
    %v5379 = vsub.f32 %v5231, %v5330
    %v5380 = vsub.f32 %v5234, %v5332
    %v5381 = vsub.f32 %v5239, %v5334
    %v5382 = vsub.f32 %v5242, %v5336
    %v5383 = vsub.f32 %v5247, %v5338
    %v5384 = vsub.f32 %v5250, %v5340
    %v5385 = vsub.f32 %v5255, %v5342
    %v5386 = vsub.f32 %v5258, %v5344
    %v5387 = vsub.f32 %v5263, %v5346
    %v5388 = vsub.f32 %v5266, %v5348
    %v5389 = vsub.f32 %v5271, %v5350
    %v5390 = vsub.f32 %v5274, %v5352
    %v5391 = vsub.f32 %v5279, %v5354
    %v5392 = vsub.f32 %v5282, %v5356
    %v5393 = vsub.f32 %v5287, %v5358
    %v5394 = vsub.f32 %v5290, %v5360
    %v5395 = vsub.f32 %v5295, %v5362
    %v5396 = vsub.f32 %v5298, %v5364
    %v5397 = vmul.f32 %v5365, 1.442695
    %v5398 = vpow.pop %v5397
    %v5399 = vmul.f32 %v5366, 1.442695
    %v5400 = vpow.pop %v5399
    %v5401 = vmul.f32 %v5367, 1.442695
    %v5402 = vpow.pop %v5401
    %v5403 = vmul.f32 %v5368, 1.442695
    %v5404 = vpow.pop %v5403
    %v5405 = vmul.f32 %v5369, 1.442695
    %v5406 = vpow.pop %v5405
    %v5407 = vmul.f32 %v5370, 1.442695
    %v5408 = vpow.pop %v5407
    %v5409 = vmul.f32 %v5371, 1.442695
    %v5410 = vpow.pop %v5409
    %v5411 = vmul.f32 %v5372, 1.442695
    %v5412 = vpow.pop %v5411
    %v5413 = vmul.f32 %v5373, 1.442695
    %v5414 = vpow.pop %v5413
    %v5415 = vmul.f32 %v5374, 1.442695
    %v5416 = vpow.pop %v5415
    %v5417 = vmul.f32 %v5375, 1.442695
    %v5418 = vpow.pop %v5417
    %v5419 = vmul.f32 %v5376, 1.442695
    %v5420 = vpow.pop %v5419
    %v5421 = vmul.f32 %v5377, 1.442695
    %v5422 = vpow.pop %v5421
    %v5423 = vmul.f32 %v5378, 1.442695
    %v5424 = vpow.pop %v5423
    %v5425 = vmul.f32 %v5379, 1.442695
    %v5426 = vpow.pop %v5425
    %v5427 = vmul.f32 %v5380, 1.442695
    %v5428 = vpow.pop %v5427
    %v5429 = vmul.f32 %v5381, 1.442695
    %v5430 = vpow.pop %v5429
    %v5431 = vmul.f32 %v5382, 1.442695
    %v5432 = vpow.pop %v5431
    %v5433 = vmul.f32 %v5383, 1.442695
    %v5434 = vpow.pop %v5433
    %v5435 = vmul.f32 %v5384, 1.442695
    %v5436 = vpow.pop %v5435
    %v5437 = vmul.f32 %v5385, 1.442695
    %v5438 = vpow.pop %v5437
    %v5439 = vmul.f32 %v5386, 1.442695
    %v5440 = vpow.pop %v5439
    %v5441 = vmul.f32 %v5387, 1.442695
    %v5442 = vpow.pop %v5441
    %v5443 = vmul.f32 %v5388, 1.442695
    %v5444 = vpow.pop %v5443
    %v5445 = vmul.f32 %v5389, 1.442695
    %v5446 = vpow.pop %v5445
    %v5447 = vmul.f32 %v5390, 1.442695
    %v5448 = vpow.pop %v5447
    %v5449 = vmul.f32 %v5391, 1.442695
    %v5450 = vpow.pop %v5449
    %v5451 = vmul.f32 %v5392, 1.442695
    %v5452 = vpow.pop %v5451
    %v5453 = vmul.f32 %v5393, 1.442695
    %v5454 = vpow.pop %v5453
    %v5455 = vmul.f32 %v5394, 1.442695
    %v5456 = vpow.pop %v5455
    %v5457 = vmul.f32 %v5395, 1.442695
    %v5458 = vpow.pop %v5457
    %v5459 = vmul.f32 %v5396, 1.442695
    %v5460 = vpow.pop %v5459
    %5461 = vadd.xlane.f32.xlu0 %v5398
    %v5462 = vpop.xlane.xlu0 %5461
    %5463 = vadd.xlane.f32.xlu0 %v5400
    %v5464 = vpop.xlane.xlu0 %5463
    %5465 = vadd.xlane.f32.xlu0 %v5402
    %v5466 = vpop.xlane.xlu0 %5465
    %5467 = vadd.xlane.f32.xlu0 %v5404
    %v5468 = vpop.xlane.xlu0 %5467
    %5469 = vadd.xlane.f32.xlu0 %v5406
    %v5470 = vpop.xlane.xlu0 %5469
    %5471 = vadd.xlane.f32.xlu0 %v5408
    %v5472 = vpop.xlane.xlu0 %5471
    %5473 = vadd.xlane.f32.xlu0 %v5410
    %v5474 = vpop.xlane.xlu0 %5473
    %5475 = vadd.xlane.f32.xlu0 %v5412
    %v5476 = vpop.xlane.xlu0 %5475
    %5477 = vadd.xlane.f32.xlu0 %v5414
    %v5478 = vpop.xlane.xlu0 %5477
    %5479 = vadd.xlane.f32.xlu0 %v5416
    %v5480 = vpop.xlane.xlu0 %5479
    %5481 = vadd.xlane.f32.xlu0 %v5418
    %v5482 = vpop.xlane.xlu0 %5481
    %5483 = vadd.xlane.f32.xlu0 %v5420
    %v5484 = vpop.xlane.xlu0 %5483
    %5485 = vadd.xlane.f32.xlu0 %v5422
    %v5486 = vpop.xlane.xlu0 %5485
    %5487 = vadd.xlane.f32.xlu0 %v5424
    %v5488 = vpop.xlane.xlu0 %5487
    %5489 = vadd.xlane.f32.xlu0 %v5426
    %v5490 = vpop.xlane.xlu0 %5489
    %5491 = vadd.xlane.f32.xlu0 %v5428
    %v5492 = vpop.xlane.xlu0 %5491
    %5493 = vadd.xlane.f32.xlu0 %v5430
    %v5494 = vpop.xlane.xlu0 %5493
    %5495 = vadd.xlane.f32.xlu0 %v5432
    %v5496 = vpop.xlane.xlu0 %5495
    %5497 = vadd.xlane.f32.xlu0 %v5434
    %v5498 = vpop.xlane.xlu0 %5497
    %5499 = vadd.xlane.f32.xlu0 %v5436
    %v5500 = vpop.xlane.xlu0 %5499
    %5501 = vadd.xlane.f32.xlu0 %v5438
    %v5502 = vpop.xlane.xlu0 %5501
    %5503 = vadd.xlane.f32.xlu0 %v5440
    %v5504 = vpop.xlane.xlu0 %5503
    %5505 = vadd.xlane.f32.xlu0 %v5442
    %v5506 = vpop.xlane.xlu0 %5505
    %5507 = vadd.xlane.f32.xlu0 %v5444
    %v5508 = vpop.xlane.xlu0 %5507
    %5509 = vadd.xlane.f32.xlu0 %v5446
    %v5510 = vpop.xlane.xlu0 %5509
    %5511 = vadd.xlane.f32.xlu0 %v5448
    %v5512 = vpop.xlane.xlu0 %5511
    %5513 = vadd.xlane.f32.xlu0 %v5450
    %v5514 = vpop.xlane.xlu0 %5513
    %5515 = vadd.xlane.f32.xlu0 %v5452
    %v5516 = vpop.xlane.xlu0 %5515
    %5517 = vadd.xlane.f32.xlu0 %v5454
    %v5518 = vpop.xlane.xlu0 %5517
    %5519 = vadd.xlane.f32.xlu0 %v5456
    %v5520 = vpop.xlane.xlu0 %5519
    %5521 = vadd.xlane.f32.xlu0 %v5458
    %v5522 = vpop.xlane.xlu0 %5521
    %5523 = vadd.xlane.f32.xlu0 %v5460
    %v5524 = vpop.xlane.xlu0 %5523
    %v5525 = vrcp.pop %v5462
    %v5526 = vrcp.pop %v5464
    %v5527 = vrcp.pop %v5466
    %v5528 = vrcp.pop %v5468
    %v5529 = vrcp.pop %v5470
    %v5530 = vrcp.pop %v5472
    %v5531 = vrcp.pop %v5474
    %v5532 = vrcp.pop %v5476
    %v5533 = vrcp.pop %v5478
    %v5534 = vrcp.pop %v5480
    %v5535 = vrcp.pop %v5482
    %v5536 = vrcp.pop %v5484
    %v5537 = vrcp.pop %v5486
    %v5538 = vrcp.pop %v5488
    %v5539 = vrcp.pop %v5490
    %v5540 = vrcp.pop %v5492
    %v5541 = vrcp.pop %v5494
    %v5542 = vrcp.pop %v5496
    %v5543 = vrcp.pop %v5498
    %v5544 = vrcp.pop %v5500
    %v5545 = vrcp.pop %v5502
    %v5546 = vrcp.pop %v5504
    %v5547 = vrcp.pop %v5506
    %v5548 = vrcp.pop %v5508
    %v5549 = vrcp.pop %v5510
    %v5550 = vrcp.pop %v5512
    %v5551 = vrcp.pop %v5514
    %v5552 = vrcp.pop %v5516
    %v5553 = vrcp.pop %v5518
    %v5554 = vrcp.pop %v5520
    %v5555 = vrcp.pop %v5522
    %v5556 = vrcp.pop %v5524
    %v5557 = vmul.f32 %v5398, %v5525
    %v5558 = vmul.f32 %v5400, %v5526
    %v5559 = vmul.f32 %v5402, %v5527
    %v5560 = vmul.f32 %v5404, %v5528
    %v5561 = vmul.f32 %v5406, %v5529
    %v5562 = vmul.f32 %v5408, %v5530
    %v5563 = vmul.f32 %v5410, %v5531
    %v5564 = vmul.f32 %v5412, %v5532
    %v5565 = vmul.f32 %v5414, %v5533
    %v5566 = vmul.f32 %v5416, %v5534
    %v5567 = vmul.f32 %v5418, %v5535
    %v5568 = vmul.f32 %v5420, %v5536
    %v5569 = vmul.f32 %v5422, %v5537
    %v5570 = vmul.f32 %v5424, %v5538
    %v5571 = vmul.f32 %v5426, %v5539
    %v5572 = vmul.f32 %v5428, %v5540
    %v5573 = vmul.f32 %v5430, %v5541
    %v5574 = vmul.f32 %v5432, %v5542
    %v5575 = vmul.f32 %v5434, %v5543
    %v5576 = vmul.f32 %v5436, %v5544
    %v5577 = vmul.f32 %v5438, %v5545
    %v5578 = vmul.f32 %v5440, %v5546
    %v5579 = vmul.f32 %v5442, %v5547
    %v5580 = vmul.f32 %v5444, %v5548
    %v5581 = vmul.f32 %v5446, %v5549
    %v5582 = vmul.f32 %v5448, %v5550
    %v5583 = vmul.f32 %v5450, %v5551
    %v5584 = vmul.f32 %v5452, %v5552
    %v5585 = vmul.f32 %v5454, %v5553
    %v5586 = vmul.f32 %v5456, %v5554
    %v5587 = vmul.f32 %v5458, %v5555
    %v5588 = vmul.f32 %v5460, %v5556
    %5589 = vst [vmem:[#allocation7] sm:$0xff] %v5557
    %5590 = vst [vmem:[#allocation7 + $0x8] sm:$0xff] %v5558
    %5591 = vst [vmem:[#allocation7 + $0x10] sm:$0xff] %v5559
    %5592 = vst [vmem:[#allocation7 + $0x18] sm:$0xff] %v5560
    %5593 = vst [vmem:[#allocation7 + $0x20] sm:$0xff] %v5561
    %5594 = vst [vmem:[#allocation7 + $0x28] sm:$0xff] %v5562
    %5595 = vst [vmem:[#allocation7 + $0x30] sm:$0xff] %v5563
    %5596 = vst [vmem:[#allocation7 + $0x38] sm:$0xff] %v5564
    %5597 = vst [vmem:[#allocation7 + $0x40] sm:$0xff] %v5565
    %5598 = vst [vmem:[#allocation7 + $0x48] sm:$0xff] %v5566
    %5599 = vst [vmem:[#allocation7 + $0x50] sm:$0xff] %v5567
    %5600 = vst [vmem:[#allocation7 + $0x58] sm:$0xff] %v5568
    %5601 = vst [vmem:[#allocation7 + $0x60] sm:$0xff] %v5569
    %5602 = vst [vmem:[#allocation7 + $0x68] sm:$0xff] %v5570
    %5603 = vst [vmem:[#allocation7 + $0x70] sm:$0xff] %v5571
    %5604 = vst [vmem:[#allocation7 + $0x78] sm:$0xff] %v5572
    %5605 = vst [vmem:[#allocation7 + $0x80] sm:$0xff] %v5573
    %5606 = vst [vmem:[#allocation7 + $0x88] sm:$0xff] %v5574
    %5607 = vst [vmem:[#allocation7 + $0x90] sm:$0xff] %v5575
    %5608 = vst [vmem:[#allocation7 + $0x98] sm:$0xff] %v5576
    %5609 = vst [vmem:[#allocation7 + $0xa0] sm:$0xff] %v5577
    %5610 = vst [vmem:[#allocation7 + $0xa8] sm:$0xff] %v5578
    %5611 = vst [vmem:[#allocation7 + $0xb0] sm:$0xff] %v5579
    %5612 = vst [vmem:[#allocation7 + $0xb8] sm:$0xff] %v5580
    %5613 = vst [vmem:[#allocation7 + $0xc0] sm:$0xff] %v5581
    %5614 = vst [vmem:[#allocation7 + $0xc8] sm:$0xff] %v5582
    %5615 = vst [vmem:[#allocation7 + $0xd0] sm:$0xff] %v5583
    %5616 = vst [vmem:[#allocation7 + $0xd8] sm:$0xff] %v5584
    %5617 = vst [vmem:[#allocation7 + $0xe0] sm:$0xff] %v5585
    %5618 = vst [vmem:[#allocation7 + $0xe8] sm:$0xff] %v5586
    %5619 = vst [vmem:[#allocation7 + $0xf0] sm:$0xff] %v5587
    %5620 = vst [vmem:[#allocation7 + $0xf8] sm:$0xff] %v5588
    // Predicated region
    $region38: #{tpu_custom_call.1} parent=1 // pred_check
      _
    $region39: #{tpu_custom_call.1} parent=1 // pred_check_branch
      %5622 = sbr.rel (0) target = $region41
    $region40: #{tpu_custom_call.1} parent=1 // pred_region
      %s5624 = ssub.s32 4096, 4096
      %5625 = vsyncadd [#allocation4], %s5624
      %s5626 = sshll.u32 [#allocation7], 4
      %s5627 = int_to_ptr.vmem [resolvable:$true] %s5626
      %5632 = dma.vmem_to_hbm [thread:$0]  %s5627, 4096, %s7, [#allocation4], 128, 128, 8
    $region41: #{tpu_custom_call.1} parent=1 // pred_fallthru
      _
    // Predicated region
    $region42: #{tpu_custom_call.1} parent=1 // pred_check
      _
    $region43: #{tpu_custom_call.1} parent=1 // pred_check_branch
      %5634 = sbr.rel (0) target = $region45
    $region44: #{tpu_custom_call.1} parent=1 // pred_region
      %5635 = dma.done [#allocation4], 4096
    $region45: #{tpu_custom_call.1} parent=1 // pred_fallthru
      _
    %5636 = vsyncpa [#allocation3], 1
    %5637 = vsyncpa [#allocation6], 1
    %5638 = vsyncpa [#allocation4], 1

</llo_original>
